<compile_context>
chip_gen: v5e
topology: v5e:2x2
jax: 0.10.0
libtpu: 0.0.40
codegen_flags: <defaults>
</compile_context>

<pallas_src>
import functools

import jax
import jax.numpy as jnp
import numpy as np
from jax.experimental import pallas as pl
from jax.experimental.pallas import tpu as pltpu

GENDER_DIM = 32
LN_EPS = 1e-5
_HIGH = jax.lax.Precision.HIGHEST


def _ln_cols(h, gamma_col, beta_col):
    """LayerNorm over axis 0 (the attn_dim axis) of a (D, n) column-oriented tile."""
    mu = jnp.mean(h, axis=0, keepdims=True)
    var = jnp.mean(jnp.square(h - mu), axis=0, keepdims=True)
    return (h - mu) * jax.lax.rsqrt(var + LN_EPS) * gamma_col + beta_col


def _adaa_kernel(x_ref, g_ref, wx_ref, wg_ref, gamma_ref, beta_ref, wfc2_ref,
                 xw_ref, cls_ref, attn_ref, *, D, scale, Bt):
    # Weights: constant index_map -> fetched into VMEM once, reused every step.
    wx = wx_ref[...].astype(jnp.float32)          # (3D, C)   rows: [q | k | v]
    wg = wg_ref[...].astype(jnp.float32)          # (3D, 32)
    gamma = gamma_ref[...].astype(jnp.float32)    # (D, 1)
    beta = beta_ref[...].astype(jnp.float32)      # (D, 1)
    wfc2 = wfc2_ref[...].astype(jnp.float32)      # (D, C)
    wx_kv = wx[D:]                                # (2D, C)   k/v channel weights

    # Static (unrolled) loop over the batch tile.
    for bi in range(Bt):
        x = x_ref[bi].astype(jnp.float32)         # (C, HW)  lane-dense over HW
        g = g_ref[bi].astype(jnp.float32)         # (1, 32)

        # AdaptiveAvgPool2d(1): cls token as a (C, 1) column (lane reduction).
        cls_col = jnp.mean(x, axis=1, keepdims=True)

        # Gender contribution to the q/k/v pre-activations (same for every
        # token): (3D, 32) * (1, 32) broadcast + lane reduce -> (3D, 1).
        bias_all = jnp.sum(wg * g, axis=1, keepdims=True)

        # --- k/v for the HW spatial tokens, (D, HW)-oriented (lane-dense) ---
        pre_kv_x = jnp.dot(wx_kv, x, precision=_HIGH,
                           preferred_element_type=jnp.float32) + bias_all[D:]
        h_kv_x = jnp.maximum(pre_kv_x, 0.0)                     # ReLU
        k_x = _ln_cols(h_kv_x[:D], gamma, beta)                 # (D, HW)
        v_x = _ln_cols(h_kv_x[D:], gamma, beta)                 # (D, HW)

        # --- q/k/v for the single cls token, (D, 1) columns ---
        pre_c = jnp.dot(wx, cls_col, precision=_HIGH,
                        preferred_element_type=jnp.float32) + bias_all   # (3D, 1)
        h_c = jnp.maximum(pre_c, 0.0)
        q_c = _ln_cols(h_c[:D], gamma, beta)                    # (D, 1)
        k_c = _ln_cols(h_c[D:2 * D], gamma, beta)               # (D, 1)
        v_c = _ln_cols(h_c[2 * D:], gamma, beta)                # (D, 1)

        # --- attention row 0 only (query = cls token) ---
        s_c = jnp.sum(q_c * k_c, axis=0, keepdims=True) * scale          # (1, 1)
        s_x = jnp.sum(k_x * q_c, axis=0, keepdims=True) * scale          # (1, HW)
        m = jnp.maximum(jnp.max(s_x, axis=1, keepdims=True), s_c)        # (1, 1)
        e_c = jnp.exp(s_c - m)
        e_x = jnp.exp(s_x - m)
        inv = 1.0 / (e_c + jnp.sum(e_x, axis=1, keepdims=True))          # (1, 1)
        a_x = e_x * inv                                # (1, HW) == attn[0, 1:]
        a_c = e_c * inv                                # (1, 1)  == attn[0, 0]

        # feature_out[:, 0] = attn[0, :] @ v  -> (D, 1) via broadcast + lane reduce.
        feat = a_c * v_c + jnp.sum(v_x * a_x, axis=1, keepdims=True)     # (D, 1)

        # fc2 (1x1 conv) on the cls token: (D, C) * (D, 1) -> sublane reduce -> (1, C).
        cls_out = jnp.sum(wfc2 * feat, axis=0, keepdims=True)            # (1, C)

        xw_ref[bi] = (x * a_x).astype(xw_ref.dtype)    # attn * x (broadcast over C)
        attn_ref[bi] = a_x.astype(attn_ref.dtype)
        cls_ref[bi] = cls_out.astype(cls_ref.dtype)


def adaa_forward(x_nchw, gender, wq, wk, wv, gamma, beta, wfc2, attn_dim):
    B, C, H, W = x_nchw.shape
    HW = H * W
    D = attn_dim
    scale = float(D) ** -0.5

    # Native NCHW flattened to [B, C, HW]: no wrapper-side transposes in or out.
    x_seq = x_nchw.reshape(B, C, HW)
    gender3 = gender.reshape(B, 1, GENDER_DIM)

    # Fuse q/k/v weights and pre-transpose once, outside the kernel.
    wqkv = jnp.concatenate([wq, wk, wv], axis=1)       # (C+32, 3D)
    wx = jnp.transpose(wqkv[:C])                       # (3D, C)   channel part
    wg = jnp.transpose(wqkv[C:])                       # (3D, 32)  gender part
    gamma_col = gamma.reshape(D, 1)
    beta_col = beta.reshape(D, 1)

    # Batch tile: amortize per-grid-step overhead over several samples.
    if B <= 8:
        Bt = B
    else:
        Bt = next(c for c in (8, 4, 2, 1) if B % c == 0)
    grid = (B // Bt,)

    # NOTE: at production sizes (large HW / C) one would additionally tile the
    # HW dimension in these BlockSpecs and set vmem_limit_bytes; at these
    # shapes the per-step footprint is a few tens of KiB, well under VMEM.
    kernel = functools.partial(_adaa_kernel, D=D, scale=scale, Bt=Bt)

    xw, cls_out, attn_row = pl.pallas_call(
        kernel,
        out_shape=(
            jax.ShapeDtypeStruct((B, C, HW), x_nchw.dtype),
            jax.ShapeDtypeStruct((B, 1, C), x_nchw.dtype),
            jax.ShapeDtypeStruct((B, 1, HW), x_nchw.dtype),
        ),
        grid_spec=pltpu.PrefetchScalarGridSpec(
            num_scalar_prefetch=0,
            grid=grid,
            in_specs=[
                pl.BlockSpec((Bt, C, HW), lambda b: (b, 0, 0)),          # x  [B,C,HW]
                pl.BlockSpec((Bt, 1, GENDER_DIM), lambda b: (b, 0, 0)),  # gender
                pl.BlockSpec((3 * D, C), lambda b: (0, 0)),              # fused qkv (channel)
                pl.BlockSpec((3 * D, GENDER_DIM), lambda b: (0, 0)),     # fused qkv (gender)
                pl.BlockSpec((D, 1), lambda b: (0, 0)),                  # LN gamma (col)
                pl.BlockSpec((D, 1), lambda b: (0, 0)),                  # LN beta  (col)
                pl.BlockSpec((D, C), lambda b: (0, 0)),                  # fc2 weight
            ],
            out_specs=[
                pl.BlockSpec((Bt, C, HW), lambda b: (b, 0, 0)),          # attn * x
                pl.BlockSpec((Bt, 1, C), lambda b: (b, 0, 0)),           # cls token out
                pl.BlockSpec((Bt, 1, HW), lambda b: (b, 0, 0)),          # attn map row
            ],
        ),
        compiler_params=pltpu.CompilerParams(
            dimension_semantics=("parallel",)),        # batch steps independent
    )(x_seq, gender3, wx, wg, gamma_col, beta_col, wfc2)

    x_weighted = xw.reshape(B, C, H, W)                # pure reshape, no transpose
    cls_flat = cls_out.reshape(B, C)
    attn_map = attn_row.reshape(B, 1, H, W)
    return x_weighted, cls_flat, attn_map


def adaa_reference(x, gender, wq, wk, wv, gamma, beta, wfc2, attn_dim):
    """Pure-JAX mirror of the PyTorch forward (for verification)."""
    B, C, H, W = x.shape
    cls = jnp.mean(x, axis=(2, 3)).reshape(B, 1, C)
    fv = jnp.transpose(x, (0, 2, 3, 1)).reshape(B, H * W, C)
    ft = jnp.concatenate([cls, fv], axis=1)
    g = jnp.broadcast_to(gender[:, None, :], (B, H * W + 1, GENDER_DIM))
    ft = jnp.concatenate([ft, g], axis=-1)

    def head(w):
        h = jnp.maximum(jnp.matmul(ft, w, precision=_HIGH), 0.0)
        mu = h.mean(-1, keepdims=True)
        var = ((h - mu) ** 2).mean(-1, keepdims=True)
        return (h - mu) / jnp.sqrt(var + LN_EPS) * gamma + beta

    q, k, v = head(wq), head(wk), head(wv)
    attn = jax.nn.softmax(
        jnp.einsum('bnd,bmd->bnm', q, k, precision=_HIGH) * attn_dim ** -0.5, axis=-1)
    fo = jnp.matmul(attn, v, precision=_HIGH)
    cls_out = jnp.matmul(fo[:, 0], wfc2, precision=_HIGH)
    amap = attn[:, 0, 1:].reshape(B, 1, H, W)
    return amap * x, cls_out, amap


if __name__ == "__main__":
    # Small shapes consistent with the module: in_channels=8, attn_dim=32, in_size=16.
    B, C, D, S = 2, 8, 32, 16

    key = jax.random.PRNGKey(0)
    kx, kg, kq, kk, kv, kf = jax.random.split(key, 6)
    x = jax.random.normal(kx, (B, C, S, S), dtype=jnp.float32)
    gender = jax.random.normal(kg, (B, GENDER_DIM), dtype=jnp.float32)

    # Deterministic synthetic parameters (Linear weights stored transposed (in, out)).
    wq = jax.random.normal(kq, (C + GENDER_DIM, D), dtype=jnp.float32) * 0.05
    wk = jax.random.normal(kk, (C + GENDER_DIM, D), dtype=jnp.float32) * 0.05
    wv = jax.random.normal(kv, (C + GENDER_DIM, D), dtype=jnp.float32) * 0.05
    gamma = jnp.ones((D,), dtype=jnp.float32)       # LayerNorm weight
    beta = jnp.zeros((D,), dtype=jnp.float32)       # LayerNorm bias
    wfc2 = jax.random.normal(kf, (D, C), dtype=jnp.float32) * 0.05  # 1x1 conv as matmul

    out_xw, out_cls, out_attn = adaa_forward(x, gender, wq, wk, wv, gamma, beta, wfc2, D)
    jax.block_until_ready((out_xw, out_cls, out_attn))

    ref_xw, ref_cls, ref_attn = adaa_reference(x, gender, wq, wk, wv, gamma, beta, wfc2, D)
    np.testing.assert_allclose(np.asarray(out_attn), np.asarray(ref_attn), rtol=1e-3, atol=1e-5)
    np.testing.assert_allclose(np.asarray(out_cls), np.asarray(ref_cls), rtol=1e-3, atol=1e-4)
    np.testing.assert_allclose(np.asarray(out_xw), np.asarray(ref_xw), rtol=1e-3, atol=1e-4)

    print("KERNEL_OK")
</pallas_src>

<mosaic_0001>
module attributes {stable_mosaic.version = 11 : i64} {
  func.func @_adaa_kernel(%arg0: i32, %arg1: memref<2x8x256xf32, #tpu.memory_space<vmem>>, %arg2: memref<2x1x32xf32, #tpu.memory_space<vmem>>, %arg3: memref<96x8xf32, #tpu.memory_space<vmem>>, %arg4: memref<96x32xf32, #tpu.memory_space<vmem>>, %arg5: memref<32x1xf32, #tpu.memory_space<vmem>>, %arg6: memref<32x1xf32, #tpu.memory_space<vmem>>, %arg7: memref<32x8xf32, #tpu.memory_space<vmem>>, %arg8: memref<2x8x256xf32, #tpu.memory_space<vmem>>, %arg9: memref<2x1x8xf32, #tpu.memory_space<vmem>>, %arg10: memref<2x1x256xf32, #tpu.memory_space<vmem>>) attributes {dimension_semantics = [#tpu.dimension_semantics<parallel>], iteration_bounds = array<i64: 1>, scalar_prefetch = 0 : i64, scratch_operands = 0 : i64, tpu.core_type = #tpu.core_type<tc>, window_params = [{transform_indices = @transform_0, window_bounds = array<i64: 2, 8, 256>}, {transform_indices = @transform_1, window_bounds = array<i64: 2, 1, 32>}, {pipeline_mode = #tpu.pipeline_mode<synchronous>, transform_indices = @transform_2, window_bounds = array<i64: 96, 8>}, {pipeline_mode = #tpu.pipeline_mode<synchronous>, transform_indices = @transform_3, window_bounds = array<i64: 96, 32>}, {pipeline_mode = #tpu.pipeline_mode<synchronous>, transform_indices = @transform_4, window_bounds = array<i64: 32, 1>}, {pipeline_mode = #tpu.pipeline_mode<synchronous>, transform_indices = @transform_5, window_bounds = array<i64: 32, 1>}, {pipeline_mode = #tpu.pipeline_mode<synchronous>, transform_indices = @transform_6, window_bounds = array<i64: 32, 8>}, {transform_indices = @transform_7, window_bounds = array<i64: 2, 8, 256>}, {transform_indices = @transform_8, window_bounds = array<i64: 2, 1, 8>}, {transform_indices = @transform_9, window_bounds = array<i64: 2, 1, 256>}]} {
    %c0 = arith.constant 0 : index
    %c0_0 = arith.constant 0 : index
    %0 = vector.load %arg3[%c0, %c0_0] : memref<96x8xf32, #tpu.memory_space<vmem>>, vector<96x8xf32>
    %c0_1 = arith.constant 0 : index
    %c0_2 = arith.constant 0 : index
    %1 = vector.load %arg4[%c0_1, %c0_2] : memref<96x32xf32, #tpu.memory_space<vmem>>, vector<96x32xf32>
    %c0_3 = arith.constant 0 : index
    %c0_4 = arith.constant 0 : index
    %2 = vector.load %arg5[%c0_3, %c0_4] : memref<32x1xf32, #tpu.memory_space<vmem>>, vector<32x1xf32>
    %c0_5 = arith.constant 0 : index
    %c0_6 = arith.constant 0 : index
    %3 = vector.load %arg6[%c0_5, %c0_6] : memref<32x1xf32, #tpu.memory_space<vmem>>, vector<32x1xf32>
    %c0_7 = arith.constant 0 : index
    %c0_8 = arith.constant 0 : index
    %4 = vector.load %arg7[%c0_7, %c0_8] : memref<32x8xf32, #tpu.memory_space<vmem>>, vector<32x8xf32>
    %5 = vector.extract_strided_slice %0 {offsets = [32, 0], sizes = [64, 8], strides = [1, 1]} : vector<96x8xf32> to vector<64x8xf32>
    %c0_9 = arith.constant 0 : index
    %c0_10 = arith.constant 0 : index
    %c0_11 = arith.constant 0 : index
    %6 = vector.load %arg1[%c0_9, %c0_10, %c0_11] : memref<2x8x256xf32, #tpu.memory_space<vmem>>, vector<1x8x256xf32>
    %7 = vector.shape_cast %6 : vector<1x8x256xf32> to vector<8x256xf32>
    %c0_12 = arith.constant 0 : index
    %c0_13 = arith.constant 0 : index
    %c0_14 = arith.constant 0 : index
    %8 = vector.load %arg2[%c0_12, %c0_13, %c0_14] : memref<2x1x32xf32, #tpu.memory_space<vmem>>, vector<1x1x32xf32>
    %9 = vector.shape_cast %8 : vector<1x1x32xf32> to vector<1x32xf32>
    %cst = arith.constant dense<0.000000e+00> : vector<8xf32>
    %10 = vector.multi_reduction <add>, %7, %cst [1] : vector<8x256xf32> to vector<8xf32>
    %11 = vector.shape_cast %10 : vector<8xf32> to vector<8x1xf32>
    %cst_15 = arith.constant 2.560000e+02 : f32
    %12 = vector.broadcast %cst_15 : f32 to vector<8x1xf32>
    %13 = arith.divf %11, %12 : vector<8x1xf32>
    %14 = vector.broadcast %9 : vector<1x32xf32> to vector<96x32xf32>
    %15 = arith.mulf %1, %14 : vector<96x32xf32>
    %cst_16 = arith.constant dense<0.000000e+00> : vector<96xf32>
    %16 = vector.multi_reduction <add>, %15, %cst_16 [1] : vector<96x32xf32> to vector<96xf32>
    %17 = vector.shape_cast %16 : vector<96xf32> to vector<96x1xf32>
    %cst_17 = arith.constant dense<0.000000e+00> : vector<64x256xf32>
    %18 = tpu.matmul %5, %7, %cst_17 {dimension_numbers = #tpu.dot_dimension_numbers<[1], [0], [0], [1], [0, 0, 1, 1], [], []>, precision = #tpu.contract_precision<fp32>} : vector<64x8xf32>, vector<8x256xf32>, vector<64x256xf32> -> vector<64x256xf32>
    %19 = vector.extract_strided_slice %17 {offsets = [32, 0], sizes = [64, 1], strides = [1, 1]} : vector<96x1xf32> to vector<64x1xf32>
    %20 = vector.broadcast %19 : vector<64x1xf32> to vector<64x256xf32>
    %21 = arith.addf %18, %20 : vector<64x256xf32>
    %cst_18 = arith.constant 0.000000e+00 : f32
    %22 = vector.broadcast %cst_18 : f32 to vector<64x256xf32>
    %23 = arith.maximumf %21, %22 : vector<64x256xf32>
    %24 = vector.extract_strided_slice %23 {offsets = [0, 0], sizes = [32, 256], strides = [1, 1]} : vector<64x256xf32> to vector<32x256xf32>
    %cst_19 = arith.constant dense<0.000000e+00> : vector<256xf32>
    %25 = vector.multi_reduction <add>, %24, %cst_19 [0] : vector<32x256xf32> to vector<256xf32>
    %26 = vector.shape_cast %25 : vector<256xf32> to vector<1x256xf32>
    %cst_20 = arith.constant 3.200000e+01 : f32
    %27 = vector.broadcast %cst_20 : f32 to vector<1x256xf32>
    %28 = arith.divf %26, %27 : vector<1x256xf32>
    %29 = vector.broadcast %28 : vector<1x256xf32> to vector<32x256xf32>
    %30 = arith.subf %24, %29 : vector<32x256xf32>
    %31 = arith.mulf %30, %30 : vector<32x256xf32>
    %cst_21 = arith.constant dense<0.000000e+00> : vector<256xf32>
    %32 = vector.multi_reduction <add>, %31, %cst_21 [0] : vector<32x256xf32> to vector<256xf32>
    %33 = vector.shape_cast %32 : vector<256xf32> to vector<1x256xf32>
    %cst_22 = arith.constant 3.200000e+01 : f32
    %34 = vector.broadcast %cst_22 : f32 to vector<1x256xf32>
    %35 = arith.divf %33, %34 : vector<1x256xf32>
    %36 = vector.broadcast %28 : vector<1x256xf32> to vector<32x256xf32>
    %37 = arith.subf %24, %36 : vector<32x256xf32>
    %cst_23 = arith.constant 9.99999974E-6 : f32
    %38 = vector.broadcast %cst_23 : f32 to vector<1x256xf32>
    %39 = arith.addf %35, %38 : vector<1x256xf32>
    %40 = math.rsqrt %39 : vector<1x256xf32>
    %41 = vector.broadcast %40 : vector<1x256xf32> to vector<32x256xf32>
    %42 = arith.mulf %37, %41 : vector<32x256xf32>
    %43 = vector.broadcast %2 : vector<32x1xf32> to vector<32x256xf32>
    %44 = arith.mulf %42, %43 : vector<32x256xf32>
    %45 = vector.broadcast %3 : vector<32x1xf32> to vector<32x256xf32>
    %46 = arith.addf %44, %45 : vector<32x256xf32>
    %47 = vector.extract_strided_slice %23 {offsets = [32, 0], sizes = [32, 256], strides = [1, 1]} : vector<64x256xf32> to vector<32x256xf32>
    %cst_24 = arith.constant dense<0.000000e+00> : vector<256xf32>
    %48 = vector.multi_reduction <add>, %47, %cst_24 [0] : vector<32x256xf32> to vector<256xf32>
    %49 = vector.shape_cast %48 : vector<256xf32> to vector<1x256xf32>
    %cst_25 = arith.constant 3.200000e+01 : f32
    %50 = vector.broadcast %cst_25 : f32 to vector<1x256xf32>
    %51 = arith.divf %49, %50 : vector<1x256xf32>
    %52 = vector.broadcast %51 : vector<1x256xf32> to vector<32x256xf32>
    %53 = arith.subf %47, %52 : vector<32x256xf32>
    %54 = arith.mulf %53, %53 : vector<32x256xf32>
    %cst_26 = arith.constant dense<0.000000e+00> : vector<256xf32>
    %55 = vector.multi_reduction <add>, %54, %cst_26 [0] : vector<32x256xf32> to vector<256xf32>
    %56 = vector.shape_cast %55 : vector<256xf32> to vector<1x256xf32>
    %cst_27 = arith.constant 3.200000e+01 : f32
    %57 = vector.broadcast %cst_27 : f32 to vector<1x256xf32>
    %58 = arith.divf %56, %57 : vector<1x256xf32>
    %59 = vector.broadcast %51 : vector<1x256xf32> to vector<32x256xf32>
    %60 = arith.subf %47, %59 : vector<32x256xf32>
    %cst_28 = arith.constant 9.99999974E-6 : f32
    %61 = vector.broadcast %cst_28 : f32 to vector<1x256xf32>
    %62 = arith.addf %58, %61 : vector<1x256xf32>
    %63 = math.rsqrt %62 : vector<1x256xf32>
    %64 = vector.broadcast %63 : vector<1x256xf32> to vector<32x256xf32>
    %65 = arith.mulf %60, %64 : vector<32x256xf32>
    %66 = vector.broadcast %2 : vector<32x1xf32> to vector<32x256xf32>
    %67 = arith.mulf %65, %66 : vector<32x256xf32>
    %68 = vector.broadcast %3 : vector<32x1xf32> to vector<32x256xf32>
    %69 = arith.addf %67, %68 : vector<32x256xf32>
    %cst_29 = arith.constant dense<0.000000e+00> : vector<96x1xf32>
    %70 = tpu.matmul %0, %13, %cst_29 {dimension_numbers = #tpu.dot_dimension_numbers<[1], [0], [0], [1], [0, 0, 1, 1], [], []>, precision = #tpu.contract_precision<fp32>} : vector<96x8xf32>, vector<8x1xf32>, vector<96x1xf32> -> vector<96x1xf32>
    %71 = arith.addf %70, %17 : vector<96x1xf32>
    %cst_30 = arith.constant 0.000000e+00 : f32
    %72 = vector.broadcast %cst_30 : f32 to vector<96x1xf32>
    %73 = arith.maximumf %71, %72 : vector<96x1xf32>
    %74 = vector.extract_strided_slice %73 {offsets = [0, 0], sizes = [32, 1], strides = [1, 1]} : vector<96x1xf32> to vector<32x1xf32>
    %cst_31 = arith.constant dense<0.000000e+00> : vector<1xf32>
    %75 = vector.multi_reduction <add>, %74, %cst_31 [0] : vector<32x1xf32> to vector<1xf32>
    %76 = vector.shape_cast %75 : vector<1xf32> to vector<1x1xf32>
    %cst_32 = arith.constant 3.200000e+01 : f32
    %77 = vector.broadcast %cst_32 : f32 to vector<1x1xf32>
    %78 = arith.divf %76, %77 : vector<1x1xf32>
    %79 = vector.broadcast %78 : vector<1x1xf32> to vector<32x1xf32>
    %80 = arith.subf %74, %79 : vector<32x1xf32>
    %81 = arith.mulf %80, %80 : vector<32x1xf32>
    %cst_33 = arith.constant dense<0.000000e+00> : vector<1xf32>
    %82 = vector.multi_reduction <add>, %81, %cst_33 [0] : vector<32x1xf32> to vector<1xf32>
    %83 = vector.shape_cast %82 : vector<1xf32> to vector<1x1xf32>
    %cst_34 = arith.constant 3.200000e+01 : f32
    %84 = vector.broadcast %cst_34 : f32 to vector<1x1xf32>
    %85 = arith.divf %83, %84 : vector<1x1xf32>
    %86 = vector.broadcast %78 : vector<1x1xf32> to vector<32x1xf32>
    %87 = arith.subf %74, %86 : vector<32x1xf32>
    %cst_35 = arith.constant 9.99999974E-6 : f32
    %88 = vector.broadcast %cst_35 : f32 to vector<1x1xf32>
    %89 = arith.addf %85, %88 : vector<1x1xf32>
    %90 = math.rsqrt %89 : vector<1x1xf32>
    %91 = vector.broadcast %90 : vector<1x1xf32> to vector<32x1xf32>
    %92 = arith.mulf %87, %91 : vector<32x1xf32>
    %93 = arith.mulf %92, %2 : vector<32x1xf32>
    %94 = arith.addf %93, %3 : vector<32x1xf32>
    %95 = vector.extract_strided_slice %73 {offsets = [32, 0], sizes = [32, 1], strides = [1, 1]} : vector<96x1xf32> to vector<32x1xf32>
    %cst_36 = arith.constant dense<0.000000e+00> : vector<1xf32>
    %96 = vector.multi_reduction <add>, %95, %cst_36 [0] : vector<32x1xf32> to vector<1xf32>
    %97 = vector.shape_cast %96 : vector<1xf32> to vector<1x1xf32>
    %cst_37 = arith.constant 3.200000e+01 : f32
    %98 = vector.broadcast %cst_37 : f32 to vector<1x1xf32>
    %99 = arith.divf %97, %98 : vector<1x1xf32>
    %100 = vector.broadcast %99 : vector<1x1xf32> to vector<32x1xf32>
    %101 = arith.subf %95, %100 : vector<32x1xf32>
    %102 = arith.mulf %101, %101 : vector<32x1xf32>
    %cst_38 = arith.constant dense<0.000000e+00> : vector<1xf32>
    %103 = vector.multi_reduction <add>, %102, %cst_38 [0] : vector<32x1xf32> to vector<1xf32>
    %104 = vector.shape_cast %103 : vector<1xf32> to vector<1x1xf32>
    %cst_39 = arith.constant 3.200000e+01 : f32
    %105 = vector.broadcast %cst_39 : f32 to vector<1x1xf32>
    %106 = arith.divf %104, %105 : vector<1x1xf32>
    %107 = vector.broadcast %99 : vector<1x1xf32> to vector<32x1xf32>
    %108 = arith.subf %95, %107 : vector<32x1xf32>
    %cst_40 = arith.constant 9.99999974E-6 : f32
    %109 = vector.broadcast %cst_40 : f32 to vector<1x1xf32>
    %110 = arith.addf %106, %109 : vector<1x1xf32>
    %111 = math.rsqrt %110 : vector<1x1xf32>
    %112 = vector.broadcast %111 : vector<1x1xf32> to vector<32x1xf32>
    %113 = arith.mulf %108, %112 : vector<32x1xf32>
    %114 = arith.mulf %113, %2 : vector<32x1xf32>
    %115 = arith.addf %114, %3 : vector<32x1xf32>
    %116 = vector.extract_strided_slice %73 {offsets = [64, 0], sizes = [32, 1], strides = [1, 1]} : vector<96x1xf32> to vector<32x1xf32>
    %cst_41 = arith.constant dense<0.000000e+00> : vector<1xf32>
    %117 = vector.multi_reduction <add>, %116, %cst_41 [0] : vector<32x1xf32> to vector<1xf32>
    %118 = vector.shape_cast %117 : vector<1xf32> to vector<1x1xf32>
    %cst_42 = arith.constant 3.200000e+01 : f32
    %119 = vector.broadcast %cst_42 : f32 to vector<1x1xf32>
    %120 = arith.divf %118, %119 : vector<1x1xf32>
    %121 = vector.broadcast %120 : vector<1x1xf32> to vector<32x1xf32>
    %122 = arith.subf %116, %121 : vector<32x1xf32>
    %123 = arith.mulf %122, %122 : vector<32x1xf32>
    %cst_43 = arith.constant dense<0.000000e+00> : vector<1xf32>
    %124 = vector.multi_reduction <add>, %123, %cst_43 [0] : vector<32x1xf32> to vector<1xf32>
    %125 = vector.shape_cast %124 : vector<1xf32> to vector<1x1xf32>
    %cst_44 = arith.constant 3.200000e+01 : f32
    %126 = vector.broadcast %cst_44 : f32 to vector<1x1xf32>
    %127 = arith.divf %125, %126 : vector<1x1xf32>
    %128 = vector.broadcast %120 : vector<1x1xf32> to vector<32x1xf32>
    %129 = arith.subf %116, %128 : vector<32x1xf32>
    %cst_45 = arith.constant 9.99999974E-6 : f32
    %130 = vector.broadcast %cst_45 : f32 to vector<1x1xf32>
    %131 = arith.addf %127, %130 : vector<1x1xf32>
    %132 = math.rsqrt %131 : vector<1x1xf32>
    %133 = vector.broadcast %132 : vector<1x1xf32> to vector<32x1xf32>
    %134 = arith.mulf %129, %133 : vector<32x1xf32>
    %135 = arith.mulf %134, %2 : vector<32x1xf32>
    %136 = arith.addf %135, %3 : vector<32x1xf32>
    %137 = arith.mulf %94, %115 : vector<32x1xf32>
    %cst_46 = arith.constant dense<0.000000e+00> : vector<1xf32>
    %138 = vector.multi_reduction <add>, %137, %cst_46 [0] : vector<32x1xf32> to vector<1xf32>
    %139 = vector.shape_cast %138 : vector<1xf32> to vector<1x1xf32>
    %cst_47 = arith.constant 0.176776692 : f32
    %140 = vector.broadcast %cst_47 : f32 to vector<1x1xf32>
    %141 = arith.mulf %139, %140 : vector<1x1xf32>
    %142 = vector.broadcast %94 : vector<32x1xf32> to vector<32x256xf32>
    %143 = arith.mulf %46, %142 : vector<32x256xf32>
    %cst_48 = arith.constant dense<0.000000e+00> : vector<256xf32>
    %144 = vector.multi_reduction <add>, %143, %cst_48 [0] : vector<32x256xf32> to vector<256xf32>
    %145 = vector.shape_cast %144 : vector<256xf32> to vector<1x256xf32>
    %cst_49 = arith.constant 0.176776692 : f32
    %146 = vector.broadcast %cst_49 : f32 to vector<1x256xf32>
    %147 = arith.mulf %145, %146 : vector<1x256xf32>
    %cst_50 = arith.constant dense<0xFF800000> : vector<1xf32>
    %148 = vector.multi_reduction <maximumf>, %147, %cst_50 [1] : vector<1x256xf32> to vector<1xf32>
    %149 = vector.shape_cast %148 : vector<1xf32> to vector<1x1xf32>
    %150 = arith.maximumf %149, %141 : vector<1x1xf32>
    %151 = arith.subf %141, %150 : vector<1x1xf32>
    %152 = math.exp %151 : vector<1x1xf32>
    %153 = vector.broadcast %150 : vector<1x1xf32> to vector<1x256xf32>
    %154 = arith.subf %147, %153 : vector<1x256xf32>
    %155 = math.exp %154 : vector<1x256xf32>
    %cst_51 = arith.constant dense<0.000000e+00> : vector<1xf32>
    %156 = vector.multi_reduction <add>, %155, %cst_51 [1] : vector<1x256xf32> to vector<1xf32>
    %157 = vector.shape_cast %156 : vector<1xf32> to vector<1x1xf32>
    %158 = arith.addf %152, %157 : vector<1x1xf32>
    %cst_52 = arith.constant 1.000000e+00 : f32
    %159 = vector.broadcast %cst_52 : f32 to vector<1x1xf32>
    %160 = arith.divf %159, %158 : vector<1x1xf32>
    %161 = vector.broadcast %160 : vector<1x1xf32> to vector<1x256xf32>
    %162 = arith.mulf %155, %161 : vector<1x256xf32>
    %163 = arith.mulf %152, %160 : vector<1x1xf32>
    %164 = vector.broadcast %163 : vector<1x1xf32> to vector<32x1xf32>
    %165 = arith.mulf %164, %136 : vector<32x1xf32>
    %166 = vector.broadcast %162 : vector<1x256xf32> to vector<32x256xf32>
    %167 = arith.mulf %69, %166 : vector<32x256xf32>
    %cst_53 = arith.constant dense<0.000000e+00> : vector<32xf32>
    %168 = vector.multi_reduction <add>, %167, %cst_53 [1] : vector<32x256xf32> to vector<32xf32>
    %169 = vector.shape_cast %168 : vector<32xf32> to vector<32x1xf32>
    %170 = arith.addf %165, %169 : vector<32x1xf32>
    %171 = vector.broadcast %170 : vector<32x1xf32> to vector<32x8xf32>
    %172 = arith.mulf %4, %171 : vector<32x8xf32>
    %cst_54 = arith.constant dense<0.000000e+00> : vector<8xf32>
    %173 = vector.multi_reduction <add>, %172, %cst_54 [0] : vector<32x8xf32> to vector<8xf32>
    %174 = vector.shape_cast %173 : vector<8xf32> to vector<1x8xf32>
    %175 = vector.broadcast %162 : vector<1x256xf32> to vector<8x256xf32>
    %176 = arith.mulf %7, %175 : vector<8x256xf32>
    %c0_55 = arith.constant 0 : index
    %c0_56 = arith.constant 0 : index
    %c0_57 = arith.constant 0 : index
    %177 = vector.load %arg8[%c0_55, %c0_56, %c0_57] : memref<2x8x256xf32, #tpu.memory_space<vmem>>, vector<1x8x256xf32>
    %178 = vector.shape_cast %177 : vector<1x8x256xf32> to vector<8x256xf32>
    %179 = vector.shape_cast %176 : vector<8x256xf32> to vector<1x8x256xf32>
    tpu.vector_store %arg8[%c0_55, %c0_56, %c0_57], %179 {strides = array<i32>} : memref<2x8x256xf32, #tpu.memory_space<vmem>>, vector<1x8x256xf32>,
    %c0_58 = arith.constant 0 : index
    %c0_59 = arith.constant 0 : index
    %c0_60 = arith.constant 0 : index
    %180 = vector.load %arg10[%c0_58, %c0_59, %c0_60] : memref<2x1x256xf32, #tpu.memory_space<vmem>>, vector<1x1x256xf32>
    %181 = vector.shape_cast %180 : vector<1x1x256xf32> to vector<1x256xf32>
    %182 = vector.shape_cast %162 : vector<1x256xf32> to vector<1x1x256xf32>
    tpu.vector_store %arg10[%c0_58, %c0_59, %c0_60], %182 {strides = array<i32>} : memref<2x1x256xf32, #tpu.memory_space<vmem>>, vector<1x1x256xf32>,
    %c0_61 = arith.constant 0 : index
    %c0_62 = arith.constant 0 : index
    %c0_63 = arith.constant 0 : index
    %183 = vector.load %arg9[%c0_61, %c0_62, %c0_63] : memref<2x1x8xf32, #tpu.memory_space<vmem>>, vector<1x1x8xf32>
    %184 = vector.shape_cast %183 : vector<1x1x8xf32> to vector<1x8xf32>
    %185 = vector.shape_cast %174 : vector<1x8xf32> to vector<1x1x8xf32>
    tpu.vector_store %arg9[%c0_61, %c0_62, %c0_63], %185 {strides = array<i32>} : memref<2x1x8xf32, #tpu.memory_space<vmem>>, vector<1x1x8xf32>,
    %c1 = arith.constant 1 : index
    %c0_64 = arith.constant 0 : index
    %c0_65 = arith.constant 0 : index
    %186 = vector.load %arg1[%c1, %c0_64, %c0_65] : memref<2x8x256xf32, #tpu.memory_space<vmem>>, vector<1x8x256xf32>
    %187 = vector.shape_cast %186 : vector<1x8x256xf32> to vector<8x256xf32>
    %c1_66 = arith.constant 1 : index
    %c0_67 = arith.constant 0 : index
    %c0_68 = arith.constant 0 : index
    %188 = vector.load %arg2[%c1_66, %c0_67, %c0_68] : memref<2x1x32xf32, #tpu.memory_space<vmem>>, vector<1x1x32xf32>
    %189 = vector.shape_cast %188 : vector<1x1x32xf32> to vector<1x32xf32>
    %cst_69 = arith.constant dense<0.000000e+00> : vector<8xf32>
    %190 = vector.multi_reduction <add>, %187, %cst_69 [1] : vector<8x256xf32> to vector<8xf32>
    %191 = vector.shape_cast %190 : vector<8xf32> to vector<8x1xf32>
    %cst_70 = arith.constant 2.560000e+02 : f32
    %192 = vector.broadcast %cst_70 : f32 to vector<8x1xf32>
    %193 = arith.divf %191, %192 : vector<8x1xf32>
    %194 = vector.broadcast %189 : vector<1x32xf32> to vector<96x32xf32>
    %195 = arith.mulf %1, %194 : vector<96x32xf32>
    %cst_71 = arith.constant dense<0.000000e+00> : vector<96xf32>
    %196 = vector.multi_reduction <add>, %195, %cst_71 [1] : vector<96x32xf32> to vector<96xf32>
    %197 = vector.shape_cast %196 : vector<96xf32> to vector<96x1xf32>
    %cst_72 = arith.constant dense<0.000000e+00> : vector<64x256xf32>
    %198 = tpu.matmul %5, %187, %cst_72 {dimension_numbers = #tpu.dot_dimension_numbers<[1], [0], [0], [1], [0, 0, 1, 1], [], []>, precision = #tpu.contract_precision<fp32>} : vector<64x8xf32>, vector<8x256xf32>, vector<64x256xf32> -> vector<64x256xf32>
    %199 = vector.extract_strided_slice %197 {offsets = [32, 0], sizes = [64, 1], strides = [1, 1]} : vector<96x1xf32> to vector<64x1xf32>
    %200 = vector.broadcast %199 : vector<64x1xf32> to vector<64x256xf32>
    %201 = arith.addf %198, %200 : vector<64x256xf32>
    %cst_73 = arith.constant 0.000000e+00 : f32
    %202 = vector.broadcast %cst_73 : f32 to vector<64x256xf32>
    %203 = arith.maximumf %201, %202 : vector<64x256xf32>
    %204 = vector.extract_strided_slice %203 {offsets = [0, 0], sizes = [32, 256], strides = [1, 1]} : vector<64x256xf32> to vector<32x256xf32>
    %cst_74 = arith.constant dense<0.000000e+00> : vector<256xf32>
    %205 = vector.multi_reduction <add>, %204, %cst_74 [0] : vector<32x256xf32> to vector<256xf32>
    %206 = vector.shape_cast %205 : vector<256xf32> to vector<1x256xf32>
    %cst_75 = arith.constant 3.200000e+01 : f32
    %207 = vector.broadcast %cst_75 : f32 to vector<1x256xf32>
    %208 = arith.divf %206, %207 : vector<1x256xf32>
    %209 = vector.broadcast %208 : vector<1x256xf32> to vector<32x256xf32>
    %210 = arith.subf %204, %209 : vector<32x256xf32>
    %211 = arith.mulf %210, %210 : vector<32x256xf32>
    %cst_76 = arith.constant dense<0.000000e+00> : vector<256xf32>
    %212 = vector.multi_reduction <add>, %211, %cst_76 [0] : vector<32x256xf32> to vector<256xf32>
    %213 = vector.shape_cast %212 : vector<256xf32> to vector<1x256xf32>
    %cst_77 = arith.constant 3.200000e+01 : f32
    %214 = vector.broadcast %cst_77 : f32 to vector<1x256xf32>
    %215 = arith.divf %213, %214 : vector<1x256xf32>
    %216 = vector.broadcast %208 : vector<1x256xf32> to vector<32x256xf32>
    %217 = arith.subf %204, %216 : vector<32x256xf32>
    %cst_78 = arith.constant 9.99999974E-6 : f32
    %218 = vector.broadcast %cst_78 : f32 to vector<1x256xf32>
    %219 = arith.addf %215, %218 : vector<1x256xf32>
    %220 = math.rsqrt %219 : vector<1x256xf32>
    %221 = vector.broadcast %220 : vector<1x256xf32> to vector<32x256xf32>
    %222 = arith.mulf %217, %221 : vector<32x256xf32>
    %223 = vector.broadcast %2 : vector<32x1xf32> to vector<32x256xf32>
    %224 = arith.mulf %222, %223 : vector<32x256xf32>
    %225 = vector.broadcast %3 : vector<32x1xf32> to vector<32x256xf32>
    %226 = arith.addf %224, %225 : vector<32x256xf32>
    %227 = vector.extract_strided_slice %203 {offsets = [32, 0], sizes = [32, 256], strides = [1, 1]} : vector<64x256xf32> to vector<32x256xf32>
    %cst_79 = arith.constant dense<0.000000e+00> : vector<256xf32>
    %228 = vector.multi_reduction <add>, %227, %cst_79 [0] : vector<32x256xf32> to vector<256xf32>
    %229 = vector.shape_cast %228 : vector<256xf32> to vector<1x256xf32>
    %cst_80 = arith.constant 3.200000e+01 : f32
    %230 = vector.broadcast %cst_80 : f32 to vector<1x256xf32>
    %231 = arith.divf %229, %230 : vector<1x256xf32>
    %232 = vector.broadcast %231 : vector<1x256xf32> to vector<32x256xf32>
    %233 = arith.subf %227, %232 : vector<32x256xf32>
    %234 = arith.mulf %233, %233 : vector<32x256xf32>
    %cst_81 = arith.constant dense<0.000000e+00> : vector<256xf32>
    %235 = vector.multi_reduction <add>, %234, %cst_81 [0] : vector<32x256xf32> to vector<256xf32>
    %236 = vector.shape_cast %235 : vector<256xf32> to vector<1x256xf32>
    %cst_82 = arith.constant 3.200000e+01 : f32
    %237 = vector.broadcast %cst_82 : f32 to vector<1x256xf32>
    %238 = arith.divf %236, %237 : vector<1x256xf32>
    %239 = vector.broadcast %231 : vector<1x256xf32> to vector<32x256xf32>
    %240 = arith.subf %227, %239 : vector<32x256xf32>
    %cst_83 = arith.constant 9.99999974E-6 : f32
    %241 = vector.broadcast %cst_83 : f32 to vector<1x256xf32>
    %242 = arith.addf %238, %241 : vector<1x256xf32>
    %243 = math.rsqrt %242 : vector<1x256xf32>
    %244 = vector.broadcast %243 : vector<1x256xf32> to vector<32x256xf32>
    %245 = arith.mulf %240, %244 : vector<32x256xf32>
    %246 = vector.broadcast %2 : vector<32x1xf32> to vector<32x256xf32>
    %247 = arith.mulf %245, %246 : vector<32x256xf32>
    %248 = vector.broadcast %3 : vector<32x1xf32> to vector<32x256xf32>
    %249 = arith.addf %247, %248 : vector<32x256xf32>
    %cst_84 = arith.constant dense<0.000000e+00> : vector<96x1xf32>
    %250 = tpu.matmul %0, %193, %cst_84 {dimension_numbers = #tpu.dot_dimension_numbers<[1], [0], [0], [1], [0, 0, 1, 1], [], []>, precision = #tpu.contract_precision<fp32>} : vector<96x8xf32>, vector<8x1xf32>, vector<96x1xf32> -> vector<96x1xf32>
    %251 = arith.addf %250, %197 : vector<96x1xf32>
    %cst_85 = arith.constant 0.000000e+00 : f32
    %252 = vector.broadcast %cst_85 : f32 to vector<96x1xf32>
    %253 = arith.maximumf %251, %252 : vector<96x1xf32>
    %254 = vector.extract_strided_slice %253 {offsets = [0, 0], sizes = [32, 1], strides = [1, 1]} : vector<96x1xf32> to vector<32x1xf32>
    %cst_86 = arith.constant dense<0.000000e+00> : vector<1xf32>
    %255 = vector.multi_reduction <add>, %254, %cst_86 [0] : vector<32x1xf32> to vector<1xf32>
    %256 = vector.shape_cast %255 : vector<1xf32> to vector<1x1xf32>
    %cst_87 = arith.constant 3.200000e+01 : f32
    %257 = vector.broadcast %cst_87 : f32 to vector<1x1xf32>
    %258 = arith.divf %256, %257 : vector<1x1xf32>
    %259 = vector.broadcast %258 : vector<1x1xf32> to vector<32x1xf32>
    %260 = arith.subf %254, %259 : vector<32x1xf32>
    %261 = arith.mulf %260, %260 : vector<32x1xf32>
    %cst_88 = arith.constant dense<0.000000e+00> : vector<1xf32>
    %262 = vector.multi_reduction <add>, %261, %cst_88 [0] : vector<32x1xf32> to vector<1xf32>
    %263 = vector.shape_cast %262 : vector<1xf32> to vector<1x1xf32>
    %cst_89 = arith.constant 3.200000e+01 : f32
    %264 = vector.broadcast %cst_89 : f32 to vector<1x1xf32>
    %265 = arith.divf %263, %264 : vector<1x1xf32>
    %266 = vector.broadcast %258 : vector<1x1xf32> to vector<32x1xf32>
    %267 = arith.subf %254, %266 : vector<32x1xf32>
    %cst_90 = arith.constant 9.99999974E-6 : f32
    %268 = vector.broadcast %cst_90 : f32 to vector<1x1xf32>
    %269 = arith.addf %265, %268 : vector<1x1xf32>
    %270 = math.rsqrt %269 : vector<1x1xf32>
    %271 = vector.broadcast %270 : vector<1x1xf32> to vector<32x1xf32>
    %272 = arith.mulf %267, %271 : vector<32x1xf32>
    %273 = arith.mulf %272, %2 : vector<32x1xf32>
    %274 = arith.addf %273, %3 : vector<32x1xf32>
    %275 = vector.extract_strided_slice %253 {offsets = [32, 0], sizes = [32, 1], strides = [1, 1]} : vector<96x1xf32> to vector<32x1xf32>
    %cst_91 = arith.constant dense<0.000000e+00> : vector<1xf32>
    %276 = vector.multi_reduction <add>, %275, %cst_91 [0] : vector<32x1xf32> to vector<1xf32>
    %277 = vector.shape_cast %276 : vector<1xf32> to vector<1x1xf32>
    %cst_92 = arith.constant 3.200000e+01 : f32
    %278 = vector.broadcast %cst_92 : f32 to vector<1x1xf32>
    %279 = arith.divf %277, %278 : vector<1x1xf32>
    %280 = vector.broadcast %279 : vector<1x1xf32> to vector<32x1xf32>
    %281 = arith.subf %275, %280 : vector<32x1xf32>
    %282 = arith.mulf %281, %281 : vector<32x1xf32>
    %cst_93 = arith.constant dense<0.000000e+00> : vector<1xf32>
    %283 = vector.multi_reduction <add>, %282, %cst_93 [0] : vector<32x1xf32> to vector<1xf32>
    %284 = vector.shape_cast %283 : vector<1xf32> to vector<1x1xf32>
    %cst_94 = arith.constant 3.200000e+01 : f32
    %285 = vector.broadcast %cst_94 : f32 to vector<1x1xf32>
    %286 = arith.divf %284, %285 : vector<1x1xf32>
    %287 = vector.broadcast %279 : vector<1x1xf32> to vector<32x1xf32>
    %288 = arith.subf %275, %287 : vector<32x1xf32>
    %cst_95 = arith.constant 9.99999974E-6 : f32
    %289 = vector.broadcast %cst_95 : f32 to vector<1x1xf32>
    %290 = arith.addf %286, %289 : vector<1x1xf32>
    %291 = math.rsqrt %290 : vector<1x1xf32>
    %292 = vector.broadcast %291 : vector<1x1xf32> to vector<32x1xf32>
    %293 = arith.mulf %288, %292 : vector<32x1xf32>
    %294 = arith.mulf %293, %2 : vector<32x1xf32>
    %295 = arith.addf %294, %3 : vector<32x1xf32>
    %296 = vector.extract_strided_slice %253 {offsets = [64, 0], sizes = [32, 1], strides = [1, 1]} : vector<96x1xf32> to vector<32x1xf32>
    %cst_96 = arith.constant dense<0.000000e+00> : vector<1xf32>
    %297 = vector.multi_reduction <add>, %296, %cst_96 [0] : vector<32x1xf32> to vector<1xf32>
    %298 = vector.shape_cast %297 : vector<1xf32> to vector<1x1xf32>
    %cst_97 = arith.constant 3.200000e+01 : f32
    %299 = vector.broadcast %cst_97 : f32 to vector<1x1xf32>
    %300 = arith.divf %298, %299 : vector<1x1xf32>
    %301 = vector.broadcast %300 : vector<1x1xf32> to vector<32x1xf32>
    %302 = arith.subf %296, %301 : vector<32x1xf32>
    %303 = arith.mulf %302, %302 : vector<32x1xf32>
    %cst_98 = arith.constant dense<0.000000e+00> : vector<1xf32>
    %304 = vector.multi_reduction <add>, %303, %cst_98 [0] : vector<32x1xf32> to vector<1xf32>
    %305 = vector.shape_cast %304 : vector<1xf32> to vector<1x1xf32>
    %cst_99 = arith.constant 3.200000e+01 : f32
    %306 = vector.broadcast %cst_99 : f32 to vector<1x1xf32>
    %307 = arith.divf %305, %306 : vector<1x1xf32>
    %308 = vector.broadcast %300 : vector<1x1xf32> to vector<32x1xf32>
    %309 = arith.subf %296, %308 : vector<32x1xf32>
    %cst_100 = arith.constant 9.99999974E-6 : f32
    %310 = vector.broadcast %cst_100 : f32 to vector<1x1xf32>
    %311 = arith.addf %307, %310 : vector<1x1xf32>
    %312 = math.rsqrt %311 : vector<1x1xf32>
    %313 = vector.broadcast %312 : vector<1x1xf32> to vector<32x1xf32>
    %314 = arith.mulf %309, %313 : vector<32x1xf32>
    %315 = arith.mulf %314, %2 : vector<32x1xf32>
    %316 = arith.addf %315, %3 : vector<32x1xf32>
    %317 = arith.mulf %274, %295 : vector<32x1xf32>
    %cst_101 = arith.constant dense<0.000000e+00> : vector<1xf32>
    %318 = vector.multi_reduction <add>, %317, %cst_101 [0] : vector<32x1xf32> to vector<1xf32>
    %319 = vector.shape_cast %318 : vector<1xf32> to vector<1x1xf32>
    %cst_102 = arith.constant 0.176776692 : f32
    %320 = vector.broadcast %cst_102 : f32 to vector<1x1xf32>
    %321 = arith.mulf %319, %320 : vector<1x1xf32>
    %322 = vector.broadcast %274 : vector<32x1xf32> to vector<32x256xf32>
    %323 = arith.mulf %226, %322 : vector<32x256xf32>
    %cst_103 = arith.constant dense<0.000000e+00> : vector<256xf32>
    %324 = vector.multi_reduction <add>, %323, %cst_103 [0] : vector<32x256xf32> to vector<256xf32>
    %325 = vector.shape_cast %324 : vector<256xf32> to vector<1x256xf32>
    %cst_104 = arith.constant 0.176776692 : f32
    %326 = vector.broadcast %cst_104 : f32 to vector<1x256xf32>
    %327 = arith.mulf %325, %326 : vector<1x256xf32>
    %cst_105 = arith.constant dense<0xFF800000> : vector<1xf32>
    %328 = vector.multi_reduction <maximumf>, %327, %cst_105 [1] : vector<1x256xf32> to vector<1xf32>
    %329 = vector.shape_cast %328 : vector<1xf32> to vector<1x1xf32>
    %330 = arith.maximumf %329, %321 : vector<1x1xf32>
    %331 = arith.subf %321, %330 : vector<1x1xf32>
    %332 = math.exp %331 : vector<1x1xf32>
    %333 = vector.broadcast %330 : vector<1x1xf32> to vector<1x256xf32>
    %334 = arith.subf %327, %333 : vector<1x256xf32>
    %335 = math.exp %334 : vector<1x256xf32>
    %cst_106 = arith.constant dense<0.000000e+00> : vector<1xf32>
    %336 = vector.multi_reduction <add>, %335, %cst_106 [1] : vector<1x256xf32> to vector<1xf32>
    %337 = vector.shape_cast %336 : vector<1xf32> to vector<1x1xf32>
    %338 = arith.addf %332, %337 : vector<1x1xf32>
    %cst_107 = arith.constant 1.000000e+00 : f32
    %339 = vector.broadcast %cst_107 : f32 to vector<1x1xf32>
    %340 = arith.divf %339, %338 : vector<1x1xf32>
    %341 = vector.broadcast %340 : vector<1x1xf32> to vector<1x256xf32>
    %342 = arith.mulf %335, %341 : vector<1x256xf32>
    %343 = arith.mulf %332, %340 : vector<1x1xf32>
    %344 = vector.broadcast %343 : vector<1x1xf32> to vector<32x1xf32>
    %345 = arith.mulf %344, %316 : vector<32x1xf32>
    %346 = vector.broadcast %342 : vector<1x256xf32> to vector<32x256xf32>
    %347 = arith.mulf %249, %346 : vector<32x256xf32>
    %cst_108 = arith.constant dense<0.000000e+00> : vector<32xf32>
    %348 = vector.multi_reduction <add>, %347, %cst_108 [1] : vector<32x256xf32> to vector<32xf32>
    %349 = vector.shape_cast %348 : vector<32xf32> to vector<32x1xf32>
    %350 = arith.addf %345, %349 : vector<32x1xf32>
    %351 = vector.broadcast %350 : vector<32x1xf32> to vector<32x8xf32>
    %352 = arith.mulf %4, %351 : vector<32x8xf32>
    %cst_109 = arith.constant dense<0.000000e+00> : vector<8xf32>
    %353 = vector.multi_reduction <add>, %352, %cst_109 [0] : vector<32x8xf32> to vector<8xf32>
    %354 = vector.shape_cast %353 : vector<8xf32> to vector<1x8xf32>
    %355 = vector.broadcast %342 : vector<1x256xf32> to vector<8x256xf32>
    %356 = arith.mulf %187, %355 : vector<8x256xf32>
    %c1_110 = arith.constant 1 : index
    %c0_111 = arith.constant 0 : index
    %c0_112 = arith.constant 0 : index
    %357 = vector.load %arg8[%c1_110, %c0_111, %c0_112] : memref<2x8x256xf32, #tpu.memory_space<vmem>>, vector<1x8x256xf32>
    %358 = vector.shape_cast %357 : vector<1x8x256xf32> to vector<8x256xf32>
    %359 = vector.shape_cast %356 : vector<8x256xf32> to vector<1x8x256xf32>
    tpu.vector_store %arg8[%c1_110, %c0_111, %c0_112], %359 {strides = array<i32>} : memref<2x8x256xf32, #tpu.memory_space<vmem>>, vector<1x8x256xf32>,
    %c1_113 = arith.constant 1 : index
    %c0_114 = arith.constant 0 : index
    %c0_115 = arith.constant 0 : index
    %360 = vector.load %arg10[%c1_113, %c0_114, %c0_115] : memref<2x1x256xf32, #tpu.memory_space<vmem>>, vector<1x1x256xf32>
    %361 = vector.shape_cast %360 : vector<1x1x256xf32> to vector<1x256xf32>
    %362 = vector.shape_cast %342 : vector<1x256xf32> to vector<1x1x256xf32>
    tpu.vector_store %arg10[%c1_113, %c0_114, %c0_115], %362 {strides = array<i32>} : memref<2x1x256xf32, #tpu.memory_space<vmem>>, vector<1x1x256xf32>,
    %c1_116 = arith.constant 1 : index
    %c0_117 = arith.constant 0 : index
    %c0_118 = arith.constant 0 : index
    %363 = vector.load %arg9[%c1_116, %c0_117, %c0_118] : memref<2x1x8xf32, #tpu.memory_space<vmem>>, vector<1x1x8xf32>
    %364 = vector.shape_cast %363 : vector<1x1x8xf32> to vector<1x8xf32>
    %365 = vector.shape_cast %354 : vector<1x8xf32> to vector<1x1x8xf32>
    tpu.vector_store %arg9[%c1_116, %c0_117, %c0_118], %365 {strides = array<i32>} : memref<2x1x8xf32, #tpu.memory_space<vmem>>, vector<1x1x8xf32>,
    return
  }
  func.func @transform_0(%arg0: i32) -> (i32, i32, i32) {
    %c0_i32 = arith.constant 0 : i32
    %c0_i32_0 = arith.constant 0 : i32
    %c0_i32_1 = arith.constant 0 : i32
    return %arg0, %c0_i32, %c0_i32_0 : i32, i32, i32
  }
  func.func @transform_1(%arg0: i32) -> (i32, i32, i32) {
    %c0_i32 = arith.constant 0 : i32
    %c0_i32_0 = arith.constant 0 : i32
    %c0_i32_1 = arith.constant 0 : i32
    return %arg0, %c0_i32, %c0_i32_0 : i32, i32, i32
  }
  func.func @transform_2(%arg0: i32) -> (i32, i32) {
    %c0_i32 = arith.constant 0 : i32
    %c0_i32_0 = arith.constant 0 : i32
    %c0_i32_1 = arith.constant 0 : i32
    return %c0_i32, %c0_i32_0 : i32, i32
  }
  func.func @transform_3(%arg0: i32) -> (i32, i32) {
    %c0_i32 = arith.constant 0 : i32
    %c0_i32_0 = arith.constant 0 : i32
    %c0_i32_1 = arith.constant 0 : i32
    return %c0_i32, %c0_i32_0 : i32, i32
  }
  func.func @transform_4(%arg0: i32) -> (i32, i32) {
    %c0_i32 = arith.constant 0 : i32
    %c0_i32_0 = arith.constant 0 : i32
    %c0_i32_1 = arith.constant 0 : i32
    return %c0_i32, %c0_i32_0 : i32, i32
  }
  func.func @transform_5(%arg0: i32) -> (i32, i32) {
    %c0_i32 = arith.constant 0 : i32
    %c0_i32_0 = arith.constant 0 : i32
    %c0_i32_1 = arith.constant 0 : i32
    return %c0_i32, %c0_i32_0 : i32, i32
  }
  func.func @transform_6(%arg0: i32) -> (i32, i32) {
    %c0_i32 = arith.constant 0 : i32
    %c0_i32_0 = arith.constant 0 : i32
    %c0_i32_1 = arith.constant 0 : i32
    return %c0_i32, %c0_i32_0 : i32, i32
  }
  func.func @transform_7(%arg0: i32) -> (i32, i32, i32) {
    %c0_i32 = arith.constant 0 : i32
    %c0_i32_0 = arith.constant 0 : i32
    %c0_i32_1 = arith.constant 0 : i32
    return %arg0, %c0_i32, %c0_i32_0 : i32, i32, i32
  }
  func.func @transform_8(%arg0: i32) -> (i32, i32, i32) {
    %c0_i32 = arith.constant 0 : i32
    %c0_i32_0 = arith.constant 0 : i32
    %c0_i32_1 = arith.constant 0 : i32
    return %arg0, %c0_i32, %c0_i32_0 : i32, i32, i32
  }
  func.func @transform_9(%arg0: i32) -> (i32, i32, i32) {
    %c0_i32 = arith.constant 0 : i32
    %c0_i32_0 = arith.constant 0 : i32
    %c0_i32_1 = arith.constant 0 : i32
    return %arg0, %c0_i32, %c0_i32_0 : i32, i32, i32
  }
}

</mosaic_0001>

<llo_original>
// kernel: tpu_custom_call.1
$region0: #{tpu_custom_call.1}
  #allocation0 [shape = 'u32[]', space=smem, size = 0x4, offset = 0x4, fixed_abs, tag = 'smem constant byte address 0x4 - core index']
  #allocation1 [shape = 'u32[72,128]{1,0:T(1,128)}', space=vmem, size = 0x9000, scoped, tag = 'internal scratch']
  %s0 = inlined_call_operand.vmem [shape: f32[2,8,256], index: 0, kind: input, shape index: {}]
  %s1 = inlined_call_operand.vmem [shape: f32[2,1,32], index: 1, kind: input, shape index: {}]
  %s2 = inlined_call_operand.vmem [shape: f32[96,8], index: 2, kind: input, shape index: {}]
  %s3 = inlined_call_operand.vmem [shape: f32[96,32], index: 3, kind: input, shape index: {}]
  %s4 = inlined_call_operand.vmem [shape: f32[32,1], index: 4, kind: input, shape index: {}]
  %s5 = inlined_call_operand.vmem [shape: f32[32,1], index: 5, kind: input, shape index: {}]
  %s6 = inlined_call_operand.vmem [shape: f32[32,8], index: 6, kind: input, shape index: {}]
  %s7 = inlined_call_operand.hbm [shape: f32[2,8,256], index: 7, kind: output, shape index: {0}]
  %s8 = inlined_call_operand.hbm [shape: f32[2,1,8], index: 8, kind: output, shape index: {1}]
  %s9 = inlined_call_operand.hbm [shape: f32[2,1,256], index: 9, kind: output, shape index: {2}]
  %10 = xla_tuple %s7, %s8, %s9
  %s11 = sld [smem:[#allocation0]]
  $region54: #{tpu_custom_call.1} parent=0
    _
  %s13 = ssub.s32 1, %s11
  %s14 = scalar_select 0, %s13, %s11
  $region1: #{tpu_custom_call.1} parent=0
    #allocation2 [shape = 'u8[16384]{0}', space=vmem, size = 0x4000, scoped, tag = 'output window, operand 0, single buffered']
    #allocation3 [shape = 's32[1]{0}', space=sflag, size = 0x4, scoped, tag = 'scoped memory for tpu_custom_call.1']
    #allocation4 [shape = 'u8[1024]{0}', space=vmem, size = 0x400, scoped, tag = 'output window, operand 1, single buffered']
    #allocation5 [shape = 's32[1]{0}', space=sflag, size = 0x4, scoped, tag = 'scoped memory for tpu_custom_call.1']
    #allocation6 [shape = 'u8[2048]{0}', space=vmem, size = 0x800, scoped, tag = 'output window, operand 2, single buffered']
    %15 = vsyncpa [#allocation3], 0
    %16 = vsyncpa [#allocation5], 0
    // Predicated region
    $region2: #{tpu_custom_call.1} parent=1 // pred_check
      _
    $region3: #{tpu_custom_call.1} parent=1 // pred_check_branch
      %18 = sbr.rel (0) target = $region5
    $region4: #{tpu_custom_call.1} parent=1 // pred_region
      _
    $region5: #{tpu_custom_call.1} parent=1 // pred_fallthru
      _
    // Predicated region
    $region6: #{tpu_custom_call.1} parent=1 // pred_check
      _
    $region7: #{tpu_custom_call.1} parent=1 // pred_check_branch
      %20 = sbr.rel (0) target = $region9
    $region8: #{tpu_custom_call.1} parent=1 // pred_region
      _
    $region9: #{tpu_custom_call.1} parent=1 // pred_fallthru
      _
    // Predicated region
    $region10: #{tpu_custom_call.1} parent=1 // pred_check
      _
    $region11: #{tpu_custom_call.1} parent=1 // pred_check_branch
      %22 = sbr.rel (0) target = $region13
    $region12: #{tpu_custom_call.1} parent=1 // pred_region
      _
    $region13: #{tpu_custom_call.1} parent=1 // pred_fallthru
      _
    // Predicated region
    $region14: #{tpu_custom_call.1} parent=1 // pred_check
      _
    $region15: #{tpu_custom_call.1} parent=1 // pred_check_branch
      %24 = sbr.rel (0) target = $region17
    $region16: #{tpu_custom_call.1} parent=1 // pred_region
      _
    $region17: #{tpu_custom_call.1} parent=1 // pred_fallthru
      _
    // Predicated region
    $region18: #{tpu_custom_call.1} parent=1 // pred_check
      _
    $region19: #{tpu_custom_call.1} parent=1 // pred_check_branch
      %26 = sbr.rel (0) target = $region21
    $region20: #{tpu_custom_call.1} parent=1 // pred_region
      _
    $region21: #{tpu_custom_call.1} parent=1 // pred_fallthru
      _
    // Predicated region
    $region22: #{tpu_custom_call.1} parent=1 // pred_check
      _
    $region23: #{tpu_custom_call.1} parent=1 // pred_check_branch
      %28 = sbr.rel (0) target = $region25
    $region24: #{tpu_custom_call.1} parent=1 // pred_region
      _
    $region25: #{tpu_custom_call.1} parent=1 // pred_fallthru
      _
    // Predicated region
    $region26: #{tpu_custom_call.1} parent=1 // pred_check
      _
    $region27: #{tpu_custom_call.1} parent=1 // pred_check_branch
      %30 = sbr.rel (0) target = $region29
    $region28: #{tpu_custom_call.1} parent=1 // pred_region
      _
    $region29: #{tpu_custom_call.1} parent=1 // pred_fallthru
      _
    %v31 = vld [vmem:[%s2] sm:$0xff]
    %v32 = vld [vmem:[%s2 + $0x8] sm:$0xff]
    %v33 = vld [vmem:[%s2 + $0x10] sm:$0xff]
    %v34 = vld [vmem:[%s2 + $0x18] sm:$0xff]
    %v35 = vld [vmem:[%s2 + $0x20] sm:$0xff]
    %v36 = vld [vmem:[%s2 + $0x28] sm:$0xff]
    %v37 = vld [vmem:[%s2 + $0x30] sm:$0xff]
    %v38 = vld [vmem:[%s2 + $0x38] sm:$0xff]
    %v39 = vld [vmem:[%s2 + $0x40] sm:$0xff]
    %v40 = vld [vmem:[%s2 + $0x48] sm:$0xff]
    %v41 = vld [vmem:[%s2 + $0x50] sm:$0xff]
    %v42 = vld [vmem:[%s2 + $0x58] sm:$0xff]
    %v43 = vld [vmem:[%s3] sm:$0xff]
    %v44 = vld [vmem:[%s3 + $0x8] sm:$0xff]
    %v45 = vld [vmem:[%s3 + $0x10] sm:$0xff]
    %v46 = vld [vmem:[%s3 + $0x18] sm:$0xff]
    %v47 = vld [vmem:[%s3 + $0x20] sm:$0xff]
    %v48 = vld [vmem:[%s3 + $0x28] sm:$0xff]
    %v49 = vld [vmem:[%s3 + $0x30] sm:$0xff]
    %v50 = vld [vmem:[%s3 + $0x38] sm:$0xff]
    %v51 = vld [vmem:[%s3 + $0x40] sm:$0xff]
    %v52 = vld [vmem:[%s3 + $0x48] sm:$0xff]
    %v53 = vld [vmem:[%s3 + $0x50] sm:$0xff]
    %v54 = vld [vmem:[%s3 + $0x58] sm:$0xff]
    %v55 = vld [vmem:[%s4] sm:$0xff]
    %v56 = vld [vmem:[%s4 + $0x8] sm:$0xff]
    %v57 = vld [vmem:[%s4 + $0x10] sm:$0xff]
    %v58 = vld [vmem:[%s4 + $0x18] sm:$0xff]
    %v59 = vld [vmem:[%s5] sm:$0xff]
    %v60 = vld [vmem:[%s5 + $0x8] sm:$0xff]
    %v61 = vld [vmem:[%s5 + $0x10] sm:$0xff]
    %v62 = vld [vmem:[%s5 + $0x18] sm:$0xff]
    %v63 = vld [vmem:[%s6] sm:$0xff]
    %v64 = vld [vmem:[%s6 + $0x8] sm:$0xff]
    %v65 = vld [vmem:[%s6 + $0x10] sm:$0xff]
    %v66 = vld [vmem:[%s6 + $0x18] sm:$0xff]
    %v67 = vld [vmem:[%s0] sm:$0xff]
    %v68 = vld [vmem:[%s0 + $0x8] sm:$0xff]
    %v69 = vld [vmem:[%s1] sm:$0x1]
    %v70 = vadd.f32 %v67, %v68
    %71 = vadd.xlane.f32.xlu0 %v70
    %v72 = vpop.xlane.xlu0 %71
    %v73 = vrcp.pop 256.0
    %v74 = vmul.f32 256.0, %v73
    %v75 = vsub.f32 1.0, %v74
    %v76 = vmul.f32 %v73, %v75
    %v77 = vadd.f32 %v73, %v76
    %vm78 = vweird.f32 %v73
    %v79 = vsel %vm78, %v73, %v77
    %v80 = vmul.f32 %v72, %v79
    %v82 = vperm.slane %v69, 0
    %v84 = vmul.f32 %v43, %v82
    %v85 = vmul.f32 %v44, %v82
    %v86 = vmul.f32 %v45, %v82
    %v87 = vmul.f32 %v46, %v82
    %v88 = vmul.f32 %v47, %v82
    %v89 = vmul.f32 %v48, %v82
    %v90 = vmul.f32 %v49, %v82
    %v91 = vmul.f32 %v50, %v82
    %v92 = vmul.f32 %v51, %v82
    %v93 = vmul.f32 %v52, %v82
    %v94 = vmul.f32 %v53, %v82
    %v95 = vmul.f32 %v54, %v82
    %vm96 = vcmask 261120
    %v97 = vsel %vm96, %v84, 0.0
    %98 = vadd.xlane.f32.xlu0 %v97
    %v99 = vpop.xlane.xlu0 %98
    %v100 = vsel %vm96, %v85, 0.0
    %101 = vadd.xlane.f32.xlu0 %v100
    %v102 = vpop.xlane.xlu0 %101
    %v103 = vsel %vm96, %v86, 0.0
    %104 = vadd.xlane.f32.xlu0 %v103
    %v105 = vpop.xlane.xlu0 %104
    %v106 = vsel %vm96, %v87, 0.0
    %107 = vadd.xlane.f32.xlu0 %v106
    %v108 = vpop.xlane.xlu0 %107
    %v109 = vsel %vm96, %v88, 0.0
    %110 = vadd.xlane.f32.xlu0 %v109
    %v111 = vpop.xlane.xlu0 %110
    %v112 = vsel %vm96, %v89, 0.0
    %113 = vadd.xlane.f32.xlu0 %v112
    %v114 = vpop.xlane.xlu0 %113
    %v115 = vsel %vm96, %v90, 0.0
    %116 = vadd.xlane.f32.xlu0 %v115
    %v117 = vpop.xlane.xlu0 %116
    %v118 = vsel %vm96, %v91, 0.0
    %119 = vadd.xlane.f32.xlu0 %v118
    %v120 = vpop.xlane.xlu0 %119
    %v121 = vsel %vm96, %v92, 0.0
    %122 = vadd.xlane.f32.xlu0 %v121
    %v123 = vpop.xlane.xlu0 %122
    %v124 = vsel %vm96, %v93, 0.0
    %125 = vadd.xlane.f32.xlu0 %v124
    %v126 = vpop.xlane.xlu0 %125
    %v127 = vsel %vm96, %v94, 0.0
    %128 = vadd.xlane.f32.xlu0 %v127
    %v129 = vpop.xlane.xlu0 %128
    %v130 = vsel %vm96, %v95, 0.0
    %131 = vadd.xlane.f32.xlu0 %v130
    %v132 = vpop.xlane.xlu0 %131
    %vm133 = vcmask 64512
    %v135 = vsel %vm133, %v35, 0
    %v138 = vsel %vm133, %v36, 0
    %v141 = vsel %vm133, %v37, 0
    %v144 = vsel %vm133, %v38, 0
    %v147 = vsel %vm133, %v39, 0
    %v150 = vsel %vm133, %v40, 0
    %v153 = vsel %vm133, %v41, 0
    %v156 = vsel %vm133, %v42, 0
    %158 = vmatpush.msra.mxu0 0.0
    %159 = vmatpush.msra.mxu0 0.0
    %160 = vmatpush.msra.mxu0 0.0
    %161 = vmatpush.msra.mxu0 0.0
    %162 = vmatpush.msra.mxu0 0.0
    %163 = vmatpush.msra.mxu0 0.0
    %164 = vmatpush.msra.mxu0 0.0
    %165 = vmatpush.msra.mxu0 0.0
    %166 = vmatpush.msra.mxu0 0.0
    %167 = vmatpush.msra.mxu0 0.0
    %168 = vmatpush.msra.mxu0 0.0
    %169 = vmatpush.msra.mxu0 0.0
    %170 = vmatpush.msra.mxu0 0.0
    %171 = vmatpush.msra.mxu0 0.0
    %172 = vmatpush.msra.mxu0 0.0
    %v173 = vand.u32 %v67, 4294901760
    %174 = vmatpush.msra.mxu0 %v173
    %v175 = vand.u32 %v135, 4294901760
    %v176 = vsub.f32 %v135, %v175
    %v177 = vand.u32 %v176, 4294901760
    %v178 = vsub.f32 %v176, %v177
    %v179 = vand.u32 %v178, 4294901760
    %180 = vmatmul.f32.gmra.mxu0 %v179
    %v181 = vpop.f32.mrf.mxu0
    %v182 = vadd.f32 %v111, %v181
    %v183 = vand.u32 %v138, 4294901760
    %v184 = vsub.f32 %v138, %v183
    %v185 = vand.u32 %v184, 4294901760
    %v186 = vsub.f32 %v184, %v185
    %v187 = vand.u32 %v186, 4294901760
    %188 = vmatmul.f32.gmra.mxu0 %v187
    %v189 = vpop.f32.mrf.mxu0
    %v190 = vadd.f32 %v114, %v189
    %v191 = vand.u32 %v141, 4294901760
    %v192 = vsub.f32 %v141, %v191
    %v193 = vand.u32 %v192, 4294901760
    %v194 = vsub.f32 %v192, %v193
    %v195 = vand.u32 %v194, 4294901760
    %196 = vmatmul.f32.gmra.mxu0 %v195
    %v197 = vpop.f32.mrf.mxu0
    %v198 = vadd.f32 %v117, %v197
    %v199 = vand.u32 %v144, 4294901760
    %v200 = vsub.f32 %v144, %v199
    %v201 = vand.u32 %v200, 4294901760
    %v202 = vsub.f32 %v200, %v201
    %v203 = vand.u32 %v202, 4294901760
    %204 = vmatmul.f32.gmra.mxu0 %v203
    %v205 = vpop.f32.mrf.mxu0
    %v206 = vadd.f32 %v120, %v205
    %v207 = vand.u32 %v147, 4294901760
    %v208 = vsub.f32 %v147, %v207
    %v209 = vand.u32 %v208, 4294901760
    %v210 = vsub.f32 %v208, %v209
    %v211 = vand.u32 %v210, 4294901760
    %212 = vmatmul.f32.gmra.mxu0 %v211
    %v213 = vpop.f32.mrf.mxu0
    %v214 = vadd.f32 %v123, %v213
    %v215 = vand.u32 %v150, 4294901760
    %v216 = vsub.f32 %v150, %v215
    %v217 = vand.u32 %v216, 4294901760
    %v218 = vsub.f32 %v216, %v217
    %v219 = vand.u32 %v218, 4294901760
    %220 = vmatmul.f32.gmra.mxu0 %v219
    %v221 = vpop.f32.mrf.mxu0
    %v222 = vadd.f32 %v126, %v221
    %v223 = vand.u32 %v153, 4294901760
    %v224 = vsub.f32 %v153, %v223
    %v225 = vand.u32 %v224, 4294901760
    %v226 = vsub.f32 %v224, %v225
    %v227 = vand.u32 %v226, 4294901760
    %228 = vmatmul.f32.gmra.mxu0 %v227
    %v229 = vpop.f32.mrf.mxu0
    %v230 = vadd.f32 %v129, %v229
    %v231 = vand.u32 %v156, 4294901760
    %v232 = vsub.f32 %v156, %v231
    %v233 = vand.u32 %v232, 4294901760
    %v234 = vsub.f32 %v232, %v233
    %v235 = vand.u32 %v234, 4294901760
    %236 = vmatmul.f32.gmra.mxu0 %v235
    %v237 = vpop.f32.mrf.mxu0
    %v238 = vadd.f32 %v132, %v237
    %239 = vdwg.mxu0
    %240 = vmatpush.msra.mxu0 0.0
    %241 = vmatpush.msra.mxu0 0.0
    %242 = vmatpush.msra.mxu0 0.0
    %243 = vmatpush.msra.mxu0 0.0
    %244 = vmatpush.msra.mxu0 0.0
    %245 = vmatpush.msra.mxu0 0.0
    %246 = vmatpush.msra.mxu0 0.0
    %247 = vmatpush.msra.mxu0 0.0
    %248 = vmatpush.msra.mxu0 0.0
    %249 = vmatpush.msra.mxu0 0.0
    %250 = vmatpush.msra.mxu0 0.0
    %251 = vmatpush.msra.mxu0 0.0
    %252 = vmatpush.msra.mxu0 0.0
    %253 = vmatpush.msra.mxu0 0.0
    %254 = vmatpush.msra.mxu0 0.0
    %v255 = vand.u32 %v67, 4294901760
    %v256 = vsub.f32 %v67, %v255
    %v257 = vand.u32 %v256, 4294901760
    %v258 = vsub.f32 %v256, %v257
    %v259 = vand.u32 %v258, 4294901760
    %260 = vmatpush.msra.mxu0 %v259
    %v261 = vand.u32 %v135, 4294901760
    %262 = vmatmul.f32.gmra.mxu0 %v261
    %v263 = vpop.f32.mrf.mxu0
    %v264 = vadd.f32 %v182, %v263
    %v265 = vand.u32 %v138, 4294901760
    %266 = vmatmul.f32.gmra.mxu0 %v265
    %v267 = vpop.f32.mrf.mxu0
    %v268 = vadd.f32 %v190, %v267
    %v269 = vand.u32 %v141, 4294901760
    %270 = vmatmul.f32.gmra.mxu0 %v269
    %v271 = vpop.f32.mrf.mxu0
    %v272 = vadd.f32 %v198, %v271
    %v273 = vand.u32 %v144, 4294901760
    %274 = vmatmul.f32.gmra.mxu0 %v273
    %v275 = vpop.f32.mrf.mxu0
    %v276 = vadd.f32 %v206, %v275
    %v277 = vand.u32 %v147, 4294901760
    %278 = vmatmul.f32.gmra.mxu0 %v277
    %v279 = vpop.f32.mrf.mxu0
    %v280 = vadd.f32 %v214, %v279
    %v281 = vand.u32 %v150, 4294901760
    %282 = vmatmul.f32.gmra.mxu0 %v281
    %v283 = vpop.f32.mrf.mxu0
    %v284 = vadd.f32 %v222, %v283
    %v285 = vand.u32 %v153, 4294901760
    %286 = vmatmul.f32.gmra.mxu0 %v285
    %v287 = vpop.f32.mrf.mxu0
    %v288 = vadd.f32 %v230, %v287
    %v289 = vand.u32 %v156, 4294901760
    %290 = vmatmul.f32.gmra.mxu0 %v289
    %v291 = vpop.f32.mrf.mxu0
    %v292 = vadd.f32 %v238, %v291
    %293 = vdwg.mxu0
    %294 = vmatpush.msra.mxu0 0.0
    %295 = vmatpush.msra.mxu0 0.0
    %296 = vmatpush.msra.mxu0 0.0
    %297 = vmatpush.msra.mxu0 0.0
    %298 = vmatpush.msra.mxu0 0.0
    %299 = vmatpush.msra.mxu0 0.0
    %300 = vmatpush.msra.mxu0 0.0
    %301 = vmatpush.msra.mxu0 0.0
    %302 = vmatpush.msra.mxu0 0.0
    %303 = vmatpush.msra.mxu0 0.0
    %304 = vmatpush.msra.mxu0 0.0
    %305 = vmatpush.msra.mxu0 0.0
    %306 = vmatpush.msra.mxu0 0.0
    %307 = vmatpush.msra.mxu0 0.0
    %308 = vmatpush.msra.mxu0 0.0
    %v309 = vand.u32 %v67, 4294901760
    %v310 = vsub.f32 %v67, %v309
    %311 = vmatpush.msra.mxu0 %v310
    %v312 = vand.u32 %v135, 4294901760
    %v313 = vsub.f32 %v135, %v312
    %314 = vmatmul.f32.gmra.mxu0 %v313
    %v315 = vpop.f32.mrf.mxu0
    %v316 = vadd.f32 %v264, %v315
    %v317 = vand.u32 %v138, 4294901760
    %v318 = vsub.f32 %v138, %v317
    %319 = vmatmul.f32.gmra.mxu0 %v318
    %v320 = vpop.f32.mrf.mxu0
    %v321 = vadd.f32 %v268, %v320
    %v322 = vand.u32 %v141, 4294901760
    %v323 = vsub.f32 %v141, %v322
    %324 = vmatmul.f32.gmra.mxu0 %v323
    %v325 = vpop.f32.mrf.mxu0
    %v326 = vadd.f32 %v272, %v325
    %v327 = vand.u32 %v144, 4294901760
    %v328 = vsub.f32 %v144, %v327
    %329 = vmatmul.f32.gmra.mxu0 %v328
    %v330 = vpop.f32.mrf.mxu0
    %v331 = vadd.f32 %v276, %v330
    %v332 = vand.u32 %v147, 4294901760
    %v333 = vsub.f32 %v147, %v332
    %334 = vmatmul.f32.gmra.mxu0 %v333
    %v335 = vpop.f32.mrf.mxu0
    %v336 = vadd.f32 %v280, %v335
    %v337 = vand.u32 %v150, 4294901760
    %v338 = vsub.f32 %v150, %v337
    %339 = vmatmul.f32.gmra.mxu0 %v338
    %v340 = vpop.f32.mrf.mxu0
    %v341 = vadd.f32 %v284, %v340
    %v342 = vand.u32 %v153, 4294901760
    %v343 = vsub.f32 %v153, %v342
    %344 = vmatmul.f32.gmra.mxu0 %v343
    %v345 = vpop.f32.mrf.mxu0
    %v346 = vadd.f32 %v288, %v345
    %v347 = vand.u32 %v156, 4294901760
    %v348 = vsub.f32 %v156, %v347
    %349 = vmatmul.f32.gmra.mxu0 %v348
    %v350 = vpop.f32.mrf.mxu0
    %v351 = vadd.f32 %v292, %v350
    %352 = vdwg.mxu0
    %353 = vmatpush.msra.mxu0 0.0
    %354 = vmatpush.msra.mxu0 0.0
    %355 = vmatpush.msra.mxu0 0.0
    %356 = vmatpush.msra.mxu0 0.0
    %357 = vmatpush.msra.mxu0 0.0
    %358 = vmatpush.msra.mxu0 0.0
    %359 = vmatpush.msra.mxu0 0.0
    %360 = vmatpush.msra.mxu0 0.0
    %361 = vmatpush.msra.mxu0 0.0
    %362 = vmatpush.msra.mxu0 0.0
    %363 = vmatpush.msra.mxu0 0.0
    %364 = vmatpush.msra.mxu0 0.0
    %365 = vmatpush.msra.mxu0 0.0
    %366 = vmatpush.msra.mxu0 0.0
    %367 = vmatpush.msra.mxu0 0.0
    %v368 = vand.u32 %v67, 4294901760
    %369 = vmatpush.msra.mxu0 %v368
    %v370 = vand.u32 %v135, 4294901760
    %v371 = vsub.f32 %v135, %v370
    %v372 = vand.u32 %v371, 4294901760
    %373 = vmatmul.f32.gmra.mxu0 %v372
    %v374 = vpop.f32.mrf.mxu0
    %v375 = vadd.f32 %v316, %v374
    %v376 = vand.u32 %v138, 4294901760
    %v377 = vsub.f32 %v138, %v376
    %v378 = vand.u32 %v377, 4294901760
    %379 = vmatmul.f32.gmra.mxu0 %v378
    %v380 = vpop.f32.mrf.mxu0
    %v381 = vadd.f32 %v321, %v380
    %v382 = vand.u32 %v141, 4294901760
    %v383 = vsub.f32 %v141, %v382
    %v384 = vand.u32 %v383, 4294901760
    %385 = vmatmul.f32.gmra.mxu0 %v384
    %v386 = vpop.f32.mrf.mxu0
    %v387 = vadd.f32 %v326, %v386
    %v388 = vand.u32 %v144, 4294901760
    %v389 = vsub.f32 %v144, %v388
    %v390 = vand.u32 %v389, 4294901760
    %391 = vmatmul.f32.gmra.mxu0 %v390
    %v392 = vpop.f32.mrf.mxu0
    %v393 = vadd.f32 %v331, %v392
    %v394 = vand.u32 %v147, 4294901760
    %v395 = vsub.f32 %v147, %v394
    %v396 = vand.u32 %v395, 4294901760
    %397 = vmatmul.f32.gmra.mxu0 %v396
    %v398 = vpop.f32.mrf.mxu0
    %v399 = vadd.f32 %v336, %v398
    %v400 = vand.u32 %v150, 4294901760
    %v401 = vsub.f32 %v150, %v400
    %v402 = vand.u32 %v401, 4294901760
    %403 = vmatmul.f32.gmra.mxu0 %v402
    %v404 = vpop.f32.mrf.mxu0
    %v405 = vadd.f32 %v341, %v404
    %v406 = vand.u32 %v153, 4294901760
    %v407 = vsub.f32 %v153, %v406
    %v408 = vand.u32 %v407, 4294901760
    %409 = vmatmul.f32.gmra.mxu0 %v408
    %v410 = vpop.f32.mrf.mxu0
    %v411 = vadd.f32 %v346, %v410
    %v412 = vand.u32 %v156, 4294901760
    %v413 = vsub.f32 %v156, %v412
    %v414 = vand.u32 %v413, 4294901760
    %415 = vmatmul.f32.gmra.mxu0 %v414
    %v416 = vpop.f32.mrf.mxu0
    %v417 = vadd.f32 %v351, %v416
    %418 = vdwg.mxu0
    %419 = vmatpush.msra.mxu0 0.0
    %420 = vmatpush.msra.mxu0 0.0
    %421 = vmatpush.msra.mxu0 0.0
    %422 = vmatpush.msra.mxu0 0.0
    %423 = vmatpush.msra.mxu0 0.0
    %424 = vmatpush.msra.mxu0 0.0
    %425 = vmatpush.msra.mxu0 0.0
    %426 = vmatpush.msra.mxu0 0.0
    %427 = vmatpush.msra.mxu0 0.0
    %428 = vmatpush.msra.mxu0 0.0
    %429 = vmatpush.msra.mxu0 0.0
    %430 = vmatpush.msra.mxu0 0.0
    %431 = vmatpush.msra.mxu0 0.0
    %432 = vmatpush.msra.mxu0 0.0
    %433 = vmatpush.msra.mxu0 0.0
    %v434 = vand.u32 %v67, 4294901760
    %v435 = vsub.f32 %v67, %v434
    %v436 = vand.u32 %v435, 4294901760
    %437 = vmatpush.msra.mxu0 %v436
    %v438 = vand.u32 %v135, 4294901760
    %439 = vmatmul.f32.gmra.mxu0 %v438
    %v440 = vpop.f32.mrf.mxu0
    %v441 = vadd.f32 %v375, %v440
    %v442 = vand.u32 %v138, 4294901760
    %443 = vmatmul.f32.gmra.mxu0 %v442
    %v444 = vpop.f32.mrf.mxu0
    %v445 = vadd.f32 %v381, %v444
    %v446 = vand.u32 %v141, 4294901760
    %447 = vmatmul.f32.gmra.mxu0 %v446
    %v448 = vpop.f32.mrf.mxu0
    %v449 = vadd.f32 %v387, %v448
    %v450 = vand.u32 %v144, 4294901760
    %451 = vmatmul.f32.gmra.mxu0 %v450
    %v452 = vpop.f32.mrf.mxu0
    %v453 = vadd.f32 %v393, %v452
    %v454 = vand.u32 %v147, 4294901760
    %455 = vmatmul.f32.gmra.mxu0 %v454
    %v456 = vpop.f32.mrf.mxu0
    %v457 = vadd.f32 %v399, %v456
    %v458 = vand.u32 %v150, 4294901760
    %459 = vmatmul.f32.gmra.mxu0 %v458
    %v460 = vpop.f32.mrf.mxu0
    %v461 = vadd.f32 %v405, %v460
    %v462 = vand.u32 %v153, 4294901760
    %463 = vmatmul.f32.gmra.mxu0 %v462
    %v464 = vpop.f32.mrf.mxu0
    %v465 = vadd.f32 %v411, %v464
    %v466 = vand.u32 %v156, 4294901760
    %467 = vmatmul.f32.gmra.mxu0 %v466
    %v468 = vpop.f32.mrf.mxu0
    %v469 = vadd.f32 %v417, %v468
    %470 = vdwg.mxu0
    %471 = vmatpush.msra.mxu0 0.0
    %472 = vmatpush.msra.mxu0 0.0
    %473 = vmatpush.msra.mxu0 0.0
    %474 = vmatpush.msra.mxu0 0.0
    %475 = vmatpush.msra.mxu0 0.0
    %476 = vmatpush.msra.mxu0 0.0
    %477 = vmatpush.msra.mxu0 0.0
    %478 = vmatpush.msra.mxu0 0.0
    %479 = vmatpush.msra.mxu0 0.0
    %480 = vmatpush.msra.mxu0 0.0
    %481 = vmatpush.msra.mxu0 0.0
    %482 = vmatpush.msra.mxu0 0.0
    %483 = vmatpush.msra.mxu0 0.0
    %484 = vmatpush.msra.mxu0 0.0
    %485 = vmatpush.msra.mxu0 0.0
    %v486 = vand.u32 %v67, 4294901760
    %487 = vmatpush.msra.mxu0 %v486
    %v488 = vand.u32 %v135, 4294901760
    %489 = vmatmul.f32.gmra.mxu0 %v488
    %v490 = vpop.f32.mrf.mxu0
    %v491 = vadd.f32 %v441, %v490
    %v492 = vand.u32 %v138, 4294901760
    %493 = vmatmul.f32.gmra.mxu0 %v492
    %v494 = vpop.f32.mrf.mxu0
    %v495 = vadd.f32 %v445, %v494
    %v496 = vand.u32 %v141, 4294901760
    %497 = vmatmul.f32.gmra.mxu0 %v496
    %v498 = vpop.f32.mrf.mxu0
    %v499 = vadd.f32 %v449, %v498
    %v500 = vand.u32 %v144, 4294901760
    %501 = vmatmul.f32.gmra.mxu0 %v500
    %v502 = vpop.f32.mrf.mxu0
    %v503 = vadd.f32 %v453, %v502
    %v504 = vand.u32 %v147, 4294901760
    %505 = vmatmul.f32.gmra.mxu0 %v504
    %v506 = vpop.f32.mrf.mxu0
    %v507 = vadd.f32 %v457, %v506
    %v508 = vand.u32 %v150, 4294901760
    %509 = vmatmul.f32.gmra.mxu0 %v508
    %v510 = vpop.f32.mrf.mxu0
    %v511 = vadd.f32 %v461, %v510
    %v512 = vand.u32 %v153, 4294901760
    %513 = vmatmul.f32.gmra.mxu0 %v512
    %v514 = vpop.f32.mrf.mxu0
    %v515 = vadd.f32 %v465, %v514
    %v516 = vand.u32 %v156, 4294901760
    %517 = vmatmul.f32.gmra.mxu0 %v516
    %v518 = vpop.f32.mrf.mxu0
    %v519 = vadd.f32 %v469, %v518
    %520 = vdwg.mxu0
    %521 = vmatpush.msra.mxu0 0.0
    %522 = vmatpush.msra.mxu0 0.0
    %523 = vmatpush.msra.mxu0 0.0
    %524 = vmatpush.msra.mxu0 0.0
    %525 = vmatpush.msra.mxu0 0.0
    %526 = vmatpush.msra.mxu0 0.0
    %527 = vmatpush.msra.mxu0 0.0
    %528 = vmatpush.msra.mxu0 0.0
    %529 = vmatpush.msra.mxu0 0.0
    %530 = vmatpush.msra.mxu0 0.0
    %531 = vmatpush.msra.mxu0 0.0
    %532 = vmatpush.msra.mxu0 0.0
    %533 = vmatpush.msra.mxu0 0.0
    %534 = vmatpush.msra.mxu0 0.0
    %535 = vmatpush.msra.mxu0 0.0
    %v536 = vand.u32 %v68, 4294901760
    %537 = vmatpush.msra.mxu0 %v536
    %v538 = vand.u32 %v135, 4294901760
    %v539 = vsub.f32 %v135, %v538
    %v540 = vand.u32 %v539, 4294901760
    %v541 = vsub.f32 %v539, %v540
    %v542 = vand.u32 %v541, 4294901760
    %543 = vmatmul.f32.gmra.mxu0 %v542
    %v544 = vpop.f32.mrf.mxu0
    %v545 = vadd.f32 %v111, %v544
    %v546 = vand.u32 %v138, 4294901760
    %v547 = vsub.f32 %v138, %v546
    %v548 = vand.u32 %v547, 4294901760
    %v549 = vsub.f32 %v547, %v548
    %v550 = vand.u32 %v549, 4294901760
    %551 = vmatmul.f32.gmra.mxu0 %v550
    %v552 = vpop.f32.mrf.mxu0
    %v553 = vadd.f32 %v114, %v552
    %v554 = vand.u32 %v141, 4294901760
    %v555 = vsub.f32 %v141, %v554
    %v556 = vand.u32 %v555, 4294901760
    %v557 = vsub.f32 %v555, %v556
    %v558 = vand.u32 %v557, 4294901760
    %559 = vmatmul.f32.gmra.mxu0 %v558
    %v560 = vpop.f32.mrf.mxu0
    %v561 = vadd.f32 %v117, %v560
    %v562 = vand.u32 %v144, 4294901760
    %v563 = vsub.f32 %v144, %v562
    %v564 = vand.u32 %v563, 4294901760
    %v565 = vsub.f32 %v563, %v564
    %v566 = vand.u32 %v565, 4294901760
    %567 = vmatmul.f32.gmra.mxu0 %v566
    %v568 = vpop.f32.mrf.mxu0
    %v569 = vadd.f32 %v120, %v568
    %v570 = vand.u32 %v147, 4294901760
    %v571 = vsub.f32 %v147, %v570
    %v572 = vand.u32 %v571, 4294901760
    %v573 = vsub.f32 %v571, %v572
    %v574 = vand.u32 %v573, 4294901760
    %575 = vmatmul.f32.gmra.mxu0 %v574
    %v576 = vpop.f32.mrf.mxu0
    %v577 = vadd.f32 %v123, %v576
    %v578 = vand.u32 %v150, 4294901760
    %v579 = vsub.f32 %v150, %v578
    %v580 = vand.u32 %v579, 4294901760
    %v581 = vsub.f32 %v579, %v580
    %v582 = vand.u32 %v581, 4294901760
    %583 = vmatmul.f32.gmra.mxu0 %v582
    %v584 = vpop.f32.mrf.mxu0
    %v585 = vadd.f32 %v126, %v584
    %v586 = vand.u32 %v153, 4294901760
    %v587 = vsub.f32 %v153, %v586
    %v588 = vand.u32 %v587, 4294901760
    %v589 = vsub.f32 %v587, %v588
    %v590 = vand.u32 %v589, 4294901760
    %591 = vmatmul.f32.gmra.mxu0 %v590
    %v592 = vpop.f32.mrf.mxu0
    %v593 = vadd.f32 %v129, %v592
    %v594 = vand.u32 %v156, 4294901760
    %v595 = vsub.f32 %v156, %v594
    %v596 = vand.u32 %v595, 4294901760
    %v597 = vsub.f32 %v595, %v596
    %v598 = vand.u32 %v597, 4294901760
    %599 = vmatmul.f32.gmra.mxu0 %v598
    %v600 = vpop.f32.mrf.mxu0
    %v601 = vadd.f32 %v132, %v600
    %602 = vdwg.mxu0
    %603 = vmatpush.msra.mxu0 0.0
    %604 = vmatpush.msra.mxu0 0.0
    %605 = vmatpush.msra.mxu0 0.0
    %606 = vmatpush.msra.mxu0 0.0
    %607 = vmatpush.msra.mxu0 0.0
    %608 = vmatpush.msra.mxu0 0.0
    %609 = vmatpush.msra.mxu0 0.0
    %610 = vmatpush.msra.mxu0 0.0
    %611 = vmatpush.msra.mxu0 0.0
    %612 = vmatpush.msra.mxu0 0.0
    %613 = vmatpush.msra.mxu0 0.0
    %614 = vmatpush.msra.mxu0 0.0
    %615 = vmatpush.msra.mxu0 0.0
    %616 = vmatpush.msra.mxu0 0.0
    %617 = vmatpush.msra.mxu0 0.0
    %v618 = vand.u32 %v68, 4294901760
    %v619 = vsub.f32 %v68, %v618
    %v620 = vand.u32 %v619, 4294901760
    %v621 = vsub.f32 %v619, %v620
    %v622 = vand.u32 %v621, 4294901760
    %623 = vmatpush.msra.mxu0 %v622
    %v624 = vand.u32 %v135, 4294901760
    %625 = vmatmul.f32.gmra.mxu0 %v624
    %v626 = vpop.f32.mrf.mxu0
    %v627 = vadd.f32 %v545, %v626
    %v628 = vand.u32 %v138, 4294901760
    %629 = vmatmul.f32.gmra.mxu0 %v628
    %v630 = vpop.f32.mrf.mxu0
    %v631 = vadd.f32 %v553, %v630
    %v632 = vand.u32 %v141, 4294901760
    %633 = vmatmul.f32.gmra.mxu0 %v632
    %v634 = vpop.f32.mrf.mxu0
    %v635 = vadd.f32 %v561, %v634
    %v636 = vand.u32 %v144, 4294901760
    %637 = vmatmul.f32.gmra.mxu0 %v636
    %v638 = vpop.f32.mrf.mxu0
    %v639 = vadd.f32 %v569, %v638
    %v640 = vand.u32 %v147, 4294901760
    %641 = vmatmul.f32.gmra.mxu0 %v640
    %v642 = vpop.f32.mrf.mxu0
    %v643 = vadd.f32 %v577, %v642
    %v644 = vand.u32 %v150, 4294901760
    %645 = vmatmul.f32.gmra.mxu0 %v644
    %v646 = vpop.f32.mrf.mxu0
    %v647 = vadd.f32 %v585, %v646
    %v648 = vand.u32 %v153, 4294901760
    %649 = vmatmul.f32.gmra.mxu0 %v648
    %v650 = vpop.f32.mrf.mxu0
    %v651 = vadd.f32 %v593, %v650
    %v652 = vand.u32 %v156, 4294901760
    %653 = vmatmul.f32.gmra.mxu0 %v652
    %v654 = vpop.f32.mrf.mxu0
    %v655 = vadd.f32 %v601, %v654
    %656 = vdwg.mxu0
    %657 = vmatpush.msra.mxu0 0.0
    %658 = vmatpush.msra.mxu0 0.0
    %659 = vmatpush.msra.mxu0 0.0
    %660 = vmatpush.msra.mxu0 0.0
    %661 = vmatpush.msra.mxu0 0.0
    %662 = vmatpush.msra.mxu0 0.0
    %663 = vmatpush.msra.mxu0 0.0
    %664 = vmatpush.msra.mxu0 0.0
    %665 = vmatpush.msra.mxu0 0.0
    %666 = vmatpush.msra.mxu0 0.0
    %667 = vmatpush.msra.mxu0 0.0
    %668 = vmatpush.msra.mxu0 0.0
    %669 = vmatpush.msra.mxu0 0.0
    %670 = vmatpush.msra.mxu0 0.0
    %671 = vmatpush.msra.mxu0 0.0
    %v672 = vand.u32 %v68, 4294901760
    %v673 = vsub.f32 %v68, %v672
    %674 = vmatpush.msra.mxu0 %v673
    %v675 = vand.u32 %v135, 4294901760
    %v676 = vsub.f32 %v135, %v675
    %677 = vmatmul.f32.gmra.mxu0 %v676
    %v678 = vpop.f32.mrf.mxu0
    %v679 = vadd.f32 %v627, %v678
    %v680 = vand.u32 %v138, 4294901760
    %v681 = vsub.f32 %v138, %v680
    %682 = vmatmul.f32.gmra.mxu0 %v681
    %v683 = vpop.f32.mrf.mxu0
    %v684 = vadd.f32 %v631, %v683
    %v685 = vand.u32 %v141, 4294901760
    %v686 = vsub.f32 %v141, %v685
    %687 = vmatmul.f32.gmra.mxu0 %v686
    %v688 = vpop.f32.mrf.mxu0
    %v689 = vadd.f32 %v635, %v688
    %v690 = vand.u32 %v144, 4294901760
    %v691 = vsub.f32 %v144, %v690
    %692 = vmatmul.f32.gmra.mxu0 %v691
    %v693 = vpop.f32.mrf.mxu0
    %v694 = vadd.f32 %v639, %v693
    %v695 = vand.u32 %v147, 4294901760
    %v696 = vsub.f32 %v147, %v695
    %697 = vmatmul.f32.gmra.mxu0 %v696
    %v698 = vpop.f32.mrf.mxu0
    %v699 = vadd.f32 %v643, %v698
    %v700 = vand.u32 %v150, 4294901760
    %v701 = vsub.f32 %v150, %v700
    %702 = vmatmul.f32.gmra.mxu0 %v701
    %v703 = vpop.f32.mrf.mxu0
    %v704 = vadd.f32 %v647, %v703
    %v705 = vand.u32 %v153, 4294901760
    %v706 = vsub.f32 %v153, %v705
    %707 = vmatmul.f32.gmra.mxu0 %v706
    %v708 = vpop.f32.mrf.mxu0
    %v709 = vadd.f32 %v651, %v708
    %v710 = vand.u32 %v156, 4294901760
    %v711 = vsub.f32 %v156, %v710
    %712 = vmatmul.f32.gmra.mxu0 %v711
    %v713 = vpop.f32.mrf.mxu0
    %v714 = vadd.f32 %v655, %v713
    %715 = vdwg.mxu0
    %716 = vmatpush.msra.mxu0 0.0
    %717 = vmatpush.msra.mxu0 0.0
    %718 = vmatpush.msra.mxu0 0.0
    %719 = vmatpush.msra.mxu0 0.0
    %720 = vmatpush.msra.mxu0 0.0
    %721 = vmatpush.msra.mxu0 0.0
    %722 = vmatpush.msra.mxu0 0.0
    %723 = vmatpush.msra.mxu0 0.0
    %724 = vmatpush.msra.mxu0 0.0
    %725 = vmatpush.msra.mxu0 0.0
    %726 = vmatpush.msra.mxu0 0.0
    %727 = vmatpush.msra.mxu0 0.0
    %728 = vmatpush.msra.mxu0 0.0
    %729 = vmatpush.msra.mxu0 0.0
    %730 = vmatpush.msra.mxu0 0.0
    %v731 = vand.u32 %v68, 4294901760
    %732 = vmatpush.msra.mxu0 %v731
    %v733 = vand.u32 %v135, 4294901760
    %v734 = vsub.f32 %v135, %v733
    %v735 = vand.u32 %v734, 4294901760
    %736 = vmatmul.f32.gmra.mxu0 %v735
    %v737 = vpop.f32.mrf.mxu0
    %v738 = vadd.f32 %v679, %v737
    %v739 = vand.u32 %v138, 4294901760
    %v740 = vsub.f32 %v138, %v739
    %v741 = vand.u32 %v740, 4294901760
    %742 = vmatmul.f32.gmra.mxu0 %v741
    %v743 = vpop.f32.mrf.mxu0
    %v744 = vadd.f32 %v684, %v743
    %v745 = vand.u32 %v141, 4294901760
    %v746 = vsub.f32 %v141, %v745
    %v747 = vand.u32 %v746, 4294901760
    %748 = vmatmul.f32.gmra.mxu0 %v747
    %v749 = vpop.f32.mrf.mxu0
    %v750 = vadd.f32 %v689, %v749
    %v751 = vand.u32 %v144, 4294901760
    %v752 = vsub.f32 %v144, %v751
    %v753 = vand.u32 %v752, 4294901760
    %754 = vmatmul.f32.gmra.mxu0 %v753
    %v755 = vpop.f32.mrf.mxu0
    %v756 = vadd.f32 %v694, %v755
    %v757 = vand.u32 %v147, 4294901760
    %v758 = vsub.f32 %v147, %v757
    %v759 = vand.u32 %v758, 4294901760
    %760 = vmatmul.f32.gmra.mxu0 %v759
    %v761 = vpop.f32.mrf.mxu0
    %v762 = vadd.f32 %v699, %v761
    %v763 = vand.u32 %v150, 4294901760
    %v764 = vsub.f32 %v150, %v763
    %v765 = vand.u32 %v764, 4294901760
    %766 = vmatmul.f32.gmra.mxu0 %v765
    %v767 = vpop.f32.mrf.mxu0
    %v768 = vadd.f32 %v704, %v767
    %v769 = vand.u32 %v153, 4294901760
    %v770 = vsub.f32 %v153, %v769
    %v771 = vand.u32 %v770, 4294901760
    %772 = vmatmul.f32.gmra.mxu0 %v771
    %v773 = vpop.f32.mrf.mxu0
    %v774 = vadd.f32 %v709, %v773
    %v775 = vand.u32 %v156, 4294901760
    %v776 = vsub.f32 %v156, %v775
    %v777 = vand.u32 %v776, 4294901760
    %778 = vmatmul.f32.gmra.mxu0 %v777
    %v779 = vpop.f32.mrf.mxu0
    %v780 = vadd.f32 %v714, %v779
    %781 = vdwg.mxu0
    %782 = vmatpush.msra.mxu0 0.0
    %783 = vmatpush.msra.mxu0 0.0
    %784 = vmatpush.msra.mxu0 0.0
    %785 = vmatpush.msra.mxu0 0.0
    %786 = vmatpush.msra.mxu0 0.0
    %787 = vmatpush.msra.mxu0 0.0
    %788 = vmatpush.msra.mxu0 0.0
    %789 = vmatpush.msra.mxu0 0.0
    %790 = vmatpush.msra.mxu0 0.0
    %791 = vmatpush.msra.mxu0 0.0
    %792 = vmatpush.msra.mxu0 0.0
    %793 = vmatpush.msra.mxu0 0.0
    %794 = vmatpush.msra.mxu0 0.0
    %795 = vmatpush.msra.mxu0 0.0
    %796 = vmatpush.msra.mxu0 0.0
    %v797 = vand.u32 %v68, 4294901760
    %v798 = vsub.f32 %v68, %v797
    %v799 = vand.u32 %v798, 4294901760
    %800 = vmatpush.msra.mxu0 %v799
    %v801 = vand.u32 %v135, 4294901760
    %802 = vmatmul.f32.gmra.mxu0 %v801
    %v803 = vpop.f32.mrf.mxu0
    %v804 = vadd.f32 %v738, %v803
    %v805 = vand.u32 %v138, 4294901760
    %806 = vmatmul.f32.gmra.mxu0 %v805
    %v807 = vpop.f32.mrf.mxu0
    %v808 = vadd.f32 %v744, %v807
    %v809 = vand.u32 %v141, 4294901760
    %810 = vmatmul.f32.gmra.mxu0 %v809
    %v811 = vpop.f32.mrf.mxu0
    %v812 = vadd.f32 %v750, %v811
    %v813 = vand.u32 %v144, 4294901760
    %814 = vmatmul.f32.gmra.mxu0 %v813
    %v815 = vpop.f32.mrf.mxu0
    %v816 = vadd.f32 %v756, %v815
    %v817 = vand.u32 %v147, 4294901760
    %818 = vmatmul.f32.gmra.mxu0 %v817
    %v819 = vpop.f32.mrf.mxu0
    %v820 = vadd.f32 %v762, %v819
    %v821 = vand.u32 %v150, 4294901760
    %822 = vmatmul.f32.gmra.mxu0 %v821
    %v823 = vpop.f32.mrf.mxu0
    %v824 = vadd.f32 %v768, %v823
    %v825 = vand.u32 %v153, 4294901760
    %826 = vmatmul.f32.gmra.mxu0 %v825
    %v827 = vpop.f32.mrf.mxu0
    %v828 = vadd.f32 %v774, %v827
    %v829 = vand.u32 %v156, 4294901760
    %830 = vmatmul.f32.gmra.mxu0 %v829
    %v831 = vpop.f32.mrf.mxu0
    %v832 = vadd.f32 %v780, %v831
    %833 = vdwg.mxu0
    %834 = vmatpush.msra.mxu0 0.0
    %835 = vmatpush.msra.mxu0 0.0
    %836 = vmatpush.msra.mxu0 0.0
    %837 = vmatpush.msra.mxu0 0.0
    %838 = vmatpush.msra.mxu0 0.0
    %839 = vmatpush.msra.mxu0 0.0
    %840 = vmatpush.msra.mxu0 0.0
    %841 = vmatpush.msra.mxu0 0.0
    %842 = vmatpush.msra.mxu0 0.0
    %843 = vmatpush.msra.mxu0 0.0
    %844 = vmatpush.msra.mxu0 0.0
    %845 = vmatpush.msra.mxu0 0.0
    %846 = vmatpush.msra.mxu0 0.0
    %847 = vmatpush.msra.mxu0 0.0
    %848 = vmatpush.msra.mxu0 0.0
    %v849 = vand.u32 %v68, 4294901760
    %850 = vmatpush.msra.mxu0 %v849
    %v851 = vand.u32 %v135, 4294901760
    %852 = vmatmul.f32.gmra.mxu0 %v851
    %v853 = vpop.f32.mrf.mxu0
    %v854 = vadd.f32 %v804, %v853
    %v855 = vand.u32 %v138, 4294901760
    %856 = vmatmul.f32.gmra.mxu0 %v855
    %v857 = vpop.f32.mrf.mxu0
    %v858 = vadd.f32 %v808, %v857
    %v859 = vand.u32 %v141, 4294901760
    %860 = vmatmul.f32.gmra.mxu0 %v859
    %v861 = vpop.f32.mrf.mxu0
    %v862 = vadd.f32 %v812, %v861
    %v863 = vand.u32 %v144, 4294901760
    %864 = vmatmul.f32.gmra.mxu0 %v863
    %v865 = vpop.f32.mrf.mxu0
    %v866 = vadd.f32 %v816, %v865
    %v867 = vand.u32 %v147, 4294901760
    %868 = vmatmul.f32.gmra.mxu0 %v867
    %v869 = vpop.f32.mrf.mxu0
    %v870 = vadd.f32 %v820, %v869
    %v871 = vand.u32 %v150, 4294901760
    %872 = vmatmul.f32.gmra.mxu0 %v871
    %v873 = vpop.f32.mrf.mxu0
    %v874 = vadd.f32 %v824, %v873
    %v875 = vand.u32 %v153, 4294901760
    %876 = vmatmul.f32.gmra.mxu0 %v875
    %v877 = vpop.f32.mrf.mxu0
    %v878 = vadd.f32 %v828, %v877
    %v879 = vand.u32 %v156, 4294901760
    %880 = vmatmul.f32.gmra.mxu0 %v879
    %v881 = vpop.f32.mrf.mxu0
    %v882 = vadd.f32 %v832, %v881
    %883 = vdwg.mxu0
    %v884 = vmax.f32 %v491, 0.0
    %v885 = vmax.f32 %v854, 0.0
    %v886 = vmax.f32 %v495, 0.0
    %v887 = vmax.f32 %v858, 0.0
    %v888 = vmax.f32 %v499, 0.0
    %v889 = vmax.f32 %v862, 0.0
    %v890 = vmax.f32 %v503, 0.0
    %v891 = vmax.f32 %v866, 0.0
    %v892 = vmax.f32 %v507, 0.0
    %v893 = vmax.f32 %v870, 0.0
    %v894 = vmax.f32 %v511, 0.0
    %v895 = vmax.f32 %v874, 0.0
    %v896 = vmax.f32 %v515, 0.0
    %v897 = vmax.f32 %v878, 0.0
    %v898 = vmax.f32 %v519, 0.0
    %v899 = vmax.f32 %v882, 0.0
    %v900 = vadd.f32 %v884, %v886
    %v901 = vadd.f32 %v900, %v888
    %v902 = vadd.f32 %v901, %v890
    %v903 = vrot.slane %v902, 4
    %v904 = vadd.f32 %v902, %v903
    %v905 = vrot.slane %v904, 2
    %v906 = vadd.f32 %v904, %v905
    %v907 = vrot.slane %v906, 1
    %v908 = vadd.f32 %v906, %v907
    %v909 = vadd.f32 %v885, %v887
    %v910 = vadd.f32 %v909, %v889
    %v911 = vadd.f32 %v910, %v891
    %v912 = vrot.slane %v911, 4
    %v913 = vadd.f32 %v911, %v912
    %v914 = vrot.slane %v913, 2
    %v915 = vadd.f32 %v913, %v914
    %v916 = vrot.slane %v915, 1
    %v917 = vadd.f32 %v915, %v916
    %v918 = vrcp.pop 32.0
    %v919 = vmul.f32 32.0, %v918
    %v920 = vsub.f32 1.0, %v919
    %v921 = vmul.f32 %v918, %v920
    %v922 = vadd.f32 %v918, %v921
    %vm923 = vweird.f32 %v918
    %v924 = vsel %vm923, %v918, %v922
    %v925 = vmul.f32 %v908, %v924
    %v926 = vmul.f32 %v917, %v924
    %v927 = vsub.f32 %v884, %v925
    %v928 = vsub.f32 %v885, %v926
    %v929 = vsub.f32 %v886, %v925
    %v930 = vsub.f32 %v887, %v926
    %v931 = vsub.f32 %v888, %v925
    %v932 = vsub.f32 %v889, %v926
    %v933 = vsub.f32 %v890, %v925
    %v934 = vsub.f32 %v891, %v926
    %v935 = vmul.f32 %v927, %v927
    %v936 = vmul.f32 %v928, %v928
    %v937 = vmul.f32 %v929, %v929
    %v938 = vmul.f32 %v930, %v930
    %v939 = vmul.f32 %v931, %v931
    %v940 = vmul.f32 %v932, %v932
    %v941 = vmul.f32 %v933, %v933
    %v942 = vmul.f32 %v934, %v934
    %v943 = vadd.f32 %v935, %v937
    %v944 = vadd.f32 %v943, %v939
    %v945 = vadd.f32 %v944, %v941
    %v946 = vrot.slane %v945, 4
    %v947 = vadd.f32 %v945, %v946
    %v948 = vrot.slane %v947, 2
    %v949 = vadd.f32 %v947, %v948
    %v950 = vrot.slane %v949, 1
    %v951 = vadd.f32 %v949, %v950
    %v952 = vadd.f32 %v936, %v938
    %v953 = vadd.f32 %v952, %v940
    %v954 = vadd.f32 %v953, %v942
    %v955 = vrot.slane %v954, 4
    %v956 = vadd.f32 %v954, %v955
    %v957 = vrot.slane %v956, 2
    %v958 = vadd.f32 %v956, %v957
    %v959 = vrot.slane %v958, 1
    %v960 = vadd.f32 %v958, %v959
    %v961 = vmul.f32 %v951, %v924
    %v962 = vmul.f32 %v960, %v924
    %v963 = vadd.f32 %v961, 1e-05
    %v964 = vadd.f32 %v962, 1e-05
    %v965 = vrsqrt.pop %v963
    %v966 = vmul.f32 %v965, %v963
    %v967 = vmul.f32 %v966, %v965
    %v968 = vmul.f32 0.5, %v967
    %v969 = vsub.f32 1.5, %v968
    %v970 = vmul.f32 %v965, %v969
    %vm971 = vweird.f32 %v963
    %vm972 = vweird.f32 %v965
    %vm973 = vmor %vm971, %vm972
    %v974 = vsel %vm973, %v965, %v970
    %v975 = vrsqrt.pop %v964
    %v976 = vmul.f32 %v975, %v964
    %v977 = vmul.f32 %v976, %v975
    %v978 = vmul.f32 0.5, %v977
    %v979 = vsub.f32 1.5, %v978
    %v980 = vmul.f32 %v975, %v979
    %vm981 = vweird.f32 %v964
    %vm982 = vweird.f32 %v975
    %vm983 = vmor %vm981, %vm982
    %v984 = vsel %vm983, %v975, %v980
    %v985 = vmul.f32 %v927, %v974
    %v986 = vmul.f32 %v928, %v984
    %v987 = vmul.f32 %v929, %v974
    %v988 = vmul.f32 %v930, %v984
    %v989 = vmul.f32 %v931, %v974
    %v990 = vmul.f32 %v932, %v984
    %v991 = vmul.f32 %v933, %v974
    %v992 = vmul.f32 %v934, %v984
    %994 = vset.pattern.permute.xlu0 0
    %995 = vperm.xlu0 %994, %v55
    %v996 = vpop.permute.xlu0 %995
    %999 = vset.pattern.permute.xlu0 0
    %1000 = vperm.xlu0 %999, %v56
    %v1001 = vpop.permute.xlu0 %1000
    %1004 = vset.pattern.permute.xlu0 0
    %1005 = vperm.xlu0 %1004, %v57
    %v1006 = vpop.permute.xlu0 %1005
    %1009 = vset.pattern.permute.xlu0 0
    %1010 = vperm.xlu0 %1009, %v58
    %v1011 = vpop.permute.xlu0 %1010
    %v1013 = vmul.f32 %v985, %v996
    %v1014 = vmul.f32 %v986, %v996
    %v1015 = vmul.f32 %v987, %v1001
    %v1016 = vmul.f32 %v988, %v1001
    %v1017 = vmul.f32 %v989, %v1006
    %v1018 = vmul.f32 %v990, %v1006
    %v1019 = vmul.f32 %v991, %v1011
    %v1020 = vmul.f32 %v992, %v1011
    %1022 = vset.pattern.permute.xlu0 0
    %1023 = vperm.xlu0 %1022, %v59
    %v1024 = vpop.permute.xlu0 %1023
    %1027 = vset.pattern.permute.xlu0 0
    %1028 = vperm.xlu0 %1027, %v60
    %v1029 = vpop.permute.xlu0 %1028
    %1032 = vset.pattern.permute.xlu0 0
    %1033 = vperm.xlu0 %1032, %v61
    %v1034 = vpop.permute.xlu0 %1033
    %1037 = vset.pattern.permute.xlu0 0
    %1038 = vperm.xlu0 %1037, %v62
    %v1039 = vpop.permute.xlu0 %1038
    %v1041 = vadd.f32 %v1013, %v1024
    %v1042 = vadd.f32 %v1014, %v1024
    %v1043 = vadd.f32 %v1015, %v1029
    %v1044 = vadd.f32 %v1016, %v1029
    %v1045 = vadd.f32 %v1017, %v1034
    %v1046 = vadd.f32 %v1018, %v1034
    %v1047 = vadd.f32 %v1019, %v1039
    %v1048 = vadd.f32 %v1020, %v1039
    %v1049 = vadd.f32 %v892, %v894
    %v1050 = vadd.f32 %v1049, %v896
    %v1051 = vadd.f32 %v1050, %v898
    %v1052 = vrot.slane %v1051, 4
    %v1053 = vadd.f32 %v1051, %v1052
    %v1054 = vrot.slane %v1053, 2
    %v1055 = vadd.f32 %v1053, %v1054
    %v1056 = vrot.slane %v1055, 1
    %v1057 = vadd.f32 %v1055, %v1056
    %v1058 = vadd.f32 %v893, %v895
    %v1059 = vadd.f32 %v1058, %v897
    %v1060 = vadd.f32 %v1059, %v899
    %v1061 = vrot.slane %v1060, 4
    %v1062 = vadd.f32 %v1060, %v1061
    %v1063 = vrot.slane %v1062, 2
    %v1064 = vadd.f32 %v1062, %v1063
    %v1065 = vrot.slane %v1064, 1
    %v1066 = vadd.f32 %v1064, %v1065
    %v1067 = vmul.f32 %v1057, %v924
    %v1068 = vmul.f32 %v1066, %v924
    %v1069 = vsub.f32 %v892, %v1067
    %v1070 = vsub.f32 %v893, %v1068
    %v1071 = vsub.f32 %v894, %v1067
    %v1072 = vsub.f32 %v895, %v1068
    %v1073 = vsub.f32 %v896, %v1067
    %v1074 = vsub.f32 %v897, %v1068
    %v1075 = vsub.f32 %v898, %v1067
    %v1076 = vsub.f32 %v899, %v1068
    %v1077 = vmul.f32 %v1069, %v1069
    %v1078 = vmul.f32 %v1070, %v1070
    %v1079 = vmul.f32 %v1071, %v1071
    %v1080 = vmul.f32 %v1072, %v1072
    %v1081 = vmul.f32 %v1073, %v1073
    %v1082 = vmul.f32 %v1074, %v1074
    %v1083 = vmul.f32 %v1075, %v1075
    %v1084 = vmul.f32 %v1076, %v1076
    %v1085 = vadd.f32 %v1077, %v1079
    %v1086 = vadd.f32 %v1085, %v1081
    %v1087 = vadd.f32 %v1086, %v1083
    %v1088 = vrot.slane %v1087, 4
    %v1089 = vadd.f32 %v1087, %v1088
    %v1090 = vrot.slane %v1089, 2
    %v1091 = vadd.f32 %v1089, %v1090
    %v1092 = vrot.slane %v1091, 1
    %v1093 = vadd.f32 %v1091, %v1092
    %v1094 = vadd.f32 %v1078, %v1080
    %v1095 = vadd.f32 %v1094, %v1082
    %v1096 = vadd.f32 %v1095, %v1084
    %v1097 = vrot.slane %v1096, 4
    %v1098 = vadd.f32 %v1096, %v1097
    %v1099 = vrot.slane %v1098, 2
    %v1100 = vadd.f32 %v1098, %v1099
    %v1101 = vrot.slane %v1100, 1
    %v1102 = vadd.f32 %v1100, %v1101
    %v1103 = vmul.f32 %v1093, %v924
    %v1104 = vmul.f32 %v1102, %v924
    %v1105 = vadd.f32 %v1103, 1e-05
    %v1106 = vadd.f32 %v1104, 1e-05
    %v1107 = vrsqrt.pop %v1105
    %v1108 = vmul.f32 %v1107, %v1105
    %v1109 = vmul.f32 %v1108, %v1107
    %v1110 = vmul.f32 0.5, %v1109
    %v1111 = vsub.f32 1.5, %v1110
    %v1112 = vmul.f32 %v1107, %v1111
    %vm1113 = vweird.f32 %v1105
    %vm1114 = vweird.f32 %v1107
    %vm1115 = vmor %vm1113, %vm1114
    %v1116 = vsel %vm1115, %v1107, %v1112
    %v1117 = vrsqrt.pop %v1106
    %v1118 = vmul.f32 %v1117, %v1106
    %v1119 = vmul.f32 %v1118, %v1117
    %v1120 = vmul.f32 0.5, %v1119
    %v1121 = vsub.f32 1.5, %v1120
    %v1122 = vmul.f32 %v1117, %v1121
    %vm1123 = vweird.f32 %v1106
    %vm1124 = vweird.f32 %v1117
    %vm1125 = vmor %vm1123, %vm1124
    %v1126 = vsel %vm1125, %v1117, %v1122
    %v1127 = vmul.f32 %v1069, %v1116
    %v1128 = vmul.f32 %v1070, %v1126
    %v1129 = vmul.f32 %v1071, %v1116
    %v1130 = vmul.f32 %v1072, %v1126
    %v1131 = vmul.f32 %v1073, %v1116
    %v1132 = vmul.f32 %v1074, %v1126
    %v1133 = vmul.f32 %v1075, %v1116
    %v1134 = vmul.f32 %v1076, %v1126
    %v1135 = vmul.f32 %v1127, %v996
    %v1136 = vmul.f32 %v1128, %v996
    %v1137 = vmul.f32 %v1129, %v1001
    %v1138 = vmul.f32 %v1130, %v1001
    %v1139 = vmul.f32 %v1131, %v1006
    %v1140 = vmul.f32 %v1132, %v1006
    %v1141 = vmul.f32 %v1133, %v1011
    %v1142 = vmul.f32 %v1134, %v1011
    %v1143 = vadd.f32 %v1135, %v1024
    %v1144 = vadd.f32 %v1136, %v1024
    %v1145 = vadd.f32 %v1137, %v1029
    %v1146 = vadd.f32 %v1138, %v1029
    %v1147 = vadd.f32 %v1139, %v1034
    %v1148 = vadd.f32 %v1140, %v1034
    %v1149 = vadd.f32 %v1141, %v1039
    %v1150 = vadd.f32 %v1142, %v1039
    %v1152 = vsel %vm133, %v31, 0
    %v1155 = vsel %vm133, %v32, 0
    %v1158 = vsel %vm133, %v33, 0
    %v1161 = vsel %vm133, %v34, 0
    %1163 = vmatpush.msra.mxu0 0.0
    %1164 = vmatpush.msra.mxu0 0.0
    %1165 = vmatpush.msra.mxu0 0.0
    %1166 = vmatpush.msra.mxu0 0.0
    %1167 = vmatpush.msra.mxu0 0.0
    %1168 = vmatpush.msra.mxu0 0.0
    %1169 = vmatpush.msra.mxu0 0.0
    %1170 = vmatpush.msra.mxu0 0.0
    %1171 = vmatpush.msra.mxu0 0.0
    %1172 = vmatpush.msra.mxu0 0.0
    %1173 = vmatpush.msra.mxu0 0.0
    %1174 = vmatpush.msra.mxu0 0.0
    %1175 = vmatpush.msra.mxu0 0.0
    %1176 = vmatpush.msra.mxu0 0.0
    %1177 = vmatpush.msra.mxu0 0.0
    %v1178 = vand.u32 %v80, 4294901760
    %1179 = vmatpush.msra.mxu0 %v1178
    %v1180 = vand.u32 %v1152, 4294901760
    %v1181 = vsub.f32 %v1152, %v1180
    %v1182 = vand.u32 %v1181, 4294901760
    %v1183 = vsub.f32 %v1181, %v1182
    %v1184 = vand.u32 %v1183, 4294901760
    %1185 = vmatmul.f32.gmra.mxu0 %v1184
    %v1186 = vpop.f32.mrf.mxu0
    %v1187 = vadd.f32 %v99, %v1186
    %v1188 = vand.u32 %v1155, 4294901760
    %v1189 = vsub.f32 %v1155, %v1188
    %v1190 = vand.u32 %v1189, 4294901760
    %v1191 = vsub.f32 %v1189, %v1190
    %v1192 = vand.u32 %v1191, 4294901760
    %1193 = vmatmul.f32.gmra.mxu0 %v1192
    %v1194 = vpop.f32.mrf.mxu0
    %v1195 = vadd.f32 %v102, %v1194
    %v1196 = vand.u32 %v1158, 4294901760
    %v1197 = vsub.f32 %v1158, %v1196
    %v1198 = vand.u32 %v1197, 4294901760
    %v1199 = vsub.f32 %v1197, %v1198
    %v1200 = vand.u32 %v1199, 4294901760
    %1201 = vmatmul.f32.gmra.mxu0 %v1200
    %v1202 = vpop.f32.mrf.mxu0
    %v1203 = vadd.f32 %v105, %v1202
    %v1204 = vand.u32 %v1161, 4294901760
    %v1205 = vsub.f32 %v1161, %v1204
    %v1206 = vand.u32 %v1205, 4294901760
    %v1207 = vsub.f32 %v1205, %v1206
    %v1208 = vand.u32 %v1207, 4294901760
    %1209 = vmatmul.f32.gmra.mxu0 %v1208
    %v1210 = vpop.f32.mrf.mxu0
    %v1211 = vadd.f32 %v108, %v1210
    %v1212 = vand.u32 %v135, 4294901760
    %v1213 = vsub.f32 %v135, %v1212
    %v1214 = vand.u32 %v1213, 4294901760
    %v1215 = vsub.f32 %v1213, %v1214
    %v1216 = vand.u32 %v1215, 4294901760
    %1217 = vmatmul.f32.gmra.mxu0 %v1216
    %v1218 = vpop.f32.mrf.mxu0
    %v1219 = vadd.f32 %v111, %v1218
    %v1220 = vand.u32 %v138, 4294901760
    %v1221 = vsub.f32 %v138, %v1220
    %v1222 = vand.u32 %v1221, 4294901760
    %v1223 = vsub.f32 %v1221, %v1222
    %v1224 = vand.u32 %v1223, 4294901760
    %1225 = vmatmul.f32.gmra.mxu0 %v1224
    %v1226 = vpop.f32.mrf.mxu0
    %v1227 = vadd.f32 %v114, %v1226
    %v1228 = vand.u32 %v141, 4294901760
    %v1229 = vsub.f32 %v141, %v1228
    %v1230 = vand.u32 %v1229, 4294901760
    %v1231 = vsub.f32 %v1229, %v1230
    %v1232 = vand.u32 %v1231, 4294901760
    %1233 = vmatmul.f32.gmra.mxu0 %v1232
    %v1234 = vpop.f32.mrf.mxu0
    %v1235 = vadd.f32 %v117, %v1234
    %v1236 = vand.u32 %v144, 4294901760
    %v1237 = vsub.f32 %v144, %v1236
    %v1238 = vand.u32 %v1237, 4294901760
    %v1239 = vsub.f32 %v1237, %v1238
    %v1240 = vand.u32 %v1239, 4294901760
    %1241 = vmatmul.f32.gmra.mxu0 %v1240
    %v1242 = vpop.f32.mrf.mxu0
    %v1243 = vadd.f32 %v120, %v1242
    %v1244 = vand.u32 %v147, 4294901760
    %v1245 = vsub.f32 %v147, %v1244
    %v1246 = vand.u32 %v1245, 4294901760
    %v1247 = vsub.f32 %v1245, %v1246
    %v1248 = vand.u32 %v1247, 4294901760
    %1249 = vmatmul.f32.gmra.mxu0 %v1248
    %v1250 = vpop.f32.mrf.mxu0
    %v1251 = vadd.f32 %v123, %v1250
    %v1252 = vand.u32 %v150, 4294901760
    %v1253 = vsub.f32 %v150, %v1252
    %v1254 = vand.u32 %v1253, 4294901760
    %v1255 = vsub.f32 %v1253, %v1254
    %v1256 = vand.u32 %v1255, 4294901760
    %1257 = vmatmul.f32.gmra.mxu0 %v1256
    %v1258 = vpop.f32.mrf.mxu0
    %v1259 = vadd.f32 %v126, %v1258
    %v1260 = vand.u32 %v153, 4294901760
    %v1261 = vsub.f32 %v153, %v1260
    %v1262 = vand.u32 %v1261, 4294901760
    %v1263 = vsub.f32 %v1261, %v1262
    %v1264 = vand.u32 %v1263, 4294901760
    %1265 = vmatmul.f32.gmra.mxu0 %v1264
    %v1266 = vpop.f32.mrf.mxu0
    %v1267 = vadd.f32 %v129, %v1266
    %v1268 = vand.u32 %v156, 4294901760
    %v1269 = vsub.f32 %v156, %v1268
    %v1270 = vand.u32 %v1269, 4294901760
    %v1271 = vsub.f32 %v1269, %v1270
    %v1272 = vand.u32 %v1271, 4294901760
    %1273 = vmatmul.f32.gmra.mxu0 %v1272
    %v1274 = vpop.f32.mrf.mxu0
    %v1275 = vadd.f32 %v132, %v1274
    %1276 = vdwg.mxu0
    %1277 = vmatpush.msra.mxu0 0.0
    %1278 = vmatpush.msra.mxu0 0.0
    %1279 = vmatpush.msra.mxu0 0.0
    %1280 = vmatpush.msra.mxu0 0.0
    %1281 = vmatpush.msra.mxu0 0.0
    %1282 = vmatpush.msra.mxu0 0.0
    %1283 = vmatpush.msra.mxu0 0.0
    %1284 = vmatpush.msra.mxu0 0.0
    %1285 = vmatpush.msra.mxu0 0.0
    %1286 = vmatpush.msra.mxu0 0.0
    %1287 = vmatpush.msra.mxu0 0.0
    %1288 = vmatpush.msra.mxu0 0.0
    %1289 = vmatpush.msra.mxu0 0.0
    %1290 = vmatpush.msra.mxu0 0.0
    %1291 = vmatpush.msra.mxu0 0.0
    %v1292 = vand.u32 %v80, 4294901760
    %v1293 = vsub.f32 %v80, %v1292
    %v1294 = vand.u32 %v1293, 4294901760
    %v1295 = vsub.f32 %v1293, %v1294
    %v1296 = vand.u32 %v1295, 4294901760
    %1297 = vmatpush.msra.mxu0 %v1296
    %v1298 = vand.u32 %v1152, 4294901760
    %1299 = vmatmul.f32.gmra.mxu0 %v1298
    %v1300 = vpop.f32.mrf.mxu0
    %v1301 = vadd.f32 %v1187, %v1300
    %v1302 = vand.u32 %v1155, 4294901760
    %1303 = vmatmul.f32.gmra.mxu0 %v1302
    %v1304 = vpop.f32.mrf.mxu0
    %v1305 = vadd.f32 %v1195, %v1304
    %v1306 = vand.u32 %v1158, 4294901760
    %1307 = vmatmul.f32.gmra.mxu0 %v1306
    %v1308 = vpop.f32.mrf.mxu0
    %v1309 = vadd.f32 %v1203, %v1308
    %v1310 = vand.u32 %v1161, 4294901760
    %1311 = vmatmul.f32.gmra.mxu0 %v1310
    %v1312 = vpop.f32.mrf.mxu0
    %v1313 = vadd.f32 %v1211, %v1312
    %v1314 = vand.u32 %v135, 4294901760
    %1315 = vmatmul.f32.gmra.mxu0 %v1314
    %v1316 = vpop.f32.mrf.mxu0
    %v1317 = vadd.f32 %v1219, %v1316
    %v1318 = vand.u32 %v138, 4294901760
    %1319 = vmatmul.f32.gmra.mxu0 %v1318
    %v1320 = vpop.f32.mrf.mxu0
    %v1321 = vadd.f32 %v1227, %v1320
    %v1322 = vand.u32 %v141, 4294901760
    %1323 = vmatmul.f32.gmra.mxu0 %v1322
    %v1324 = vpop.f32.mrf.mxu0
    %v1325 = vadd.f32 %v1235, %v1324
    %v1326 = vand.u32 %v144, 4294901760
    %1327 = vmatmul.f32.gmra.mxu0 %v1326
    %v1328 = vpop.f32.mrf.mxu0
    %v1329 = vadd.f32 %v1243, %v1328
    %v1330 = vand.u32 %v147, 4294901760
    %1331 = vmatmul.f32.gmra.mxu0 %v1330
    %v1332 = vpop.f32.mrf.mxu0
    %v1333 = vadd.f32 %v1251, %v1332
    %v1334 = vand.u32 %v150, 4294901760
    %1335 = vmatmul.f32.gmra.mxu0 %v1334
    %v1336 = vpop.f32.mrf.mxu0
    %v1337 = vadd.f32 %v1259, %v1336
    %v1338 = vand.u32 %v153, 4294901760
    %1339 = vmatmul.f32.gmra.mxu0 %v1338
    %v1340 = vpop.f32.mrf.mxu0
    %v1341 = vadd.f32 %v1267, %v1340
    %v1342 = vand.u32 %v156, 4294901760
    %1343 = vmatmul.f32.gmra.mxu0 %v1342
    %v1344 = vpop.f32.mrf.mxu0
    %v1345 = vadd.f32 %v1275, %v1344
    %1346 = vdwg.mxu0
    %1347 = vmatpush.msra.mxu0 0.0
    %1348 = vmatpush.msra.mxu0 0.0
    %1349 = vmatpush.msra.mxu0 0.0
    %1350 = vmatpush.msra.mxu0 0.0
    %1351 = vmatpush.msra.mxu0 0.0
    %1352 = vmatpush.msra.mxu0 0.0
    %1353 = vmatpush.msra.mxu0 0.0
    %1354 = vmatpush.msra.mxu0 0.0
    %1355 = vmatpush.msra.mxu0 0.0
    %1356 = vmatpush.msra.mxu0 0.0
    %1357 = vmatpush.msra.mxu0 0.0
    %1358 = vmatpush.msra.mxu0 0.0
    %1359 = vmatpush.msra.mxu0 0.0
    %1360 = vmatpush.msra.mxu0 0.0
    %1361 = vmatpush.msra.mxu0 0.0
    %v1362 = vand.u32 %v80, 4294901760
    %v1363 = vsub.f32 %v80, %v1362
    %1364 = vmatpush.msra.mxu0 %v1363
    %v1365 = vand.u32 %v1152, 4294901760
    %v1366 = vsub.f32 %v1152, %v1365
    %1367 = vmatmul.f32.gmra.mxu0 %v1366
    %v1368 = vpop.f32.mrf.mxu0
    %v1369 = vadd.f32 %v1301, %v1368
    %v1370 = vand.u32 %v1155, 4294901760
    %v1371 = vsub.f32 %v1155, %v1370
    %1372 = vmatmul.f32.gmra.mxu0 %v1371
    %v1373 = vpop.f32.mrf.mxu0
    %v1374 = vadd.f32 %v1305, %v1373
    %v1375 = vand.u32 %v1158, 4294901760
    %v1376 = vsub.f32 %v1158, %v1375
    %1377 = vmatmul.f32.gmra.mxu0 %v1376
    %v1378 = vpop.f32.mrf.mxu0
    %v1379 = vadd.f32 %v1309, %v1378
    %v1380 = vand.u32 %v1161, 4294901760
    %v1381 = vsub.f32 %v1161, %v1380
    %1382 = vmatmul.f32.gmra.mxu0 %v1381
    %v1383 = vpop.f32.mrf.mxu0
    %v1384 = vadd.f32 %v1313, %v1383
    %v1385 = vand.u32 %v135, 4294901760
    %v1386 = vsub.f32 %v135, %v1385
    %1387 = vmatmul.f32.gmra.mxu0 %v1386
    %v1388 = vpop.f32.mrf.mxu0
    %v1389 = vadd.f32 %v1317, %v1388
    %v1390 = vand.u32 %v138, 4294901760
    %v1391 = vsub.f32 %v138, %v1390
    %1392 = vmatmul.f32.gmra.mxu0 %v1391
    %v1393 = vpop.f32.mrf.mxu0
    %v1394 = vadd.f32 %v1321, %v1393
    %v1395 = vand.u32 %v141, 4294901760
    %v1396 = vsub.f32 %v141, %v1395
    %1397 = vmatmul.f32.gmra.mxu0 %v1396
    %v1398 = vpop.f32.mrf.mxu0
    %v1399 = vadd.f32 %v1325, %v1398
    %v1400 = vand.u32 %v144, 4294901760
    %v1401 = vsub.f32 %v144, %v1400
    %1402 = vmatmul.f32.gmra.mxu0 %v1401
    %v1403 = vpop.f32.mrf.mxu0
    %v1404 = vadd.f32 %v1329, %v1403
    %v1405 = vand.u32 %v147, 4294901760
    %v1406 = vsub.f32 %v147, %v1405
    %1407 = vmatmul.f32.gmra.mxu0 %v1406
    %v1408 = vpop.f32.mrf.mxu0
    %v1409 = vadd.f32 %v1333, %v1408
    %v1410 = vand.u32 %v150, 4294901760
    %v1411 = vsub.f32 %v150, %v1410
    %1412 = vmatmul.f32.gmra.mxu0 %v1411
    %v1413 = vpop.f32.mrf.mxu0
    %v1414 = vadd.f32 %v1337, %v1413
    %v1415 = vand.u32 %v153, 4294901760
    %v1416 = vsub.f32 %v153, %v1415
    %1417 = vmatmul.f32.gmra.mxu0 %v1416
    %v1418 = vpop.f32.mrf.mxu0
    %v1419 = vadd.f32 %v1341, %v1418
    %v1420 = vand.u32 %v156, 4294901760
    %v1421 = vsub.f32 %v156, %v1420
    %1422 = vmatmul.f32.gmra.mxu0 %v1421
    %v1423 = vpop.f32.mrf.mxu0
    %v1424 = vadd.f32 %v1345, %v1423
    %1425 = vdwg.mxu0
    %1426 = vmatpush.msra.mxu0 0.0
    %1427 = vmatpush.msra.mxu0 0.0
    %1428 = vmatpush.msra.mxu0 0.0
    %1429 = vmatpush.msra.mxu0 0.0
    %1430 = vmatpush.msra.mxu0 0.0
    %1431 = vmatpush.msra.mxu0 0.0
    %1432 = vmatpush.msra.mxu0 0.0
    %1433 = vmatpush.msra.mxu0 0.0
    %1434 = vmatpush.msra.mxu0 0.0
    %1435 = vmatpush.msra.mxu0 0.0
    %1436 = vmatpush.msra.mxu0 0.0
    %1437 = vmatpush.msra.mxu0 0.0
    %1438 = vmatpush.msra.mxu0 0.0
    %1439 = vmatpush.msra.mxu0 0.0
    %1440 = vmatpush.msra.mxu0 0.0
    %v1441 = vand.u32 %v80, 4294901760
    %1442 = vmatpush.msra.mxu0 %v1441
    %v1443 = vand.u32 %v1152, 4294901760
    %v1444 = vsub.f32 %v1152, %v1443
    %v1445 = vand.u32 %v1444, 4294901760
    %1446 = vmatmul.f32.gmra.mxu0 %v1445
    %v1447 = vpop.f32.mrf.mxu0
    %v1448 = vadd.f32 %v1369, %v1447
    %v1449 = vand.u32 %v1155, 4294901760
    %v1450 = vsub.f32 %v1155, %v1449
    %v1451 = vand.u32 %v1450, 4294901760
    %1452 = vmatmul.f32.gmra.mxu0 %v1451
    %v1453 = vpop.f32.mrf.mxu0
    %v1454 = vadd.f32 %v1374, %v1453
    %v1455 = vand.u32 %v1158, 4294901760
    %v1456 = vsub.f32 %v1158, %v1455
    %v1457 = vand.u32 %v1456, 4294901760
    %1458 = vmatmul.f32.gmra.mxu0 %v1457
    %v1459 = vpop.f32.mrf.mxu0
    %v1460 = vadd.f32 %v1379, %v1459
    %v1461 = vand.u32 %v1161, 4294901760
    %v1462 = vsub.f32 %v1161, %v1461
    %v1463 = vand.u32 %v1462, 4294901760
    %1464 = vmatmul.f32.gmra.mxu0 %v1463
    %v1465 = vpop.f32.mrf.mxu0
    %v1466 = vadd.f32 %v1384, %v1465
    %v1467 = vand.u32 %v135, 4294901760
    %v1468 = vsub.f32 %v135, %v1467
    %v1469 = vand.u32 %v1468, 4294901760
    %1470 = vmatmul.f32.gmra.mxu0 %v1469
    %v1471 = vpop.f32.mrf.mxu0
    %v1472 = vadd.f32 %v1389, %v1471
    %v1473 = vand.u32 %v138, 4294901760
    %v1474 = vsub.f32 %v138, %v1473
    %v1475 = vand.u32 %v1474, 4294901760
    %1476 = vmatmul.f32.gmra.mxu0 %v1475
    %v1477 = vpop.f32.mrf.mxu0
    %v1478 = vadd.f32 %v1394, %v1477
    %v1479 = vand.u32 %v141, 4294901760
    %v1480 = vsub.f32 %v141, %v1479
    %v1481 = vand.u32 %v1480, 4294901760
    %1482 = vmatmul.f32.gmra.mxu0 %v1481
    %v1483 = vpop.f32.mrf.mxu0
    %v1484 = vadd.f32 %v1399, %v1483
    %v1485 = vand.u32 %v144, 4294901760
    %v1486 = vsub.f32 %v144, %v1485
    %v1487 = vand.u32 %v1486, 4294901760
    %1488 = vmatmul.f32.gmra.mxu0 %v1487
    %v1489 = vpop.f32.mrf.mxu0
    %v1490 = vadd.f32 %v1404, %v1489
    %v1491 = vand.u32 %v147, 4294901760
    %v1492 = vsub.f32 %v147, %v1491
    %v1493 = vand.u32 %v1492, 4294901760
    %1494 = vmatmul.f32.gmra.mxu0 %v1493
    %v1495 = vpop.f32.mrf.mxu0
    %v1496 = vadd.f32 %v1409, %v1495
    %v1497 = vand.u32 %v150, 4294901760
    %v1498 = vsub.f32 %v150, %v1497
    %v1499 = vand.u32 %v1498, 4294901760
    %1500 = vmatmul.f32.gmra.mxu0 %v1499
    %v1501 = vpop.f32.mrf.mxu0
    %v1502 = vadd.f32 %v1414, %v1501
    %v1503 = vand.u32 %v153, 4294901760
    %v1504 = vsub.f32 %v153, %v1503
    %v1505 = vand.u32 %v1504, 4294901760
    %1506 = vmatmul.f32.gmra.mxu0 %v1505
    %v1507 = vpop.f32.mrf.mxu0
    %v1508 = vadd.f32 %v1419, %v1507
    %v1509 = vand.u32 %v156, 4294901760
    %v1510 = vsub.f32 %v156, %v1509
    %v1511 = vand.u32 %v1510, 4294901760
    %1512 = vmatmul.f32.gmra.mxu0 %v1511
    %v1513 = vpop.f32.mrf.mxu0
    %v1514 = vadd.f32 %v1424, %v1513
    %1515 = vdwg.mxu0
    %1516 = vmatpush.msra.mxu0 0.0
    %1517 = vmatpush.msra.mxu0 0.0
    %1518 = vmatpush.msra.mxu0 0.0
    %1519 = vmatpush.msra.mxu0 0.0
    %1520 = vmatpush.msra.mxu0 0.0
    %1521 = vmatpush.msra.mxu0 0.0
    %1522 = vmatpush.msra.mxu0 0.0
    %1523 = vmatpush.msra.mxu0 0.0
    %1524 = vmatpush.msra.mxu0 0.0
    %1525 = vmatpush.msra.mxu0 0.0
    %1526 = vmatpush.msra.mxu0 0.0
    %1527 = vmatpush.msra.mxu0 0.0
    %1528 = vmatpush.msra.mxu0 0.0
    %1529 = vmatpush.msra.mxu0 0.0
    %1530 = vmatpush.msra.mxu0 0.0
    %v1531 = vand.u32 %v80, 4294901760
    %v1532 = vsub.f32 %v80, %v1531
    %v1533 = vand.u32 %v1532, 4294901760
    %1534 = vmatpush.msra.mxu0 %v1533
    %v1535 = vand.u32 %v1152, 4294901760
    %1536 = vmatmul.f32.gmra.mxu0 %v1535
    %v1537 = vpop.f32.mrf.mxu0
    %v1538 = vadd.f32 %v1448, %v1537
    %v1539 = vand.u32 %v1155, 4294901760
    %1540 = vmatmul.f32.gmra.mxu0 %v1539
    %v1541 = vpop.f32.mrf.mxu0
    %v1542 = vadd.f32 %v1454, %v1541
    %v1543 = vand.u32 %v1158, 4294901760
    %1544 = vmatmul.f32.gmra.mxu0 %v1543
    %v1545 = vpop.f32.mrf.mxu0
    %v1546 = vadd.f32 %v1460, %v1545
    %v1547 = vand.u32 %v1161, 4294901760
    %1548 = vmatmul.f32.gmra.mxu0 %v1547
    %v1549 = vpop.f32.mrf.mxu0
    %v1550 = vadd.f32 %v1466, %v1549
    %v1551 = vand.u32 %v135, 4294901760
    %1552 = vmatmul.f32.gmra.mxu0 %v1551
    %v1553 = vpop.f32.mrf.mxu0
    %v1554 = vadd.f32 %v1472, %v1553
    %v1555 = vand.u32 %v138, 4294901760
    %1556 = vmatmul.f32.gmra.mxu0 %v1555
    %v1557 = vpop.f32.mrf.mxu0
    %v1558 = vadd.f32 %v1478, %v1557
    %v1559 = vand.u32 %v141, 4294901760
    %1560 = vmatmul.f32.gmra.mxu0 %v1559
    %v1561 = vpop.f32.mrf.mxu0
    %v1562 = vadd.f32 %v1484, %v1561
    %v1563 = vand.u32 %v144, 4294901760
    %1564 = vmatmul.f32.gmra.mxu0 %v1563
    %v1565 = vpop.f32.mrf.mxu0
    %v1566 = vadd.f32 %v1490, %v1565
    %v1567 = vand.u32 %v147, 4294901760
    %1568 = vmatmul.f32.gmra.mxu0 %v1567
    %v1569 = vpop.f32.mrf.mxu0
    %v1570 = vadd.f32 %v1496, %v1569
    %v1571 = vand.u32 %v150, 4294901760
    %1572 = vmatmul.f32.gmra.mxu0 %v1571
    %v1573 = vpop.f32.mrf.mxu0
    %v1574 = vadd.f32 %v1502, %v1573
    %v1575 = vand.u32 %v153, 4294901760
    %1576 = vmatmul.f32.gmra.mxu0 %v1575
    %v1577 = vpop.f32.mrf.mxu0
    %v1578 = vadd.f32 %v1508, %v1577
    %v1579 = vand.u32 %v156, 4294901760
    %1580 = vmatmul.f32.gmra.mxu0 %v1579
    %v1581 = vpop.f32.mrf.mxu0
    %v1582 = vadd.f32 %v1514, %v1581
    %1583 = vdwg.mxu0
    %1584 = vmatpush.msra.mxu0 0.0
    %1585 = vmatpush.msra.mxu0 0.0
    %1586 = vmatpush.msra.mxu0 0.0
    %1587 = vmatpush.msra.mxu0 0.0
    %1588 = vmatpush.msra.mxu0 0.0
    %1589 = vmatpush.msra.mxu0 0.0
    %1590 = vmatpush.msra.mxu0 0.0
    %1591 = vmatpush.msra.mxu0 0.0
    %1592 = vmatpush.msra.mxu0 0.0
    %1593 = vmatpush.msra.mxu0 0.0
    %1594 = vmatpush.msra.mxu0 0.0
    %1595 = vmatpush.msra.mxu0 0.0
    %1596 = vmatpush.msra.mxu0 0.0
    %1597 = vmatpush.msra.mxu0 0.0
    %1598 = vmatpush.msra.mxu0 0.0
    %v1599 = vand.u32 %v80, 4294901760
    %1600 = vmatpush.msra.mxu0 %v1599
    %v1601 = vand.u32 %v1152, 4294901760
    %1602 = vmatmul.f32.gmra.mxu0 %v1601
    %v1603 = vpop.f32.mrf.mxu0
    %v1604 = vadd.f32 %v1538, %v1603
    %v1605 = vand.u32 %v1155, 4294901760
    %1606 = vmatmul.f32.gmra.mxu0 %v1605
    %v1607 = vpop.f32.mrf.mxu0
    %v1608 = vadd.f32 %v1542, %v1607
    %v1609 = vand.u32 %v1158, 4294901760
    %1610 = vmatmul.f32.gmra.mxu0 %v1609
    %v1611 = vpop.f32.mrf.mxu0
    %v1612 = vadd.f32 %v1546, %v1611
    %v1613 = vand.u32 %v1161, 4294901760
    %1614 = vmatmul.f32.gmra.mxu0 %v1613
    %v1615 = vpop.f32.mrf.mxu0
    %v1616 = vadd.f32 %v1550, %v1615
    %v1617 = vand.u32 %v135, 4294901760
    %1618 = vmatmul.f32.gmra.mxu0 %v1617
    %v1619 = vpop.f32.mrf.mxu0
    %v1620 = vadd.f32 %v1554, %v1619
    %v1621 = vand.u32 %v138, 4294901760
    %1622 = vmatmul.f32.gmra.mxu0 %v1621
    %v1623 = vpop.f32.mrf.mxu0
    %v1624 = vadd.f32 %v1558, %v1623
    %v1625 = vand.u32 %v141, 4294901760
    %1626 = vmatmul.f32.gmra.mxu0 %v1625
    %v1627 = vpop.f32.mrf.mxu0
    %v1628 = vadd.f32 %v1562, %v1627
    %v1629 = vand.u32 %v144, 4294901760
    %1630 = vmatmul.f32.gmra.mxu0 %v1629
    %v1631 = vpop.f32.mrf.mxu0
    %v1632 = vadd.f32 %v1566, %v1631
    %v1633 = vand.u32 %v147, 4294901760
    %1634 = vmatmul.f32.gmra.mxu0 %v1633
    %v1635 = vpop.f32.mrf.mxu0
    %v1636 = vadd.f32 %v1570, %v1635
    %v1637 = vand.u32 %v150, 4294901760
    %1638 = vmatmul.f32.gmra.mxu0 %v1637
    %v1639 = vpop.f32.mrf.mxu0
    %v1640 = vadd.f32 %v1574, %v1639
    %v1641 = vand.u32 %v153, 4294901760
    %1642 = vmatmul.f32.gmra.mxu0 %v1641
    %v1643 = vpop.f32.mrf.mxu0
    %v1644 = vadd.f32 %v1578, %v1643
    %v1645 = vand.u32 %v156, 4294901760
    %1646 = vmatmul.f32.gmra.mxu0 %v1645
    %v1647 = vpop.f32.mrf.mxu0
    %v1648 = vadd.f32 %v1582, %v1647
    %1649 = vdwg.mxu0
    %v1650 = vmax.f32 %v1604, 0.0
    %v1651 = vmax.f32 %v1608, 0.0
    %v1652 = vmax.f32 %v1612, 0.0
    %v1653 = vmax.f32 %v1616, 0.0
    %v1654 = vmax.f32 %v1620, 0.0
    %v1655 = vmax.f32 %v1624, 0.0
    %v1656 = vmax.f32 %v1628, 0.0
    %v1657 = vmax.f32 %v1632, 0.0
    %v1658 = vmax.f32 %v1636, 0.0
    %v1659 = vmax.f32 %v1640, 0.0
    %v1660 = vmax.f32 %v1644, 0.0
    %v1661 = vmax.f32 %v1648, 0.0
    %vm1662 = vcmask 7168
    %v1663 = vsel %vm1662, %v1650, 0.0
    %v1664 = vsel %vm1662, %v1651, 0.0
    %v1665 = vadd.f32 %v1663, %v1664
    %v1666 = vsel %vm1662, %v1652, 0.0
    %v1667 = vadd.f32 %v1665, %v1666
    %v1668 = vsel %vm1662, %v1653, 0.0
    %v1669 = vadd.f32 %v1667, %v1668
    %v1670 = vrot.slane %v1669, 4
    %v1671 = vadd.f32 %v1669, %v1670
    %v1672 = vrot.slane %v1671, 2
    %v1673 = vadd.f32 %v1671, %v1672
    %v1674 = vrot.slane %v1673, 1
    %v1675 = vadd.f32 %v1673, %v1674
    %v1676 = vmul.f32 %v1675, %v924
    %v1677 = vsub.f32 %v1650, %v1676
    %v1678 = vsub.f32 %v1651, %v1676
    %v1679 = vsub.f32 %v1652, %v1676
    %v1680 = vsub.f32 %v1653, %v1676
    %v1681 = vmul.f32 %v1677, %v1677
    %v1682 = vmul.f32 %v1678, %v1678
    %v1683 = vmul.f32 %v1679, %v1679
    %v1684 = vmul.f32 %v1680, %v1680
    %v1685 = vsel %vm1662, %v1681, 0.0
    %v1686 = vsel %vm1662, %v1682, 0.0
    %v1687 = vadd.f32 %v1685, %v1686
    %v1688 = vsel %vm1662, %v1683, 0.0
    %v1689 = vadd.f32 %v1687, %v1688
    %v1690 = vsel %vm1662, %v1684, 0.0
    %v1691 = vadd.f32 %v1689, %v1690
    %v1692 = vrot.slane %v1691, 4
    %v1693 = vadd.f32 %v1691, %v1692
    %v1694 = vrot.slane %v1693, 2
    %v1695 = vadd.f32 %v1693, %v1694
    %v1696 = vrot.slane %v1695, 1
    %v1697 = vadd.f32 %v1695, %v1696
    %v1698 = vmul.f32 %v1697, %v924
    %v1699 = vadd.f32 %v1698, 1e-05
    %v1700 = vrsqrt.pop %v1699
    %v1701 = vmul.f32 %v1700, %v1699
    %v1702 = vmul.f32 %v1701, %v1700
    %v1703 = vmul.f32 0.5, %v1702
    %v1704 = vsub.f32 1.5, %v1703
    %v1705 = vmul.f32 %v1700, %v1704
    %vm1706 = vweird.f32 %v1699
    %vm1707 = vweird.f32 %v1700
    %vm1708 = vmor %vm1706, %vm1707
    %v1709 = vsel %vm1708, %v1700, %v1705
    %v1710 = vmul.f32 %v1677, %v1709
    %v1711 = vmul.f32 %v1678, %v1709
    %v1712 = vmul.f32 %v1679, %v1709
    %v1713 = vmul.f32 %v1680, %v1709
    %v1714 = vmul.f32 %v1710, %v55
    %v1715 = vmul.f32 %v1711, %v56
    %v1716 = vmul.f32 %v1712, %v57
    %v1717 = vmul.f32 %v1713, %v58
    %v1718 = vadd.f32 %v1714, %v59
    %v1719 = vadd.f32 %v1715, %v60
    %v1720 = vadd.f32 %v1716, %v61
    %v1721 = vadd.f32 %v1717, %v62
    %v1722 = vsel %vm1662, %v1654, 0.0
    %v1723 = vsel %vm1662, %v1655, 0.0
    %v1724 = vadd.f32 %v1722, %v1723
    %v1725 = vsel %vm1662, %v1656, 0.0
    %v1726 = vadd.f32 %v1724, %v1725
    %v1727 = vsel %vm1662, %v1657, 0.0
    %v1728 = vadd.f32 %v1726, %v1727
    %v1729 = vrot.slane %v1728, 4
    %v1730 = vadd.f32 %v1728, %v1729
    %v1731 = vrot.slane %v1730, 2
    %v1732 = vadd.f32 %v1730, %v1731
    %v1733 = vrot.slane %v1732, 1
    %v1734 = vadd.f32 %v1732, %v1733
    %v1735 = vmul.f32 %v1734, %v924
    %v1736 = vsub.f32 %v1654, %v1735
    %v1737 = vsub.f32 %v1655, %v1735
    %v1738 = vsub.f32 %v1656, %v1735
    %v1739 = vsub.f32 %v1657, %v1735
    %v1740 = vmul.f32 %v1736, %v1736
    %v1741 = vmul.f32 %v1737, %v1737
    %v1742 = vmul.f32 %v1738, %v1738
    %v1743 = vmul.f32 %v1739, %v1739
    %v1744 = vsel %vm1662, %v1740, 0.0
    %v1745 = vsel %vm1662, %v1741, 0.0
    %v1746 = vadd.f32 %v1744, %v1745
    %v1747 = vsel %vm1662, %v1742, 0.0
    %v1748 = vadd.f32 %v1746, %v1747
    %v1749 = vsel %vm1662, %v1743, 0.0
    %v1750 = vadd.f32 %v1748, %v1749
    %v1751 = vrot.slane %v1750, 4
    %v1752 = vadd.f32 %v1750, %v1751
    %v1753 = vrot.slane %v1752, 2
    %v1754 = vadd.f32 %v1752, %v1753
    %v1755 = vrot.slane %v1754, 1
    %v1756 = vadd.f32 %v1754, %v1755
    %v1757 = vmul.f32 %v1756, %v924
    %v1758 = vadd.f32 %v1757, 1e-05
    %v1759 = vrsqrt.pop %v1758
    %v1760 = vmul.f32 %v1759, %v1758
    %v1761 = vmul.f32 %v1760, %v1759
    %v1762 = vmul.f32 0.5, %v1761
    %v1763 = vsub.f32 1.5, %v1762
    %v1764 = vmul.f32 %v1759, %v1763
    %vm1765 = vweird.f32 %v1758
    %vm1766 = vweird.f32 %v1759
    %vm1767 = vmor %vm1765, %vm1766
    %v1768 = vsel %vm1767, %v1759, %v1764
    %v1769 = vmul.f32 %v1736, %v1768
    %v1770 = vmul.f32 %v1737, %v1768
    %v1771 = vmul.f32 %v1738, %v1768
    %v1772 = vmul.f32 %v1739, %v1768
    %v1773 = vmul.f32 %v1769, %v55
    %v1774 = vmul.f32 %v1770, %v56
    %v1775 = vmul.f32 %v1771, %v57
    %v1776 = vmul.f32 %v1772, %v58
    %v1777 = vadd.f32 %v1773, %v59
    %v1778 = vadd.f32 %v1774, %v60
    %v1779 = vadd.f32 %v1775, %v61
    %v1780 = vadd.f32 %v1776, %v62
    %v1781 = vsel %vm1662, %v1658, 0.0
    %v1782 = vsel %vm1662, %v1659, 0.0
    %v1783 = vadd.f32 %v1781, %v1782
    %v1784 = vsel %vm1662, %v1660, 0.0
    %v1785 = vadd.f32 %v1783, %v1784
    %v1786 = vsel %vm1662, %v1661, 0.0
    %v1787 = vadd.f32 %v1785, %v1786
    %v1788 = vrot.slane %v1787, 4
    %v1789 = vadd.f32 %v1787, %v1788
    %v1790 = vrot.slane %v1789, 2
    %v1791 = vadd.f32 %v1789, %v1790
    %v1792 = vrot.slane %v1791, 1
    %v1793 = vadd.f32 %v1791, %v1792
    %v1794 = vmul.f32 %v1793, %v924
    %v1795 = vsub.f32 %v1658, %v1794
    %v1796 = vsub.f32 %v1659, %v1794
    %v1797 = vsub.f32 %v1660, %v1794
    %v1798 = vsub.f32 %v1661, %v1794
    %v1799 = vmul.f32 %v1795, %v1795
    %v1800 = vmul.f32 %v1796, %v1796
    %v1801 = vmul.f32 %v1797, %v1797
    %v1802 = vmul.f32 %v1798, %v1798
    %v1803 = vsel %vm1662, %v1799, 0.0
    %v1804 = vsel %vm1662, %v1800, 0.0
    %v1805 = vadd.f32 %v1803, %v1804
    %v1806 = vsel %vm1662, %v1801, 0.0
    %v1807 = vadd.f32 %v1805, %v1806
    %v1808 = vsel %vm1662, %v1802, 0.0
    %v1809 = vadd.f32 %v1807, %v1808
    %v1810 = vrot.slane %v1809, 4
    %v1811 = vadd.f32 %v1809, %v1810
    %v1812 = vrot.slane %v1811, 2
    %v1813 = vadd.f32 %v1811, %v1812
    %v1814 = vrot.slane %v1813, 1
    %v1815 = vadd.f32 %v1813, %v1814
    %v1816 = vmul.f32 %v1815, %v924
    %v1817 = vadd.f32 %v1816, 1e-05
    %v1818 = vrsqrt.pop %v1817
    %v1819 = vmul.f32 %v1818, %v1817
    %v1820 = vmul.f32 %v1819, %v1818
    %v1821 = vmul.f32 0.5, %v1820
    %v1822 = vsub.f32 1.5, %v1821
    %v1823 = vmul.f32 %v1818, %v1822
    %vm1824 = vweird.f32 %v1817
    %vm1825 = vweird.f32 %v1818
    %vm1826 = vmor %vm1824, %vm1825
    %v1827 = vsel %vm1826, %v1818, %v1823
    %v1828 = vmul.f32 %v1795, %v1827
    %v1829 = vmul.f32 %v1796, %v1827
    %v1830 = vmul.f32 %v1797, %v1827
    %v1831 = vmul.f32 %v1798, %v1827
    %v1832 = vmul.f32 %v1828, %v55
    %v1833 = vmul.f32 %v1829, %v56
    %v1834 = vmul.f32 %v1830, %v57
    %v1835 = vmul.f32 %v1831, %v58
    %v1836 = vadd.f32 %v1832, %v59
    %v1837 = vadd.f32 %v1833, %v60
    %v1838 = vadd.f32 %v1834, %v61
    %v1839 = vadd.f32 %v1835, %v62
    %v1840 = vmul.f32 %v1718, %v1777
    %v1841 = vmul.f32 %v1719, %v1778
    %v1842 = vmul.f32 %v1720, %v1779
    %v1843 = vmul.f32 %v1721, %v1780
    %v1844 = vsel %vm1662, %v1840, 0.0
    %v1845 = vsel %vm1662, %v1841, 0.0
    %v1846 = vadd.f32 %v1844, %v1845
    %v1847 = vsel %vm1662, %v1842, 0.0
    %v1848 = vadd.f32 %v1846, %v1847
    %v1849 = vsel %vm1662, %v1843, 0.0
    %v1850 = vadd.f32 %v1848, %v1849
    %v1851 = vrot.slane %v1850, 4
    %v1852 = vadd.f32 %v1850, %v1851
    %v1853 = vrot.slane %v1852, 2
    %v1854 = vadd.f32 %v1852, %v1853
    %v1855 = vrot.slane %v1854, 1
    %v1856 = vadd.f32 %v1854, %v1855
    %v1857 = vmul.f32 %v1856, 0.17677669
    %1859 = vset.pattern.permute.xlu0 0
    %1860 = vperm.xlu0 %1859, %v1718
    %v1861 = vpop.permute.xlu0 %1860
    %1864 = vset.pattern.permute.xlu0 0
    %1865 = vperm.xlu0 %1864, %v1719
    %v1866 = vpop.permute.xlu0 %1865
    %1869 = vset.pattern.permute.xlu0 0
    %1870 = vperm.xlu0 %1869, %v1720
    %v1871 = vpop.permute.xlu0 %1870
    %1874 = vset.pattern.permute.xlu0 0
    %1875 = vperm.xlu0 %1874, %v1721
    %v1876 = vpop.permute.xlu0 %1875
    %v1878 = vmul.f32 %v1041, %v1861
    %v1879 = vmul.f32 %v1042, %v1861
    %v1880 = vmul.f32 %v1043, %v1866
    %v1881 = vmul.f32 %v1044, %v1866
    %v1882 = vmul.f32 %v1045, %v1871
    %v1883 = vmul.f32 %v1046, %v1871
    %v1884 = vmul.f32 %v1047, %v1876
    %v1885 = vmul.f32 %v1048, %v1876
    %v1886 = vadd.f32 %v1878, %v1880
    %v1887 = vadd.f32 %v1886, %v1882
    %v1888 = vadd.f32 %v1887, %v1884
    %v1889 = vrot.slane %v1888, 4
    %v1890 = vadd.f32 %v1888, %v1889
    %v1891 = vrot.slane %v1890, 2
    %v1892 = vadd.f32 %v1890, %v1891
    %v1893 = vrot.slane %v1892, 1
    %v1894 = vadd.f32 %v1892, %v1893
    %v1895 = vadd.f32 %v1879, %v1881
    %v1896 = vadd.f32 %v1895, %v1883
    %v1897 = vadd.f32 %v1896, %v1885
    %v1898 = vrot.slane %v1897, 4
    %v1899 = vadd.f32 %v1897, %v1898
    %v1900 = vrot.slane %v1899, 2
    %v1901 = vadd.f32 %v1899, %v1900
    %v1902 = vrot.slane %v1901, 1
    %v1903 = vadd.f32 %v1901, %v1902
    %v1904 = vmul.f32 %v1894, 0.17677669
    %v1905 = vmul.f32 %v1903, 0.17677669
    %v1906 = vmax.f32 %v1904, %v1905
    %1907 = vmax.xlane.f32.xlu0 %v1906
    %v1908 = vpop.xlane.xlu0 %1907
    %v1909 = vmax.f32 %v1908, %v1857
    %v1910 = vsub.f32 %v1857, %v1909
    %v1911 = vmul.f32 %v1910, 1.442695
    %v1912 = vpow.pop %v1911
    %1914 = vset.pattern.permute.xlu0 0
    %1915 = vperm.xlu0 %1914, %v1909
    %v1916 = vpop.permute.xlu0 %1915
    %v1918 = vsub.f32 %v1904, %v1916
    %v1919 = vsub.f32 %v1905, %v1916
    %v1920 = vmul.f32 %v1918, 1.442695
    %v1921 = vpow.pop %v1920
    %v1922 = vmul.f32 %v1919, 1.442695
    %v1923 = vpow.pop %v1922
    %v1924 = vadd.f32 %v1921, %v1923
    %1925 = vadd.xlane.f32.xlu0 %v1924
    %v1926 = vpop.xlane.xlu0 %1925
    %v1927 = vadd.f32 %v1912, %v1926
    %v1928 = vrcp.pop %v1927
    %v1929 = vmul.f32 %v1927, %v1928
    %v1930 = vsub.f32 1.0, %v1929
    %v1931 = vmul.f32 %v1928, %v1930
    %v1932 = vadd.f32 %v1928, %v1931
    %vm1933 = vweird.f32 %v1927
    %vm1934 = vweird.f32 %v1928
    %vm1935 = vmor %vm1933, %vm1934
    %v1936 = vsel %vm1935, %v1928, %v1932
    %v1937 = vand.u32 2147483647, %v1927
    %vm1938 = vcmp.eq.f32.partialorder %v1937, 8.507059e+37
    %v1939 = vand.u32 %v1927, 2147483648
    %v1940 = vor.u32 1.1754944e-38, %v1939
    %v1941 = vsel %vm1938, %v1940, %v1936
    %v1942 = vmul.f32 1.0, %v1941
    %1944 = vset.pattern.permute.xlu0 0
    %1945 = vperm.xlu0 %1944, %v1942
    %v1946 = vpop.permute.xlu0 %1945
    %v1948 = vmul.f32 %v1921, %v1946
    %v1949 = vmul.f32 %v1923, %v1946
    %v1950 = vmul.f32 %v1912, %v1942
    %v1951 = vmul.f32 %v1950, %v1836
    %v1952 = vmul.f32 %v1950, %v1837
    %v1953 = vmul.f32 %v1950, %v1838
    %v1954 = vmul.f32 %v1950, %v1839
    %v1955 = vmul.f32 %v1143, %v1948
    %v1956 = vmul.f32 %v1144, %v1949
    %v1957 = vmul.f32 %v1145, %v1948
    %v1958 = vmul.f32 %v1146, %v1949
    %v1959 = vmul.f32 %v1147, %v1948
    %v1960 = vmul.f32 %v1148, %v1949
    %v1961 = vmul.f32 %v1149, %v1948
    %v1962 = vmul.f32 %v1150, %v1949
    %v1963 = vadd.f32 %v1955, %v1956
    %1964 = vadd.xlane.f32.xlu0 %v1963
    %v1965 = vpop.xlane.xlu0 %1964
    %v1966 = vadd.f32 %v1957, %v1958
    %1967 = vadd.xlane.f32.xlu0 %v1966
    %v1968 = vpop.xlane.xlu0 %1967
    %v1969 = vadd.f32 %v1959, %v1960
    %1970 = vadd.xlane.f32.xlu0 %v1969
    %v1971 = vpop.xlane.xlu0 %1970
    %v1972 = vadd.f32 %v1961, %v1962
    %1973 = vadd.xlane.f32.xlu0 %v1972
    %v1974 = vpop.xlane.xlu0 %1973
    %v1975 = vadd.f32 %v1951, %v1965
    %v1976 = vadd.f32 %v1952, %v1968
    %v1977 = vadd.f32 %v1953, %v1971
    %v1978 = vadd.f32 %v1954, %v1974
    %1980 = vset.pattern.permute.xlu0 0
    %1981 = vperm.xlu0 %1980, %v1975
    %v1982 = vpop.permute.xlu0 %1981
    %1985 = vset.pattern.permute.xlu0 0
    %1986 = vperm.xlu0 %1985, %v1976
    %v1987 = vpop.permute.xlu0 %1986
    %1990 = vset.pattern.permute.xlu0 0
    %1991 = vperm.xlu0 %1990, %v1977
    %v1992 = vpop.permute.xlu0 %1991
    %1995 = vset.pattern.permute.xlu0 0
    %1996 = vperm.xlu0 %1995, %v1978
    %v1997 = vpop.permute.xlu0 %1996
    %v1999 = vmul.f32 %v63, %v1982
    %v2000 = vmul.f32 %v64, %v1987
    %v2001 = vmul.f32 %v65, %v1992
    %v2002 = vmul.f32 %v66, %v1997
    %v2003 = vsel %vm133, %v1999, 0.0
    %v2004 = vsel %vm133, %v2000, 0.0
    %v2005 = vadd.f32 %v2003, %v2004
    %v2006 = vsel %vm133, %v2001, 0.0
    %v2007 = vadd.f32 %v2005, %v2006
    %v2008 = vsel %vm133, %v2002, 0.0
    %v2009 = vadd.f32 %v2007, %v2008
    %v2010 = vrot.slane %v2009, 4
    %v2011 = vadd.f32 %v2009, %v2010
    %v2012 = vrot.slane %v2011, 2
    %v2013 = vadd.f32 %v2011, %v2012
    %v2014 = vrot.slane %v2013, 1
    %v2015 = vadd.f32 %v2013, %v2014
    %v2016 = vmul.f32 %v67, %v1948
    %v2017 = vmul.f32 %v68, %v1949
    %2018 = vst [vmem:[#allocation2] sm:$0xff] %v2016
    %2019 = vst [vmem:[#allocation2 + $0x8] sm:$0xff] %v2017
    %v2022 = vrot.slane %v1949, 7
    %vm2023 = vcmask 1040384
    %v2024 = vsel %vm2023, %v1948, %v2022
    %v2026 = vlaneseq
    %vm2027 = vcmp.ge.s32.totalorder %v2026, 0
    %vm2028 = vcmp.lt.s32.totalorder %v2026, 256
    %vm2029 = vmand %vm2027, %vm2028
    %2030 = vst.msk [vmem:[#allocation6] sm:$0x3] %vm2029, %v2024
    %vm2031 = vcmask 57344
    %2032 = vst.msk [vmem:[#allocation4] sm:$0x1] %vm2031, %v2015
    %s2033 = scalar_lea.vmem %s0, 16
    %v2034 = vld [vmem:[%s2033] sm:$0xff]
    %v2035 = vld [vmem:[%s2033 + $0x8] sm:$0xff]
    %s2036 = scalar_lea.vmem %s1, 1
    %v2037 = vld [vmem:[%s2036] sm:$0x1]
    %v2038 = vadd.f32 %v2034, %v2035
    %2039 = vadd.xlane.f32.xlu0 %v2038
    %v2040 = vpop.xlane.xlu0 %2039
    %v2041 = vmul.f32 %v2040, %v79
    %v2043 = vperm.slane %v2037, 0
    %v2045 = vmul.f32 %v43, %v2043
    %v2046 = vmul.f32 %v44, %v2043
    %v2047 = vmul.f32 %v45, %v2043
    %v2048 = vmul.f32 %v46, %v2043
    %v2049 = vmul.f32 %v47, %v2043
    %v2050 = vmul.f32 %v48, %v2043
    %v2051 = vmul.f32 %v49, %v2043
    %v2052 = vmul.f32 %v50, %v2043
    %v2053 = vmul.f32 %v51, %v2043
    %v2054 = vmul.f32 %v52, %v2043
    %v2055 = vmul.f32 %v53, %v2043
    %v2056 = vmul.f32 %v54, %v2043
    %v2057 = vsel %vm96, %v2045, 0.0
    %2058 = vadd.xlane.f32.xlu0 %v2057
    %v2059 = vpop.xlane.xlu0 %2058
    %v2060 = vsel %vm96, %v2046, 0.0
    %2061 = vadd.xlane.f32.xlu0 %v2060
    %v2062 = vpop.xlane.xlu0 %2061
    %v2063 = vsel %vm96, %v2047, 0.0
    %2064 = vadd.xlane.f32.xlu0 %v2063
    %v2065 = vpop.xlane.xlu0 %2064
    %v2066 = vsel %vm96, %v2048, 0.0
    %2067 = vadd.xlane.f32.xlu0 %v2066
    %v2068 = vpop.xlane.xlu0 %2067
    %v2069 = vsel %vm96, %v2049, 0.0
    %2070 = vadd.xlane.f32.xlu0 %v2069
    %v2071 = vpop.xlane.xlu0 %2070
    %v2072 = vsel %vm96, %v2050, 0.0
    %2073 = vadd.xlane.f32.xlu0 %v2072
    %v2074 = vpop.xlane.xlu0 %2073
    %v2075 = vsel %vm96, %v2051, 0.0
    %2076 = vadd.xlane.f32.xlu0 %v2075
    %v2077 = vpop.xlane.xlu0 %2076
    %v2078 = vsel %vm96, %v2052, 0.0
    %2079 = vadd.xlane.f32.xlu0 %v2078
    %v2080 = vpop.xlane.xlu0 %2079
    %v2081 = vsel %vm96, %v2053, 0.0
    %2082 = vadd.xlane.f32.xlu0 %v2081
    %v2083 = vpop.xlane.xlu0 %2082
    %v2084 = vsel %vm96, %v2054, 0.0
    %2085 = vadd.xlane.f32.xlu0 %v2084
    %v2086 = vpop.xlane.xlu0 %2085
    %v2087 = vsel %vm96, %v2055, 0.0
    %2088 = vadd.xlane.f32.xlu0 %v2087
    %v2089 = vpop.xlane.xlu0 %2088
    %v2090 = vsel %vm96, %v2056, 0.0
    %2091 = vadd.xlane.f32.xlu0 %v2090
    %v2092 = vpop.xlane.xlu0 %2091
    %2093 = vmatpush.msra.mxu0 0.0
    %2094 = vmatpush.msra.mxu0 0.0
    %2095 = vmatpush.msra.mxu0 0.0
    %2096 = vmatpush.msra.mxu0 0.0
    %2097 = vmatpush.msra.mxu0 0.0
    %2098 = vmatpush.msra.mxu0 0.0
    %2099 = vmatpush.msra.mxu0 0.0
    %2100 = vmatpush.msra.mxu0 0.0
    %2101 = vmatpush.msra.mxu0 0.0
    %2102 = vmatpush.msra.mxu0 0.0
    %2103 = vmatpush.msra.mxu0 0.0
    %2104 = vmatpush.msra.mxu0 0.0
    %2105 = vmatpush.msra.mxu0 0.0
    %2106 = vmatpush.msra.mxu0 0.0
    %2107 = vmatpush.msra.mxu0 0.0
    %v2108 = vand.u32 %v2034, 4294901760
    %2109 = vmatpush.msra.mxu0 %v2108
    %v2110 = vand.u32 %v135, 4294901760
    %v2111 = vsub.f32 %v135, %v2110
    %v2112 = vand.u32 %v2111, 4294901760
    %v2113 = vsub.f32 %v2111, %v2112
    %v2114 = vand.u32 %v2113, 4294901760
    %2115 = vmatmul.f32.gmra.mxu0 %v2114
    %v2116 = vpop.f32.mrf.mxu0
    %v2117 = vadd.f32 %v2071, %v2116
    %v2118 = vand.u32 %v138, 4294901760
    %v2119 = vsub.f32 %v138, %v2118
    %v2120 = vand.u32 %v2119, 4294901760
    %v2121 = vsub.f32 %v2119, %v2120
    %v2122 = vand.u32 %v2121, 4294901760
    %2123 = vmatmul.f32.gmra.mxu0 %v2122
    %v2124 = vpop.f32.mrf.mxu0
    %v2125 = vadd.f32 %v2074, %v2124
    %v2126 = vand.u32 %v141, 4294901760
    %v2127 = vsub.f32 %v141, %v2126
    %v2128 = vand.u32 %v2127, 4294901760
    %v2129 = vsub.f32 %v2127, %v2128
    %v2130 = vand.u32 %v2129, 4294901760
    %2131 = vmatmul.f32.gmra.mxu0 %v2130
    %v2132 = vpop.f32.mrf.mxu0
    %v2133 = vadd.f32 %v2077, %v2132
    %v2134 = vand.u32 %v144, 4294901760
    %v2135 = vsub.f32 %v144, %v2134
    %v2136 = vand.u32 %v2135, 4294901760
    %v2137 = vsub.f32 %v2135, %v2136
    %v2138 = vand.u32 %v2137, 4294901760
    %2139 = vmatmul.f32.gmra.mxu0 %v2138
    %v2140 = vpop.f32.mrf.mxu0
    %v2141 = vadd.f32 %v2080, %v2140
    %v2142 = vand.u32 %v147, 4294901760
    %v2143 = vsub.f32 %v147, %v2142
    %v2144 = vand.u32 %v2143, 4294901760
    %v2145 = vsub.f32 %v2143, %v2144
    %v2146 = vand.u32 %v2145, 4294901760
    %2147 = vmatmul.f32.gmra.mxu0 %v2146
    %v2148 = vpop.f32.mrf.mxu0
    %v2149 = vadd.f32 %v2083, %v2148
    %v2150 = vand.u32 %v150, 4294901760
    %v2151 = vsub.f32 %v150, %v2150
    %v2152 = vand.u32 %v2151, 4294901760
    %v2153 = vsub.f32 %v2151, %v2152
    %v2154 = vand.u32 %v2153, 4294901760
    %2155 = vmatmul.f32.gmra.mxu0 %v2154
    %v2156 = vpop.f32.mrf.mxu0
    %v2157 = vadd.f32 %v2086, %v2156
    %v2158 = vand.u32 %v153, 4294901760
    %v2159 = vsub.f32 %v153, %v2158
    %v2160 = vand.u32 %v2159, 4294901760
    %v2161 = vsub.f32 %v2159, %v2160
    %v2162 = vand.u32 %v2161, 4294901760
    %2163 = vmatmul.f32.gmra.mxu0 %v2162
    %v2164 = vpop.f32.mrf.mxu0
    %v2165 = vadd.f32 %v2089, %v2164
    %v2166 = vand.u32 %v156, 4294901760
    %v2167 = vsub.f32 %v156, %v2166
    %v2168 = vand.u32 %v2167, 4294901760
    %v2169 = vsub.f32 %v2167, %v2168
    %v2170 = vand.u32 %v2169, 4294901760
    %2171 = vmatmul.f32.gmra.mxu0 %v2170
    %v2172 = vpop.f32.mrf.mxu0
    %v2173 = vadd.f32 %v2092, %v2172
    %2174 = vdwg.mxu0
    %2175 = vmatpush.msra.mxu0 0.0
    %2176 = vmatpush.msra.mxu0 0.0
    %2177 = vmatpush.msra.mxu0 0.0
    %2178 = vmatpush.msra.mxu0 0.0
    %2179 = vmatpush.msra.mxu0 0.0
    %2180 = vmatpush.msra.mxu0 0.0
    %2181 = vmatpush.msra.mxu0 0.0
    %2182 = vmatpush.msra.mxu0 0.0
    %2183 = vmatpush.msra.mxu0 0.0
    %2184 = vmatpush.msra.mxu0 0.0
    %2185 = vmatpush.msra.mxu0 0.0
    %2186 = vmatpush.msra.mxu0 0.0
    %2187 = vmatpush.msra.mxu0 0.0
    %2188 = vmatpush.msra.mxu0 0.0
    %2189 = vmatpush.msra.mxu0 0.0
    %v2190 = vand.u32 %v2034, 4294901760
    %v2191 = vsub.f32 %v2034, %v2190
    %v2192 = vand.u32 %v2191, 4294901760
    %v2193 = vsub.f32 %v2191, %v2192
    %v2194 = vand.u32 %v2193, 4294901760
    %2195 = vmatpush.msra.mxu0 %v2194
    %v2196 = vand.u32 %v135, 4294901760
    %2197 = vmatmul.f32.gmra.mxu0 %v2196
    %v2198 = vpop.f32.mrf.mxu0
    %v2199 = vadd.f32 %v2117, %v2198
    %v2200 = vand.u32 %v138, 4294901760
    %2201 = vmatmul.f32.gmra.mxu0 %v2200
    %v2202 = vpop.f32.mrf.mxu0
    %v2203 = vadd.f32 %v2125, %v2202
    %v2204 = vand.u32 %v141, 4294901760
    %2205 = vmatmul.f32.gmra.mxu0 %v2204
    %v2206 = vpop.f32.mrf.mxu0
    %v2207 = vadd.f32 %v2133, %v2206
    %v2208 = vand.u32 %v144, 4294901760
    %2209 = vmatmul.f32.gmra.mxu0 %v2208
    %v2210 = vpop.f32.mrf.mxu0
    %v2211 = vadd.f32 %v2141, %v2210
    %v2212 = vand.u32 %v147, 4294901760
    %2213 = vmatmul.f32.gmra.mxu0 %v2212
    %v2214 = vpop.f32.mrf.mxu0
    %v2215 = vadd.f32 %v2149, %v2214
    %v2216 = vand.u32 %v150, 4294901760
    %2217 = vmatmul.f32.gmra.mxu0 %v2216
    %v2218 = vpop.f32.mrf.mxu0
    %v2219 = vadd.f32 %v2157, %v2218
    %v2220 = vand.u32 %v153, 4294901760
    %2221 = vmatmul.f32.gmra.mxu0 %v2220
    %v2222 = vpop.f32.mrf.mxu0
    %v2223 = vadd.f32 %v2165, %v2222
    %v2224 = vand.u32 %v156, 4294901760
    %2225 = vmatmul.f32.gmra.mxu0 %v2224
    %v2226 = vpop.f32.mrf.mxu0
    %v2227 = vadd.f32 %v2173, %v2226
    %2228 = vdwg.mxu0
    %2229 = vmatpush.msra.mxu0 0.0
    %2230 = vmatpush.msra.mxu0 0.0
    %2231 = vmatpush.msra.mxu0 0.0
    %2232 = vmatpush.msra.mxu0 0.0
    %2233 = vmatpush.msra.mxu0 0.0
    %2234 = vmatpush.msra.mxu0 0.0
    %2235 = vmatpush.msra.mxu0 0.0
    %2236 = vmatpush.msra.mxu0 0.0
    %2237 = vmatpush.msra.mxu0 0.0
    %2238 = vmatpush.msra.mxu0 0.0
    %2239 = vmatpush.msra.mxu0 0.0
    %2240 = vmatpush.msra.mxu0 0.0
    %2241 = vmatpush.msra.mxu0 0.0
    %2242 = vmatpush.msra.mxu0 0.0
    %2243 = vmatpush.msra.mxu0 0.0
    %v2244 = vand.u32 %v2034, 4294901760
    %v2245 = vsub.f32 %v2034, %v2244
    %2246 = vmatpush.msra.mxu0 %v2245
    %v2247 = vand.u32 %v135, 4294901760
    %v2248 = vsub.f32 %v135, %v2247
    %2249 = vmatmul.f32.gmra.mxu0 %v2248
    %v2250 = vpop.f32.mrf.mxu0
    %v2251 = vadd.f32 %v2199, %v2250
    %v2252 = vand.u32 %v138, 4294901760
    %v2253 = vsub.f32 %v138, %v2252
    %2254 = vmatmul.f32.gmra.mxu0 %v2253
    %v2255 = vpop.f32.mrf.mxu0
    %v2256 = vadd.f32 %v2203, %v2255
    %v2257 = vand.u32 %v141, 4294901760
    %v2258 = vsub.f32 %v141, %v2257
    %2259 = vmatmul.f32.gmra.mxu0 %v2258
    %v2260 = vpop.f32.mrf.mxu0
    %v2261 = vadd.f32 %v2207, %v2260
    %v2262 = vand.u32 %v144, 4294901760
    %v2263 = vsub.f32 %v144, %v2262
    %2264 = vmatmul.f32.gmra.mxu0 %v2263
    %v2265 = vpop.f32.mrf.mxu0
    %v2266 = vadd.f32 %v2211, %v2265
    %v2267 = vand.u32 %v147, 4294901760
    %v2268 = vsub.f32 %v147, %v2267
    %2269 = vmatmul.f32.gmra.mxu0 %v2268
    %v2270 = vpop.f32.mrf.mxu0
    %v2271 = vadd.f32 %v2215, %v2270
    %v2272 = vand.u32 %v150, 4294901760
    %v2273 = vsub.f32 %v150, %v2272
    %2274 = vmatmul.f32.gmra.mxu0 %v2273
    %v2275 = vpop.f32.mrf.mxu0
    %v2276 = vadd.f32 %v2219, %v2275
    %v2277 = vand.u32 %v153, 4294901760
    %v2278 = vsub.f32 %v153, %v2277
    %2279 = vmatmul.f32.gmra.mxu0 %v2278
    %v2280 = vpop.f32.mrf.mxu0
    %v2281 = vadd.f32 %v2223, %v2280
    %v2282 = vand.u32 %v156, 4294901760
    %v2283 = vsub.f32 %v156, %v2282
    %2284 = vmatmul.f32.gmra.mxu0 %v2283
    %v2285 = vpop.f32.mrf.mxu0
    %v2286 = vadd.f32 %v2227, %v2285
    %2287 = vdwg.mxu0
    %2288 = vmatpush.msra.mxu0 0.0
    %2289 = vmatpush.msra.mxu0 0.0
    %2290 = vmatpush.msra.mxu0 0.0
    %2291 = vmatpush.msra.mxu0 0.0
    %2292 = vmatpush.msra.mxu0 0.0
    %2293 = vmatpush.msra.mxu0 0.0
    %2294 = vmatpush.msra.mxu0 0.0
    %2295 = vmatpush.msra.mxu0 0.0
    %2296 = vmatpush.msra.mxu0 0.0
    %2297 = vmatpush.msra.mxu0 0.0
    %2298 = vmatpush.msra.mxu0 0.0
    %2299 = vmatpush.msra.mxu0 0.0
    %2300 = vmatpush.msra.mxu0 0.0
    %2301 = vmatpush.msra.mxu0 0.0
    %2302 = vmatpush.msra.mxu0 0.0
    %v2303 = vand.u32 %v2034, 4294901760
    %2304 = vmatpush.msra.mxu0 %v2303
    %v2305 = vand.u32 %v135, 4294901760
    %v2306 = vsub.f32 %v135, %v2305
    %v2307 = vand.u32 %v2306, 4294901760
    %2308 = vmatmul.f32.gmra.mxu0 %v2307
    %v2309 = vpop.f32.mrf.mxu0
    %v2310 = vadd.f32 %v2251, %v2309
    %v2311 = vand.u32 %v138, 4294901760
    %v2312 = vsub.f32 %v138, %v2311
    %v2313 = vand.u32 %v2312, 4294901760
    %2314 = vmatmul.f32.gmra.mxu0 %v2313
    %v2315 = vpop.f32.mrf.mxu0
    %v2316 = vadd.f32 %v2256, %v2315
    %v2317 = vand.u32 %v141, 4294901760
    %v2318 = vsub.f32 %v141, %v2317
    %v2319 = vand.u32 %v2318, 4294901760
    %2320 = vmatmul.f32.gmra.mxu0 %v2319
    %v2321 = vpop.f32.mrf.mxu0
    %v2322 = vadd.f32 %v2261, %v2321
    %v2323 = vand.u32 %v144, 4294901760
    %v2324 = vsub.f32 %v144, %v2323
    %v2325 = vand.u32 %v2324, 4294901760
    %2326 = vmatmul.f32.gmra.mxu0 %v2325
    %v2327 = vpop.f32.mrf.mxu0
    %v2328 = vadd.f32 %v2266, %v2327
    %v2329 = vand.u32 %v147, 4294901760
    %v2330 = vsub.f32 %v147, %v2329
    %v2331 = vand.u32 %v2330, 4294901760
    %2332 = vmatmul.f32.gmra.mxu0 %v2331
    %v2333 = vpop.f32.mrf.mxu0
    %v2334 = vadd.f32 %v2271, %v2333
    %v2335 = vand.u32 %v150, 4294901760
    %v2336 = vsub.f32 %v150, %v2335
    %v2337 = vand.u32 %v2336, 4294901760
    %2338 = vmatmul.f32.gmra.mxu0 %v2337
    %v2339 = vpop.f32.mrf.mxu0
    %v2340 = vadd.f32 %v2276, %v2339
    %v2341 = vand.u32 %v153, 4294901760
    %v2342 = vsub.f32 %v153, %v2341
    %v2343 = vand.u32 %v2342, 4294901760
    %2344 = vmatmul.f32.gmra.mxu0 %v2343
    %v2345 = vpop.f32.mrf.mxu0
    %v2346 = vadd.f32 %v2281, %v2345
    %v2347 = vand.u32 %v156, 4294901760
    %v2348 = vsub.f32 %v156, %v2347
    %v2349 = vand.u32 %v2348, 4294901760
    %2350 = vmatmul.f32.gmra.mxu0 %v2349
    %v2351 = vpop.f32.mrf.mxu0
    %v2352 = vadd.f32 %v2286, %v2351
    %2353 = vdwg.mxu0
    %2354 = vmatpush.msra.mxu0 0.0
    %2355 = vmatpush.msra.mxu0 0.0
    %2356 = vmatpush.msra.mxu0 0.0
    %2357 = vmatpush.msra.mxu0 0.0
    %2358 = vmatpush.msra.mxu0 0.0
    %2359 = vmatpush.msra.mxu0 0.0
    %2360 = vmatpush.msra.mxu0 0.0
    %2361 = vmatpush.msra.mxu0 0.0
    %2362 = vmatpush.msra.mxu0 0.0
    %2363 = vmatpush.msra.mxu0 0.0
    %2364 = vmatpush.msra.mxu0 0.0
    %2365 = vmatpush.msra.mxu0 0.0
    %2366 = vmatpush.msra.mxu0 0.0
    %2367 = vmatpush.msra.mxu0 0.0
    %2368 = vmatpush.msra.mxu0 0.0
    %v2369 = vand.u32 %v2034, 4294901760
    %v2370 = vsub.f32 %v2034, %v2369
    %v2371 = vand.u32 %v2370, 4294901760
    %2372 = vmatpush.msra.mxu0 %v2371
    %v2373 = vand.u32 %v135, 4294901760
    %2374 = vmatmul.f32.gmra.mxu0 %v2373
    %v2375 = vpop.f32.mrf.mxu0
    %v2376 = vadd.f32 %v2310, %v2375
    %v2377 = vand.u32 %v138, 4294901760
    %2378 = vmatmul.f32.gmra.mxu0 %v2377
    %v2379 = vpop.f32.mrf.mxu0
    %v2380 = vadd.f32 %v2316, %v2379
    %v2381 = vand.u32 %v141, 4294901760
    %2382 = vmatmul.f32.gmra.mxu0 %v2381
    %v2383 = vpop.f32.mrf.mxu0
    %v2384 = vadd.f32 %v2322, %v2383
    %v2385 = vand.u32 %v144, 4294901760
    %2386 = vmatmul.f32.gmra.mxu0 %v2385
    %v2387 = vpop.f32.mrf.mxu0
    %v2388 = vadd.f32 %v2328, %v2387
    %v2389 = vand.u32 %v147, 4294901760
    %2390 = vmatmul.f32.gmra.mxu0 %v2389
    %v2391 = vpop.f32.mrf.mxu0
    %v2392 = vadd.f32 %v2334, %v2391
    %v2393 = vand.u32 %v150, 4294901760
    %2394 = vmatmul.f32.gmra.mxu0 %v2393
    %v2395 = vpop.f32.mrf.mxu0
    %v2396 = vadd.f32 %v2340, %v2395
    %v2397 = vand.u32 %v153, 4294901760
    %2398 = vmatmul.f32.gmra.mxu0 %v2397
    %v2399 = vpop.f32.mrf.mxu0
    %v2400 = vadd.f32 %v2346, %v2399
    %v2401 = vand.u32 %v156, 4294901760
    %2402 = vmatmul.f32.gmra.mxu0 %v2401
    %v2403 = vpop.f32.mrf.mxu0
    %v2404 = vadd.f32 %v2352, %v2403
    %2405 = vdwg.mxu0
    %2406 = vmatpush.msra.mxu0 0.0
    %2407 = vmatpush.msra.mxu0 0.0
    %2408 = vmatpush.msra.mxu0 0.0
    %2409 = vmatpush.msra.mxu0 0.0
    %2410 = vmatpush.msra.mxu0 0.0
    %2411 = vmatpush.msra.mxu0 0.0
    %2412 = vmatpush.msra.mxu0 0.0
    %2413 = vmatpush.msra.mxu0 0.0
    %2414 = vmatpush.msra.mxu0 0.0
    %2415 = vmatpush.msra.mxu0 0.0
    %2416 = vmatpush.msra.mxu0 0.0
    %2417 = vmatpush.msra.mxu0 0.0
    %2418 = vmatpush.msra.mxu0 0.0
    %2419 = vmatpush.msra.mxu0 0.0
    %2420 = vmatpush.msra.mxu0 0.0
    %v2421 = vand.u32 %v2034, 4294901760
    %2422 = vmatpush.msra.mxu0 %v2421
    %v2423 = vand.u32 %v135, 4294901760
    %2424 = vmatmul.f32.gmra.mxu0 %v2423
    %v2425 = vpop.f32.mrf.mxu0
    %v2426 = vadd.f32 %v2376, %v2425
    %v2427 = vand.u32 %v138, 4294901760
    %2428 = vmatmul.f32.gmra.mxu0 %v2427
    %v2429 = vpop.f32.mrf.mxu0
    %v2430 = vadd.f32 %v2380, %v2429
    %v2431 = vand.u32 %v141, 4294901760
    %2432 = vmatmul.f32.gmra.mxu0 %v2431
    %v2433 = vpop.f32.mrf.mxu0
    %v2434 = vadd.f32 %v2384, %v2433
    %v2435 = vand.u32 %v144, 4294901760
    %2436 = vmatmul.f32.gmra.mxu0 %v2435
    %v2437 = vpop.f32.mrf.mxu0
    %v2438 = vadd.f32 %v2388, %v2437
    %v2439 = vand.u32 %v147, 4294901760
    %2440 = vmatmul.f32.gmra.mxu0 %v2439
    %v2441 = vpop.f32.mrf.mxu0
    %v2442 = vadd.f32 %v2392, %v2441
    %v2443 = vand.u32 %v150, 4294901760
    %2444 = vmatmul.f32.gmra.mxu0 %v2443
    %v2445 = vpop.f32.mrf.mxu0
    %v2446 = vadd.f32 %v2396, %v2445
    %v2447 = vand.u32 %v153, 4294901760
    %2448 = vmatmul.f32.gmra.mxu0 %v2447
    %v2449 = vpop.f32.mrf.mxu0
    %v2450 = vadd.f32 %v2400, %v2449
    %v2451 = vand.u32 %v156, 4294901760
    %2452 = vmatmul.f32.gmra.mxu0 %v2451
    %v2453 = vpop.f32.mrf.mxu0
    %v2454 = vadd.f32 %v2404, %v2453
    %2455 = vdwg.mxu0
    %2456 = vmatpush.msra.mxu0 0.0
    %2457 = vmatpush.msra.mxu0 0.0
    %2458 = vmatpush.msra.mxu0 0.0
    %2459 = vmatpush.msra.mxu0 0.0
    %2460 = vmatpush.msra.mxu0 0.0
    %2461 = vmatpush.msra.mxu0 0.0
    %2462 = vmatpush.msra.mxu0 0.0
    %2463 = vmatpush.msra.mxu0 0.0
    %2464 = vmatpush.msra.mxu0 0.0
    %2465 = vmatpush.msra.mxu0 0.0
    %2466 = vmatpush.msra.mxu0 0.0
    %2467 = vmatpush.msra.mxu0 0.0
    %2468 = vmatpush.msra.mxu0 0.0
    %2469 = vmatpush.msra.mxu0 0.0
    %2470 = vmatpush.msra.mxu0 0.0
    %v2471 = vand.u32 %v2035, 4294901760
    %2472 = vmatpush.msra.mxu0 %v2471
    %v2473 = vand.u32 %v135, 4294901760
    %v2474 = vsub.f32 %v135, %v2473
    %v2475 = vand.u32 %v2474, 4294901760
    %v2476 = vsub.f32 %v2474, %v2475
    %v2477 = vand.u32 %v2476, 4294901760
    %2478 = vmatmul.f32.gmra.mxu0 %v2477
    %v2479 = vpop.f32.mrf.mxu0
    %v2480 = vadd.f32 %v2071, %v2479
    %v2481 = vand.u32 %v138, 4294901760
    %v2482 = vsub.f32 %v138, %v2481
    %v2483 = vand.u32 %v2482, 4294901760
    %v2484 = vsub.f32 %v2482, %v2483
    %v2485 = vand.u32 %v2484, 4294901760
    %2486 = vmatmul.f32.gmra.mxu0 %v2485
    %v2487 = vpop.f32.mrf.mxu0
    %v2488 = vadd.f32 %v2074, %v2487
    %v2489 = vand.u32 %v141, 4294901760
    %v2490 = vsub.f32 %v141, %v2489
    %v2491 = vand.u32 %v2490, 4294901760
    %v2492 = vsub.f32 %v2490, %v2491
    %v2493 = vand.u32 %v2492, 4294901760
    %2494 = vmatmul.f32.gmra.mxu0 %v2493
    %v2495 = vpop.f32.mrf.mxu0
    %v2496 = vadd.f32 %v2077, %v2495
    %v2497 = vand.u32 %v144, 4294901760
    %v2498 = vsub.f32 %v144, %v2497
    %v2499 = vand.u32 %v2498, 4294901760
    %v2500 = vsub.f32 %v2498, %v2499
    %v2501 = vand.u32 %v2500, 4294901760
    %2502 = vmatmul.f32.gmra.mxu0 %v2501
    %v2503 = vpop.f32.mrf.mxu0
    %v2504 = vadd.f32 %v2080, %v2503
    %v2505 = vand.u32 %v147, 4294901760
    %v2506 = vsub.f32 %v147, %v2505
    %v2507 = vand.u32 %v2506, 4294901760
    %v2508 = vsub.f32 %v2506, %v2507
    %v2509 = vand.u32 %v2508, 4294901760
    %2510 = vmatmul.f32.gmra.mxu0 %v2509
    %v2511 = vpop.f32.mrf.mxu0
    %v2512 = vadd.f32 %v2083, %v2511
    %v2513 = vand.u32 %v150, 4294901760
    %v2514 = vsub.f32 %v150, %v2513
    %v2515 = vand.u32 %v2514, 4294901760
    %v2516 = vsub.f32 %v2514, %v2515
    %v2517 = vand.u32 %v2516, 4294901760
    %2518 = vmatmul.f32.gmra.mxu0 %v2517
    %v2519 = vpop.f32.mrf.mxu0
    %v2520 = vadd.f32 %v2086, %v2519
    %v2521 = vand.u32 %v153, 4294901760
    %v2522 = vsub.f32 %v153, %v2521
    %v2523 = vand.u32 %v2522, 4294901760
    %v2524 = vsub.f32 %v2522, %v2523
    %v2525 = vand.u32 %v2524, 4294901760
    %2526 = vmatmul.f32.gmra.mxu0 %v2525
    %v2527 = vpop.f32.mrf.mxu0
    %v2528 = vadd.f32 %v2089, %v2527
    %v2529 = vand.u32 %v156, 4294901760
    %v2530 = vsub.f32 %v156, %v2529
    %v2531 = vand.u32 %v2530, 4294901760
    %v2532 = vsub.f32 %v2530, %v2531
    %v2533 = vand.u32 %v2532, 4294901760
    %2534 = vmatmul.f32.gmra.mxu0 %v2533
    %v2535 = vpop.f32.mrf.mxu0
    %v2536 = vadd.f32 %v2092, %v2535
    %2537 = vdwg.mxu0
    %2538 = vmatpush.msra.mxu0 0.0
    %2539 = vmatpush.msra.mxu0 0.0
    %2540 = vmatpush.msra.mxu0 0.0
    %2541 = vmatpush.msra.mxu0 0.0
    %2542 = vmatpush.msra.mxu0 0.0
    %2543 = vmatpush.msra.mxu0 0.0
    %2544 = vmatpush.msra.mxu0 0.0
    %2545 = vmatpush.msra.mxu0 0.0
    %2546 = vmatpush.msra.mxu0 0.0
    %2547 = vmatpush.msra.mxu0 0.0
    %2548 = vmatpush.msra.mxu0 0.0
    %2549 = vmatpush.msra.mxu0 0.0
    %2550 = vmatpush.msra.mxu0 0.0
    %2551 = vmatpush.msra.mxu0 0.0
    %2552 = vmatpush.msra.mxu0 0.0
    %v2553 = vand.u32 %v2035, 4294901760
    %v2554 = vsub.f32 %v2035, %v2553
    %v2555 = vand.u32 %v2554, 4294901760
    %v2556 = vsub.f32 %v2554, %v2555
    %v2557 = vand.u32 %v2556, 4294901760
    %2558 = vmatpush.msra.mxu0 %v2557
    %v2559 = vand.u32 %v135, 4294901760
    %2560 = vmatmul.f32.gmra.mxu0 %v2559
    %v2561 = vpop.f32.mrf.mxu0
    %v2562 = vadd.f32 %v2480, %v2561
    %v2563 = vand.u32 %v138, 4294901760
    %2564 = vmatmul.f32.gmra.mxu0 %v2563
    %v2565 = vpop.f32.mrf.mxu0
    %v2566 = vadd.f32 %v2488, %v2565
    %v2567 = vand.u32 %v141, 4294901760
    %2568 = vmatmul.f32.gmra.mxu0 %v2567
    %v2569 = vpop.f32.mrf.mxu0
    %v2570 = vadd.f32 %v2496, %v2569
    %v2571 = vand.u32 %v144, 4294901760
    %2572 = vmatmul.f32.gmra.mxu0 %v2571
    %v2573 = vpop.f32.mrf.mxu0
    %v2574 = vadd.f32 %v2504, %v2573
    %v2575 = vand.u32 %v147, 4294901760
    %2576 = vmatmul.f32.gmra.mxu0 %v2575
    %v2577 = vpop.f32.mrf.mxu0
    %v2578 = vadd.f32 %v2512, %v2577
    %v2579 = vand.u32 %v150, 4294901760
    %2580 = vmatmul.f32.gmra.mxu0 %v2579
    %v2581 = vpop.f32.mrf.mxu0
    %v2582 = vadd.f32 %v2520, %v2581
    %v2583 = vand.u32 %v153, 4294901760
    %2584 = vmatmul.f32.gmra.mxu0 %v2583
    %v2585 = vpop.f32.mrf.mxu0
    %v2586 = vadd.f32 %v2528, %v2585
    %v2587 = vand.u32 %v156, 4294901760
    %2588 = vmatmul.f32.gmra.mxu0 %v2587
    %v2589 = vpop.f32.mrf.mxu0
    %v2590 = vadd.f32 %v2536, %v2589
    %2591 = vdwg.mxu0
    %2592 = vmatpush.msra.mxu0 0.0
    %2593 = vmatpush.msra.mxu0 0.0
    %2594 = vmatpush.msra.mxu0 0.0
    %2595 = vmatpush.msra.mxu0 0.0
    %2596 = vmatpush.msra.mxu0 0.0
    %2597 = vmatpush.msra.mxu0 0.0
    %2598 = vmatpush.msra.mxu0 0.0
    %2599 = vmatpush.msra.mxu0 0.0
    %2600 = vmatpush.msra.mxu0 0.0
    %2601 = vmatpush.msra.mxu0 0.0
    %2602 = vmatpush.msra.mxu0 0.0
    %2603 = vmatpush.msra.mxu0 0.0
    %2604 = vmatpush.msra.mxu0 0.0
    %2605 = vmatpush.msra.mxu0 0.0
    %2606 = vmatpush.msra.mxu0 0.0
    %v2607 = vand.u32 %v2035, 4294901760
    %v2608 = vsub.f32 %v2035, %v2607
    %2609 = vmatpush.msra.mxu0 %v2608
    %v2610 = vand.u32 %v135, 4294901760
    %v2611 = vsub.f32 %v135, %v2610
    %2612 = vmatmul.f32.gmra.mxu0 %v2611
    %v2613 = vpop.f32.mrf.mxu0
    %v2614 = vadd.f32 %v2562, %v2613
    %v2615 = vand.u32 %v138, 4294901760
    %v2616 = vsub.f32 %v138, %v2615
    %2617 = vmatmul.f32.gmra.mxu0 %v2616
    %v2618 = vpop.f32.mrf.mxu0
    %v2619 = vadd.f32 %v2566, %v2618
    %v2620 = vand.u32 %v141, 4294901760
    %v2621 = vsub.f32 %v141, %v2620
    %2622 = vmatmul.f32.gmra.mxu0 %v2621
    %v2623 = vpop.f32.mrf.mxu0
    %v2624 = vadd.f32 %v2570, %v2623
    %v2625 = vand.u32 %v144, 4294901760
    %v2626 = vsub.f32 %v144, %v2625
    %2627 = vmatmul.f32.gmra.mxu0 %v2626
    %v2628 = vpop.f32.mrf.mxu0
    %v2629 = vadd.f32 %v2574, %v2628
    %v2630 = vand.u32 %v147, 4294901760
    %v2631 = vsub.f32 %v147, %v2630
    %2632 = vmatmul.f32.gmra.mxu0 %v2631
    %v2633 = vpop.f32.mrf.mxu0
    %v2634 = vadd.f32 %v2578, %v2633
    %v2635 = vand.u32 %v150, 4294901760
    %v2636 = vsub.f32 %v150, %v2635
    %2637 = vmatmul.f32.gmra.mxu0 %v2636
    %v2638 = vpop.f32.mrf.mxu0
    %v2639 = vadd.f32 %v2582, %v2638
    %v2640 = vand.u32 %v153, 4294901760
    %v2641 = vsub.f32 %v153, %v2640
    %2642 = vmatmul.f32.gmra.mxu0 %v2641
    %v2643 = vpop.f32.mrf.mxu0
    %v2644 = vadd.f32 %v2586, %v2643
    %v2645 = vand.u32 %v156, 4294901760
    %v2646 = vsub.f32 %v156, %v2645
    %2647 = vmatmul.f32.gmra.mxu0 %v2646
    %v2648 = vpop.f32.mrf.mxu0
    %v2649 = vadd.f32 %v2590, %v2648
    %2650 = vdwg.mxu0
    %2651 = vmatpush.msra.mxu0 0.0
    %2652 = vmatpush.msra.mxu0 0.0
    %2653 = vmatpush.msra.mxu0 0.0
    %2654 = vmatpush.msra.mxu0 0.0
    %2655 = vmatpush.msra.mxu0 0.0
    %2656 = vmatpush.msra.mxu0 0.0
    %2657 = vmatpush.msra.mxu0 0.0
    %2658 = vmatpush.msra.mxu0 0.0
    %2659 = vmatpush.msra.mxu0 0.0
    %2660 = vmatpush.msra.mxu0 0.0
    %2661 = vmatpush.msra.mxu0 0.0
    %2662 = vmatpush.msra.mxu0 0.0
    %2663 = vmatpush.msra.mxu0 0.0
    %2664 = vmatpush.msra.mxu0 0.0
    %2665 = vmatpush.msra.mxu0 0.0
    %v2666 = vand.u32 %v2035, 4294901760
    %2667 = vmatpush.msra.mxu0 %v2666
    %v2668 = vand.u32 %v135, 4294901760
    %v2669 = vsub.f32 %v135, %v2668
    %v2670 = vand.u32 %v2669, 4294901760
    %2671 = vmatmul.f32.gmra.mxu0 %v2670
    %v2672 = vpop.f32.mrf.mxu0
    %v2673 = vadd.f32 %v2614, %v2672
    %v2674 = vand.u32 %v138, 4294901760
    %v2675 = vsub.f32 %v138, %v2674
    %v2676 = vand.u32 %v2675, 4294901760
    %2677 = vmatmul.f32.gmra.mxu0 %v2676
    %v2678 = vpop.f32.mrf.mxu0
    %v2679 = vadd.f32 %v2619, %v2678
    %v2680 = vand.u32 %v141, 4294901760
    %v2681 = vsub.f32 %v141, %v2680
    %v2682 = vand.u32 %v2681, 4294901760
    %2683 = vmatmul.f32.gmra.mxu0 %v2682
    %v2684 = vpop.f32.mrf.mxu0
    %v2685 = vadd.f32 %v2624, %v2684
    %v2686 = vand.u32 %v144, 4294901760
    %v2687 = vsub.f32 %v144, %v2686
    %v2688 = vand.u32 %v2687, 4294901760
    %2689 = vmatmul.f32.gmra.mxu0 %v2688
    %v2690 = vpop.f32.mrf.mxu0
    %v2691 = vadd.f32 %v2629, %v2690
    %v2692 = vand.u32 %v147, 4294901760
    %v2693 = vsub.f32 %v147, %v2692
    %v2694 = vand.u32 %v2693, 4294901760
    %2695 = vmatmul.f32.gmra.mxu0 %v2694
    %v2696 = vpop.f32.mrf.mxu0
    %v2697 = vadd.f32 %v2634, %v2696
    %v2698 = vand.u32 %v150, 4294901760
    %v2699 = vsub.f32 %v150, %v2698
    %v2700 = vand.u32 %v2699, 4294901760
    %2701 = vmatmul.f32.gmra.mxu0 %v2700
    %v2702 = vpop.f32.mrf.mxu0
    %v2703 = vadd.f32 %v2639, %v2702
    %v2704 = vand.u32 %v153, 4294901760
    %v2705 = vsub.f32 %v153, %v2704
    %v2706 = vand.u32 %v2705, 4294901760
    %2707 = vmatmul.f32.gmra.mxu0 %v2706
    %v2708 = vpop.f32.mrf.mxu0
    %v2709 = vadd.f32 %v2644, %v2708
    %v2710 = vand.u32 %v156, 4294901760
    %v2711 = vsub.f32 %v156, %v2710
    %v2712 = vand.u32 %v2711, 4294901760
    %2713 = vmatmul.f32.gmra.mxu0 %v2712
    %v2714 = vpop.f32.mrf.mxu0
    %v2715 = vadd.f32 %v2649, %v2714
    %2716 = vdwg.mxu0
    %2717 = vmatpush.msra.mxu0 0.0
    %2718 = vmatpush.msra.mxu0 0.0
    %2719 = vmatpush.msra.mxu0 0.0
    %2720 = vmatpush.msra.mxu0 0.0
    %2721 = vmatpush.msra.mxu0 0.0
    %2722 = vmatpush.msra.mxu0 0.0
    %2723 = vmatpush.msra.mxu0 0.0
    %2724 = vmatpush.msra.mxu0 0.0
    %2725 = vmatpush.msra.mxu0 0.0
    %2726 = vmatpush.msra.mxu0 0.0
    %2727 = vmatpush.msra.mxu0 0.0
    %2728 = vmatpush.msra.mxu0 0.0
    %2729 = vmatpush.msra.mxu0 0.0
    %2730 = vmatpush.msra.mxu0 0.0
    %2731 = vmatpush.msra.mxu0 0.0
    %v2732 = vand.u32 %v2035, 4294901760
    %v2733 = vsub.f32 %v2035, %v2732
    %v2734 = vand.u32 %v2733, 4294901760
    %2735 = vmatpush.msra.mxu0 %v2734
    %v2736 = vand.u32 %v135, 4294901760
    %2737 = vmatmul.f32.gmra.mxu0 %v2736
    %v2738 = vpop.f32.mrf.mxu0
    %v2739 = vadd.f32 %v2673, %v2738
    %v2740 = vand.u32 %v138, 4294901760
    %2741 = vmatmul.f32.gmra.mxu0 %v2740
    %v2742 = vpop.f32.mrf.mxu0
    %v2743 = vadd.f32 %v2679, %v2742
    %v2744 = vand.u32 %v141, 4294901760
    %2745 = vmatmul.f32.gmra.mxu0 %v2744
    %v2746 = vpop.f32.mrf.mxu0
    %v2747 = vadd.f32 %v2685, %v2746
    %v2748 = vand.u32 %v144, 4294901760
    %2749 = vmatmul.f32.gmra.mxu0 %v2748
    %v2750 = vpop.f32.mrf.mxu0
    %v2751 = vadd.f32 %v2691, %v2750
    %v2752 = vand.u32 %v147, 4294901760
    %2753 = vmatmul.f32.gmra.mxu0 %v2752
    %v2754 = vpop.f32.mrf.mxu0
    %v2755 = vadd.f32 %v2697, %v2754
    %v2756 = vand.u32 %v150, 4294901760
    %2757 = vmatmul.f32.gmra.mxu0 %v2756
    %v2758 = vpop.f32.mrf.mxu0
    %v2759 = vadd.f32 %v2703, %v2758
    %v2760 = vand.u32 %v153, 4294901760
    %2761 = vmatmul.f32.gmra.mxu0 %v2760
    %v2762 = vpop.f32.mrf.mxu0
    %v2763 = vadd.f32 %v2709, %v2762
    %v2764 = vand.u32 %v156, 4294901760
    %2765 = vmatmul.f32.gmra.mxu0 %v2764
    %v2766 = vpop.f32.mrf.mxu0
    %v2767 = vadd.f32 %v2715, %v2766
    %2768 = vdwg.mxu0
    %2769 = vmatpush.msra.mxu0 0.0
    %2770 = vmatpush.msra.mxu0 0.0
    %2771 = vmatpush.msra.mxu0 0.0
    %2772 = vmatpush.msra.mxu0 0.0
    %2773 = vmatpush.msra.mxu0 0.0
    %2774 = vmatpush.msra.mxu0 0.0
    %2775 = vmatpush.msra.mxu0 0.0
    %2776 = vmatpush.msra.mxu0 0.0
    %2777 = vmatpush.msra.mxu0 0.0
    %2778 = vmatpush.msra.mxu0 0.0
    %2779 = vmatpush.msra.mxu0 0.0
    %2780 = vmatpush.msra.mxu0 0.0
    %2781 = vmatpush.msra.mxu0 0.0
    %2782 = vmatpush.msra.mxu0 0.0
    %2783 = vmatpush.msra.mxu0 0.0
    %v2784 = vand.u32 %v2035, 4294901760
    %2785 = vmatpush.msra.mxu0 %v2784
    %v2786 = vand.u32 %v135, 4294901760
    %2787 = vmatmul.f32.gmra.mxu0 %v2786
    %v2788 = vpop.f32.mrf.mxu0
    %v2789 = vadd.f32 %v2739, %v2788
    %v2790 = vand.u32 %v138, 4294901760
    %2791 = vmatmul.f32.gmra.mxu0 %v2790
    %v2792 = vpop.f32.mrf.mxu0
    %v2793 = vadd.f32 %v2743, %v2792
    %v2794 = vand.u32 %v141, 4294901760
    %2795 = vmatmul.f32.gmra.mxu0 %v2794
    %v2796 = vpop.f32.mrf.mxu0
    %v2797 = vadd.f32 %v2747, %v2796
    %v2798 = vand.u32 %v144, 4294901760
    %2799 = vmatmul.f32.gmra.mxu0 %v2798
    %v2800 = vpop.f32.mrf.mxu0
    %v2801 = vadd.f32 %v2751, %v2800
    %v2802 = vand.u32 %v147, 4294901760
    %2803 = vmatmul.f32.gmra.mxu0 %v2802
    %v2804 = vpop.f32.mrf.mxu0
    %v2805 = vadd.f32 %v2755, %v2804
    %v2806 = vand.u32 %v150, 4294901760
    %2807 = vmatmul.f32.gmra.mxu0 %v2806
    %v2808 = vpop.f32.mrf.mxu0
    %v2809 = vadd.f32 %v2759, %v2808
    %v2810 = vand.u32 %v153, 4294901760
    %2811 = vmatmul.f32.gmra.mxu0 %v2810
    %v2812 = vpop.f32.mrf.mxu0
    %v2813 = vadd.f32 %v2763, %v2812
    %v2814 = vand.u32 %v156, 4294901760
    %2815 = vmatmul.f32.gmra.mxu0 %v2814
    %v2816 = vpop.f32.mrf.mxu0
    %v2817 = vadd.f32 %v2767, %v2816
    %2818 = vdwg.mxu0
    %v2819 = vmax.f32 %v2426, 0.0
    %v2820 = vmax.f32 %v2789, 0.0
    %v2821 = vmax.f32 %v2430, 0.0
    %v2822 = vmax.f32 %v2793, 0.0
    %v2823 = vmax.f32 %v2434, 0.0
    %v2824 = vmax.f32 %v2797, 0.0
    %v2825 = vmax.f32 %v2438, 0.0
    %v2826 = vmax.f32 %v2801, 0.0
    %v2827 = vmax.f32 %v2442, 0.0
    %v2828 = vmax.f32 %v2805, 0.0
    %v2829 = vmax.f32 %v2446, 0.0
    %v2830 = vmax.f32 %v2809, 0.0
    %v2831 = vmax.f32 %v2450, 0.0
    %v2832 = vmax.f32 %v2813, 0.0
    %v2833 = vmax.f32 %v2454, 0.0
    %v2834 = vmax.f32 %v2817, 0.0
    %v2835 = vadd.f32 %v2819, %v2821
    %v2836 = vadd.f32 %v2835, %v2823
    %v2837 = vadd.f32 %v2836, %v2825
    %v2838 = vrot.slane %v2837, 4
    %v2839 = vadd.f32 %v2837, %v2838
    %v2840 = vrot.slane %v2839, 2
    %v2841 = vadd.f32 %v2839, %v2840
    %v2842 = vrot.slane %v2841, 1
    %v2843 = vadd.f32 %v2841, %v2842
    %v2844 = vadd.f32 %v2820, %v2822
    %v2845 = vadd.f32 %v2844, %v2824
    %v2846 = vadd.f32 %v2845, %v2826
    %v2847 = vrot.slane %v2846, 4
    %v2848 = vadd.f32 %v2846, %v2847
    %v2849 = vrot.slane %v2848, 2
    %v2850 = vadd.f32 %v2848, %v2849
    %v2851 = vrot.slane %v2850, 1
    %v2852 = vadd.f32 %v2850, %v2851
    %v2853 = vmul.f32 %v2843, %v924
    %v2854 = vmul.f32 %v2852, %v924
    %v2855 = vsub.f32 %v2819, %v2853
    %v2856 = vsub.f32 %v2820, %v2854
    %v2857 = vsub.f32 %v2821, %v2853
    %v2858 = vsub.f32 %v2822, %v2854
    %v2859 = vsub.f32 %v2823, %v2853
    %v2860 = vsub.f32 %v2824, %v2854
    %v2861 = vsub.f32 %v2825, %v2853
    %v2862 = vsub.f32 %v2826, %v2854
    %v2863 = vmul.f32 %v2855, %v2855
    %v2864 = vmul.f32 %v2856, %v2856
    %v2865 = vmul.f32 %v2857, %v2857
    %v2866 = vmul.f32 %v2858, %v2858
    %v2867 = vmul.f32 %v2859, %v2859
    %v2868 = vmul.f32 %v2860, %v2860
    %v2869 = vmul.f32 %v2861, %v2861
    %v2870 = vmul.f32 %v2862, %v2862
    %v2871 = vadd.f32 %v2863, %v2865
    %v2872 = vadd.f32 %v2871, %v2867
    %v2873 = vadd.f32 %v2872, %v2869
    %v2874 = vrot.slane %v2873, 4
    %v2875 = vadd.f32 %v2873, %v2874
    %v2876 = vrot.slane %v2875, 2
    %v2877 = vadd.f32 %v2875, %v2876
    %v2878 = vrot.slane %v2877, 1
    %v2879 = vadd.f32 %v2877, %v2878
    %v2880 = vadd.f32 %v2864, %v2866
    %v2881 = vadd.f32 %v2880, %v2868
    %v2882 = vadd.f32 %v2881, %v2870
    %v2883 = vrot.slane %v2882, 4
    %v2884 = vadd.f32 %v2882, %v2883
    %v2885 = vrot.slane %v2884, 2
    %v2886 = vadd.f32 %v2884, %v2885
    %v2887 = vrot.slane %v2886, 1
    %v2888 = vadd.f32 %v2886, %v2887
    %v2889 = vmul.f32 %v2879, %v924
    %v2890 = vmul.f32 %v2888, %v924
    %v2891 = vadd.f32 %v2889, 1e-05
    %v2892 = vadd.f32 %v2890, 1e-05
    %v2893 = vrsqrt.pop %v2891
    %v2894 = vmul.f32 %v2893, %v2891
    %v2895 = vmul.f32 %v2894, %v2893
    %v2896 = vmul.f32 0.5, %v2895
    %v2897 = vsub.f32 1.5, %v2896
    %v2898 = vmul.f32 %v2893, %v2897
    %vm2899 = vweird.f32 %v2891
    %vm2900 = vweird.f32 %v2893
    %vm2901 = vmor %vm2899, %vm2900
    %v2902 = vsel %vm2901, %v2893, %v2898
    %v2903 = vrsqrt.pop %v2892
    %v2904 = vmul.f32 %v2903, %v2892
    %v2905 = vmul.f32 %v2904, %v2903
    %v2906 = vmul.f32 0.5, %v2905
    %v2907 = vsub.f32 1.5, %v2906
    %v2908 = vmul.f32 %v2903, %v2907
    %vm2909 = vweird.f32 %v2892
    %vm2910 = vweird.f32 %v2903
    %vm2911 = vmor %vm2909, %vm2910
    %v2912 = vsel %vm2911, %v2903, %v2908
    %v2913 = vmul.f32 %v2855, %v2902
    %v2914 = vmul.f32 %v2856, %v2912
    %v2915 = vmul.f32 %v2857, %v2902
    %v2916 = vmul.f32 %v2858, %v2912
    %v2917 = vmul.f32 %v2859, %v2902
    %v2918 = vmul.f32 %v2860, %v2912
    %v2919 = vmul.f32 %v2861, %v2902
    %v2920 = vmul.f32 %v2862, %v2912
    %v2921 = vmul.f32 %v2913, %v996
    %v2922 = vmul.f32 %v2914, %v996
    %v2923 = vmul.f32 %v2915, %v1001
    %v2924 = vmul.f32 %v2916, %v1001
    %v2925 = vmul.f32 %v2917, %v1006
    %v2926 = vmul.f32 %v2918, %v1006
    %v2927 = vmul.f32 %v2919, %v1011
    %v2928 = vmul.f32 %v2920, %v1011
    %v2929 = vadd.f32 %v2921, %v1024
    %v2930 = vadd.f32 %v2922, %v1024
    %v2931 = vadd.f32 %v2923, %v1029
    %v2932 = vadd.f32 %v2924, %v1029
    %v2933 = vadd.f32 %v2925, %v1034
    %v2934 = vadd.f32 %v2926, %v1034
    %v2935 = vadd.f32 %v2927, %v1039
    %v2936 = vadd.f32 %v2928, %v1039
    %v2937 = vadd.f32 %v2827, %v2829
    %v2938 = vadd.f32 %v2937, %v2831
    %v2939 = vadd.f32 %v2938, %v2833
    %v2940 = vrot.slane %v2939, 4
    %v2941 = vadd.f32 %v2939, %v2940
    %v2942 = vrot.slane %v2941, 2
    %v2943 = vadd.f32 %v2941, %v2942
    %v2944 = vrot.slane %v2943, 1
    %v2945 = vadd.f32 %v2943, %v2944
    %v2946 = vadd.f32 %v2828, %v2830
    %v2947 = vadd.f32 %v2946, %v2832
    %v2948 = vadd.f32 %v2947, %v2834
    %v2949 = vrot.slane %v2948, 4
    %v2950 = vadd.f32 %v2948, %v2949
    %v2951 = vrot.slane %v2950, 2
    %v2952 = vadd.f32 %v2950, %v2951
    %v2953 = vrot.slane %v2952, 1
    %v2954 = vadd.f32 %v2952, %v2953
    %v2955 = vmul.f32 %v2945, %v924
    %v2956 = vmul.f32 %v2954, %v924
    %v2957 = vsub.f32 %v2827, %v2955
    %v2958 = vsub.f32 %v2828, %v2956
    %v2959 = vsub.f32 %v2829, %v2955
    %v2960 = vsub.f32 %v2830, %v2956
    %v2961 = vsub.f32 %v2831, %v2955
    %v2962 = vsub.f32 %v2832, %v2956
    %v2963 = vsub.f32 %v2833, %v2955
    %v2964 = vsub.f32 %v2834, %v2956
    %v2965 = vmul.f32 %v2957, %v2957
    %v2966 = vmul.f32 %v2958, %v2958
    %v2967 = vmul.f32 %v2959, %v2959
    %v2968 = vmul.f32 %v2960, %v2960
    %v2969 = vmul.f32 %v2961, %v2961
    %v2970 = vmul.f32 %v2962, %v2962
    %v2971 = vmul.f32 %v2963, %v2963
    %v2972 = vmul.f32 %v2964, %v2964
    %v2973 = vadd.f32 %v2965, %v2967
    %v2974 = vadd.f32 %v2973, %v2969
    %v2975 = vadd.f32 %v2974, %v2971
    %v2976 = vrot.slane %v2975, 4
    %v2977 = vadd.f32 %v2975, %v2976
    %v2978 = vrot.slane %v2977, 2
    %v2979 = vadd.f32 %v2977, %v2978
    %v2980 = vrot.slane %v2979, 1
    %v2981 = vadd.f32 %v2979, %v2980
    %v2982 = vadd.f32 %v2966, %v2968
    %v2983 = vadd.f32 %v2982, %v2970
    %v2984 = vadd.f32 %v2983, %v2972
    %v2985 = vrot.slane %v2984, 4
    %v2986 = vadd.f32 %v2984, %v2985
    %v2987 = vrot.slane %v2986, 2
    %v2988 = vadd.f32 %v2986, %v2987
    %v2989 = vrot.slane %v2988, 1
    %v2990 = vadd.f32 %v2988, %v2989
    %v2991 = vmul.f32 %v2981, %v924
    %v2992 = vmul.f32 %v2990, %v924
    %v2993 = vadd.f32 %v2991, 1e-05
    %v2994 = vadd.f32 %v2992, 1e-05
    %v2995 = vrsqrt.pop %v2993
    %v2996 = vmul.f32 %v2995, %v2993
    %v2997 = vmul.f32 %v2996, %v2995
    %v2998 = vmul.f32 0.5, %v2997
    %v2999 = vsub.f32 1.5, %v2998
    %v3000 = vmul.f32 %v2995, %v2999
    %vm3001 = vweird.f32 %v2993
    %vm3002 = vweird.f32 %v2995
    %vm3003 = vmor %vm3001, %vm3002
    %v3004 = vsel %vm3003, %v2995, %v3000
    %v3005 = vrsqrt.pop %v2994
    %v3006 = vmul.f32 %v3005, %v2994
    %v3007 = vmul.f32 %v3006, %v3005
    %v3008 = vmul.f32 0.5, %v3007
    %v3009 = vsub.f32 1.5, %v3008
    %v3010 = vmul.f32 %v3005, %v3009
    %vm3011 = vweird.f32 %v2994
    %vm3012 = vweird.f32 %v3005
    %vm3013 = vmor %vm3011, %vm3012
    %v3014 = vsel %vm3013, %v3005, %v3010
    %v3015 = vmul.f32 %v2957, %v3004
    %v3016 = vmul.f32 %v2958, %v3014
    %v3017 = vmul.f32 %v2959, %v3004
    %v3018 = vmul.f32 %v2960, %v3014
    %v3019 = vmul.f32 %v2961, %v3004
    %v3020 = vmul.f32 %v2962, %v3014
    %v3021 = vmul.f32 %v2963, %v3004
    %v3022 = vmul.f32 %v2964, %v3014
    %v3023 = vmul.f32 %v3015, %v996
    %v3024 = vmul.f32 %v3016, %v996
    %v3025 = vmul.f32 %v3017, %v1001
    %v3026 = vmul.f32 %v3018, %v1001
    %v3027 = vmul.f32 %v3019, %v1006
    %v3028 = vmul.f32 %v3020, %v1006
    %v3029 = vmul.f32 %v3021, %v1011
    %v3030 = vmul.f32 %v3022, %v1011
    %v3031 = vadd.f32 %v3023, %v1024
    %v3032 = vadd.f32 %v3024, %v1024
    %v3033 = vadd.f32 %v3025, %v1029
    %v3034 = vadd.f32 %v3026, %v1029
    %v3035 = vadd.f32 %v3027, %v1034
    %v3036 = vadd.f32 %v3028, %v1034
    %v3037 = vadd.f32 %v3029, %v1039
    %v3038 = vadd.f32 %v3030, %v1039
    %3039 = vmatpush.msra.mxu0 0.0
    %3040 = vmatpush.msra.mxu0 0.0
    %3041 = vmatpush.msra.mxu0 0.0
    %3042 = vmatpush.msra.mxu0 0.0
    %3043 = vmatpush.msra.mxu0 0.0
    %3044 = vmatpush.msra.mxu0 0.0
    %3045 = vmatpush.msra.mxu0 0.0
    %3046 = vmatpush.msra.mxu0 0.0
    %3047 = vmatpush.msra.mxu0 0.0
    %3048 = vmatpush.msra.mxu0 0.0
    %3049 = vmatpush.msra.mxu0 0.0
    %3050 = vmatpush.msra.mxu0 0.0
    %3051 = vmatpush.msra.mxu0 0.0
    %3052 = vmatpush.msra.mxu0 0.0
    %3053 = vmatpush.msra.mxu0 0.0
    %v3054 = vand.u32 %v2041, 4294901760
    %3055 = vmatpush.msra.mxu0 %v3054
    %v3056 = vand.u32 %v1152, 4294901760
    %v3057 = vsub.f32 %v1152, %v3056
    %v3058 = vand.u32 %v3057, 4294901760
    %v3059 = vsub.f32 %v3057, %v3058
    %v3060 = vand.u32 %v3059, 4294901760
    %3061 = vmatmul.f32.gmra.mxu0 %v3060
    %v3062 = vpop.f32.mrf.mxu0
    %v3063 = vadd.f32 %v2059, %v3062
    %v3064 = vand.u32 %v1155, 4294901760
    %v3065 = vsub.f32 %v1155, %v3064
    %v3066 = vand.u32 %v3065, 4294901760
    %v3067 = vsub.f32 %v3065, %v3066
    %v3068 = vand.u32 %v3067, 4294901760
    %3069 = vmatmul.f32.gmra.mxu0 %v3068
    %v3070 = vpop.f32.mrf.mxu0
    %v3071 = vadd.f32 %v2062, %v3070
    %v3072 = vand.u32 %v1158, 4294901760
    %v3073 = vsub.f32 %v1158, %v3072
    %v3074 = vand.u32 %v3073, 4294901760
    %v3075 = vsub.f32 %v3073, %v3074
    %v3076 = vand.u32 %v3075, 4294901760
    %3077 = vmatmul.f32.gmra.mxu0 %v3076
    %v3078 = vpop.f32.mrf.mxu0
    %v3079 = vadd.f32 %v2065, %v3078
    %v3080 = vand.u32 %v1161, 4294901760
    %v3081 = vsub.f32 %v1161, %v3080
    %v3082 = vand.u32 %v3081, 4294901760
    %v3083 = vsub.f32 %v3081, %v3082
    %v3084 = vand.u32 %v3083, 4294901760
    %3085 = vmatmul.f32.gmra.mxu0 %v3084
    %v3086 = vpop.f32.mrf.mxu0
    %v3087 = vadd.f32 %v2068, %v3086
    %v3088 = vand.u32 %v135, 4294901760
    %v3089 = vsub.f32 %v135, %v3088
    %v3090 = vand.u32 %v3089, 4294901760
    %v3091 = vsub.f32 %v3089, %v3090
    %v3092 = vand.u32 %v3091, 4294901760
    %3093 = vmatmul.f32.gmra.mxu0 %v3092
    %v3094 = vpop.f32.mrf.mxu0
    %v3095 = vadd.f32 %v2071, %v3094
    %v3096 = vand.u32 %v138, 4294901760
    %v3097 = vsub.f32 %v138, %v3096
    %v3098 = vand.u32 %v3097, 4294901760
    %v3099 = vsub.f32 %v3097, %v3098
    %v3100 = vand.u32 %v3099, 4294901760
    %3101 = vmatmul.f32.gmra.mxu0 %v3100
    %v3102 = vpop.f32.mrf.mxu0
    %v3103 = vadd.f32 %v2074, %v3102
    %v3104 = vand.u32 %v141, 4294901760
    %v3105 = vsub.f32 %v141, %v3104
    %v3106 = vand.u32 %v3105, 4294901760
    %v3107 = vsub.f32 %v3105, %v3106
    %v3108 = vand.u32 %v3107, 4294901760
    %3109 = vmatmul.f32.gmra.mxu0 %v3108
    %v3110 = vpop.f32.mrf.mxu0
    %v3111 = vadd.f32 %v2077, %v3110
    %v3112 = vand.u32 %v144, 4294901760
    %v3113 = vsub.f32 %v144, %v3112
    %v3114 = vand.u32 %v3113, 4294901760
    %v3115 = vsub.f32 %v3113, %v3114
    %v3116 = vand.u32 %v3115, 4294901760
    %3117 = vmatmul.f32.gmra.mxu0 %v3116
    %v3118 = vpop.f32.mrf.mxu0
    %v3119 = vadd.f32 %v2080, %v3118
    %v3120 = vand.u32 %v147, 4294901760
    %v3121 = vsub.f32 %v147, %v3120
    %v3122 = vand.u32 %v3121, 4294901760
    %v3123 = vsub.f32 %v3121, %v3122
    %v3124 = vand.u32 %v3123, 4294901760
    %3125 = vmatmul.f32.gmra.mxu0 %v3124
    %v3126 = vpop.f32.mrf.mxu0
    %v3127 = vadd.f32 %v2083, %v3126
    %v3128 = vand.u32 %v150, 4294901760
    %v3129 = vsub.f32 %v150, %v3128
    %v3130 = vand.u32 %v3129, 4294901760
    %v3131 = vsub.f32 %v3129, %v3130
    %v3132 = vand.u32 %v3131, 4294901760
    %3133 = vmatmul.f32.gmra.mxu0 %v3132
    %v3134 = vpop.f32.mrf.mxu0
    %v3135 = vadd.f32 %v2086, %v3134
    %v3136 = vand.u32 %v153, 4294901760
    %v3137 = vsub.f32 %v153, %v3136
    %v3138 = vand.u32 %v3137, 4294901760
    %v3139 = vsub.f32 %v3137, %v3138
    %v3140 = vand.u32 %v3139, 4294901760
    %3141 = vmatmul.f32.gmra.mxu0 %v3140
    %v3142 = vpop.f32.mrf.mxu0
    %v3143 = vadd.f32 %v2089, %v3142
    %v3144 = vand.u32 %v156, 4294901760
    %v3145 = vsub.f32 %v156, %v3144
    %v3146 = vand.u32 %v3145, 4294901760
    %v3147 = vsub.f32 %v3145, %v3146
    %v3148 = vand.u32 %v3147, 4294901760
    %3149 = vmatmul.f32.gmra.mxu0 %v3148
    %v3150 = vpop.f32.mrf.mxu0
    %v3151 = vadd.f32 %v2092, %v3150
    %3152 = vdwg.mxu0
    %3153 = vmatpush.msra.mxu0 0.0
    %3154 = vmatpush.msra.mxu0 0.0
    %3155 = vmatpush.msra.mxu0 0.0
    %3156 = vmatpush.msra.mxu0 0.0
    %3157 = vmatpush.msra.mxu0 0.0
    %3158 = vmatpush.msra.mxu0 0.0
    %3159 = vmatpush.msra.mxu0 0.0
    %3160 = vmatpush.msra.mxu0 0.0
    %3161 = vmatpush.msra.mxu0 0.0
    %3162 = vmatpush.msra.mxu0 0.0
    %3163 = vmatpush.msra.mxu0 0.0
    %3164 = vmatpush.msra.mxu0 0.0
    %3165 = vmatpush.msra.mxu0 0.0
    %3166 = vmatpush.msra.mxu0 0.0
    %3167 = vmatpush.msra.mxu0 0.0
    %v3168 = vand.u32 %v2041, 4294901760
    %v3169 = vsub.f32 %v2041, %v3168
    %v3170 = vand.u32 %v3169, 4294901760
    %v3171 = vsub.f32 %v3169, %v3170
    %v3172 = vand.u32 %v3171, 4294901760
    %3173 = vmatpush.msra.mxu0 %v3172
    %v3174 = vand.u32 %v1152, 4294901760
    %3175 = vmatmul.f32.gmra.mxu0 %v3174
    %v3176 = vpop.f32.mrf.mxu0
    %v3177 = vadd.f32 %v3063, %v3176
    %v3178 = vand.u32 %v1155, 4294901760
    %3179 = vmatmul.f32.gmra.mxu0 %v3178
    %v3180 = vpop.f32.mrf.mxu0
    %v3181 = vadd.f32 %v3071, %v3180
    %v3182 = vand.u32 %v1158, 4294901760
    %3183 = vmatmul.f32.gmra.mxu0 %v3182
    %v3184 = vpop.f32.mrf.mxu0
    %v3185 = vadd.f32 %v3079, %v3184
    %v3186 = vand.u32 %v1161, 4294901760
    %3187 = vmatmul.f32.gmra.mxu0 %v3186
    %v3188 = vpop.f32.mrf.mxu0
    %v3189 = vadd.f32 %v3087, %v3188
    %v3190 = vand.u32 %v135, 4294901760
    %3191 = vmatmul.f32.gmra.mxu0 %v3190
    %v3192 = vpop.f32.mrf.mxu0
    %v3193 = vadd.f32 %v3095, %v3192
    %v3194 = vand.u32 %v138, 4294901760
    %3195 = vmatmul.f32.gmra.mxu0 %v3194
    %v3196 = vpop.f32.mrf.mxu0
    %v3197 = vadd.f32 %v3103, %v3196
    %v3198 = vand.u32 %v141, 4294901760
    %3199 = vmatmul.f32.gmra.mxu0 %v3198
    %v3200 = vpop.f32.mrf.mxu0
    %v3201 = vadd.f32 %v3111, %v3200
    %v3202 = vand.u32 %v144, 4294901760
    %3203 = vmatmul.f32.gmra.mxu0 %v3202
    %v3204 = vpop.f32.mrf.mxu0
    %v3205 = vadd.f32 %v3119, %v3204
    %v3206 = vand.u32 %v147, 4294901760
    %3207 = vmatmul.f32.gmra.mxu0 %v3206
    %v3208 = vpop.f32.mrf.mxu0
    %v3209 = vadd.f32 %v3127, %v3208
    %v3210 = vand.u32 %v150, 4294901760
    %3211 = vmatmul.f32.gmra.mxu0 %v3210
    %v3212 = vpop.f32.mrf.mxu0
    %v3213 = vadd.f32 %v3135, %v3212
    %v3214 = vand.u32 %v153, 4294901760
    %3215 = vmatmul.f32.gmra.mxu0 %v3214
    %v3216 = vpop.f32.mrf.mxu0
    %v3217 = vadd.f32 %v3143, %v3216
    %v3218 = vand.u32 %v156, 4294901760
    %3219 = vmatmul.f32.gmra.mxu0 %v3218
    %v3220 = vpop.f32.mrf.mxu0
    %v3221 = vadd.f32 %v3151, %v3220
    %3222 = vdwg.mxu0
    %3223 = vmatpush.msra.mxu0 0.0
    %3224 = vmatpush.msra.mxu0 0.0
    %3225 = vmatpush.msra.mxu0 0.0
    %3226 = vmatpush.msra.mxu0 0.0
    %3227 = vmatpush.msra.mxu0 0.0
    %3228 = vmatpush.msra.mxu0 0.0
    %3229 = vmatpush.msra.mxu0 0.0
    %3230 = vmatpush.msra.mxu0 0.0
    %3231 = vmatpush.msra.mxu0 0.0
    %3232 = vmatpush.msra.mxu0 0.0
    %3233 = vmatpush.msra.mxu0 0.0
    %3234 = vmatpush.msra.mxu0 0.0
    %3235 = vmatpush.msra.mxu0 0.0
    %3236 = vmatpush.msra.mxu0 0.0
    %3237 = vmatpush.msra.mxu0 0.0
    %v3238 = vand.u32 %v2041, 4294901760
    %v3239 = vsub.f32 %v2041, %v3238
    %3240 = vmatpush.msra.mxu0 %v3239
    %v3241 = vand.u32 %v1152, 4294901760
    %v3242 = vsub.f32 %v1152, %v3241
    %3243 = vmatmul.f32.gmra.mxu0 %v3242
    %v3244 = vpop.f32.mrf.mxu0
    %v3245 = vadd.f32 %v3177, %v3244
    %v3246 = vand.u32 %v1155, 4294901760
    %v3247 = vsub.f32 %v1155, %v3246
    %3248 = vmatmul.f32.gmra.mxu0 %v3247
    %v3249 = vpop.f32.mrf.mxu0
    %v3250 = vadd.f32 %v3181, %v3249
    %v3251 = vand.u32 %v1158, 4294901760
    %v3252 = vsub.f32 %v1158, %v3251
    %3253 = vmatmul.f32.gmra.mxu0 %v3252
    %v3254 = vpop.f32.mrf.mxu0
    %v3255 = vadd.f32 %v3185, %v3254
    %v3256 = vand.u32 %v1161, 4294901760
    %v3257 = vsub.f32 %v1161, %v3256
    %3258 = vmatmul.f32.gmra.mxu0 %v3257
    %v3259 = vpop.f32.mrf.mxu0
    %v3260 = vadd.f32 %v3189, %v3259
    %v3261 = vand.u32 %v135, 4294901760
    %v3262 = vsub.f32 %v135, %v3261
    %3263 = vmatmul.f32.gmra.mxu0 %v3262
    %v3264 = vpop.f32.mrf.mxu0
    %v3265 = vadd.f32 %v3193, %v3264
    %v3266 = vand.u32 %v138, 4294901760
    %v3267 = vsub.f32 %v138, %v3266
    %3268 = vmatmul.f32.gmra.mxu0 %v3267
    %v3269 = vpop.f32.mrf.mxu0
    %v3270 = vadd.f32 %v3197, %v3269
    %v3271 = vand.u32 %v141, 4294901760
    %v3272 = vsub.f32 %v141, %v3271
    %3273 = vmatmul.f32.gmra.mxu0 %v3272
    %v3274 = vpop.f32.mrf.mxu0
    %v3275 = vadd.f32 %v3201, %v3274
    %v3276 = vand.u32 %v144, 4294901760
    %v3277 = vsub.f32 %v144, %v3276
    %3278 = vmatmul.f32.gmra.mxu0 %v3277
    %v3279 = vpop.f32.mrf.mxu0
    %v3280 = vadd.f32 %v3205, %v3279
    %v3281 = vand.u32 %v147, 4294901760
    %v3282 = vsub.f32 %v147, %v3281
    %3283 = vmatmul.f32.gmra.mxu0 %v3282
    %v3284 = vpop.f32.mrf.mxu0
    %v3285 = vadd.f32 %v3209, %v3284
    %v3286 = vand.u32 %v150, 4294901760
    %v3287 = vsub.f32 %v150, %v3286
    %3288 = vmatmul.f32.gmra.mxu0 %v3287
    %v3289 = vpop.f32.mrf.mxu0
    %v3290 = vadd.f32 %v3213, %v3289
    %v3291 = vand.u32 %v153, 4294901760
    %v3292 = vsub.f32 %v153, %v3291
    %3293 = vmatmul.f32.gmra.mxu0 %v3292
    %v3294 = vpop.f32.mrf.mxu0
    %v3295 = vadd.f32 %v3217, %v3294
    %v3296 = vand.u32 %v156, 4294901760
    %v3297 = vsub.f32 %v156, %v3296
    %3298 = vmatmul.f32.gmra.mxu0 %v3297
    %v3299 = vpop.f32.mrf.mxu0
    %v3300 = vadd.f32 %v3221, %v3299
    %3301 = vdwg.mxu0
    %3302 = vmatpush.msra.mxu0 0.0
    %3303 = vmatpush.msra.mxu0 0.0
    %3304 = vmatpush.msra.mxu0 0.0
    %3305 = vmatpush.msra.mxu0 0.0
    %3306 = vmatpush.msra.mxu0 0.0
    %3307 = vmatpush.msra.mxu0 0.0
    %3308 = vmatpush.msra.mxu0 0.0
    %3309 = vmatpush.msra.mxu0 0.0
    %3310 = vmatpush.msra.mxu0 0.0
    %3311 = vmatpush.msra.mxu0 0.0
    %3312 = vmatpush.msra.mxu0 0.0
    %3313 = vmatpush.msra.mxu0 0.0
    %3314 = vmatpush.msra.mxu0 0.0
    %3315 = vmatpush.msra.mxu0 0.0
    %3316 = vmatpush.msra.mxu0 0.0
    %v3317 = vand.u32 %v2041, 4294901760
    %3318 = vmatpush.msra.mxu0 %v3317
    %v3319 = vand.u32 %v1152, 4294901760
    %v3320 = vsub.f32 %v1152, %v3319
    %v3321 = vand.u32 %v3320, 4294901760
    %3322 = vmatmul.f32.gmra.mxu0 %v3321
    %v3323 = vpop.f32.mrf.mxu0
    %v3324 = vadd.f32 %v3245, %v3323
    %v3325 = vand.u32 %v1155, 4294901760
    %v3326 = vsub.f32 %v1155, %v3325
    %v3327 = vand.u32 %v3326, 4294901760
    %3328 = vmatmul.f32.gmra.mxu0 %v3327
    %v3329 = vpop.f32.mrf.mxu0
    %v3330 = vadd.f32 %v3250, %v3329
    %v3331 = vand.u32 %v1158, 4294901760
    %v3332 = vsub.f32 %v1158, %v3331
    %v3333 = vand.u32 %v3332, 4294901760
    %3334 = vmatmul.f32.gmra.mxu0 %v3333
    %v3335 = vpop.f32.mrf.mxu0
    %v3336 = vadd.f32 %v3255, %v3335
    %v3337 = vand.u32 %v1161, 4294901760
    %v3338 = vsub.f32 %v1161, %v3337
    %v3339 = vand.u32 %v3338, 4294901760
    %3340 = vmatmul.f32.gmra.mxu0 %v3339
    %v3341 = vpop.f32.mrf.mxu0
    %v3342 = vadd.f32 %v3260, %v3341
    %v3343 = vand.u32 %v135, 4294901760
    %v3344 = vsub.f32 %v135, %v3343
    %v3345 = vand.u32 %v3344, 4294901760
    %3346 = vmatmul.f32.gmra.mxu0 %v3345
    %v3347 = vpop.f32.mrf.mxu0
    %v3348 = vadd.f32 %v3265, %v3347
    %v3349 = vand.u32 %v138, 4294901760
    %v3350 = vsub.f32 %v138, %v3349
    %v3351 = vand.u32 %v3350, 4294901760
    %3352 = vmatmul.f32.gmra.mxu0 %v3351
    %v3353 = vpop.f32.mrf.mxu0
    %v3354 = vadd.f32 %v3270, %v3353
    %v3355 = vand.u32 %v141, 4294901760
    %v3356 = vsub.f32 %v141, %v3355
    %v3357 = vand.u32 %v3356, 4294901760
    %3358 = vmatmul.f32.gmra.mxu0 %v3357
    %v3359 = vpop.f32.mrf.mxu0
    %v3360 = vadd.f32 %v3275, %v3359
    %v3361 = vand.u32 %v144, 4294901760
    %v3362 = vsub.f32 %v144, %v3361
    %v3363 = vand.u32 %v3362, 4294901760
    %3364 = vmatmul.f32.gmra.mxu0 %v3363
    %v3365 = vpop.f32.mrf.mxu0
    %v3366 = vadd.f32 %v3280, %v3365
    %v3367 = vand.u32 %v147, 4294901760
    %v3368 = vsub.f32 %v147, %v3367
    %v3369 = vand.u32 %v3368, 4294901760
    %3370 = vmatmul.f32.gmra.mxu0 %v3369
    %v3371 = vpop.f32.mrf.mxu0
    %v3372 = vadd.f32 %v3285, %v3371
    %v3373 = vand.u32 %v150, 4294901760
    %v3374 = vsub.f32 %v150, %v3373
    %v3375 = vand.u32 %v3374, 4294901760
    %3376 = vmatmul.f32.gmra.mxu0 %v3375
    %v3377 = vpop.f32.mrf.mxu0
    %v3378 = vadd.f32 %v3290, %v3377
    %v3379 = vand.u32 %v153, 4294901760
    %v3380 = vsub.f32 %v153, %v3379
    %v3381 = vand.u32 %v3380, 4294901760
    %3382 = vmatmul.f32.gmra.mxu0 %v3381
    %v3383 = vpop.f32.mrf.mxu0
    %v3384 = vadd.f32 %v3295, %v3383
    %v3385 = vand.u32 %v156, 4294901760
    %v3386 = vsub.f32 %v156, %v3385
    %v3387 = vand.u32 %v3386, 4294901760
    %3388 = vmatmul.f32.gmra.mxu0 %v3387
    %v3389 = vpop.f32.mrf.mxu0
    %v3390 = vadd.f32 %v3300, %v3389
    %3391 = vdwg.mxu0
    %3392 = vmatpush.msra.mxu0 0.0
    %3393 = vmatpush.msra.mxu0 0.0
    %3394 = vmatpush.msra.mxu0 0.0
    %3395 = vmatpush.msra.mxu0 0.0
    %3396 = vmatpush.msra.mxu0 0.0
    %3397 = vmatpush.msra.mxu0 0.0
    %3398 = vmatpush.msra.mxu0 0.0
    %3399 = vmatpush.msra.mxu0 0.0
    %3400 = vmatpush.msra.mxu0 0.0
    %3401 = vmatpush.msra.mxu0 0.0
    %3402 = vmatpush.msra.mxu0 0.0
    %3403 = vmatpush.msra.mxu0 0.0
    %3404 = vmatpush.msra.mxu0 0.0
    %3405 = vmatpush.msra.mxu0 0.0
    %3406 = vmatpush.msra.mxu0 0.0
    %v3407 = vand.u32 %v2041, 4294901760
    %v3408 = vsub.f32 %v2041, %v3407
    %v3409 = vand.u32 %v3408, 4294901760
    %3410 = vmatpush.msra.mxu0 %v3409
    %v3411 = vand.u32 %v1152, 4294901760
    %3412 = vmatmul.f32.gmra.mxu0 %v3411
    %v3413 = vpop.f32.mrf.mxu0
    %v3414 = vadd.f32 %v3324, %v3413
    %v3415 = vand.u32 %v1155, 4294901760
    %3416 = vmatmul.f32.gmra.mxu0 %v3415
    %v3417 = vpop.f32.mrf.mxu0
    %v3418 = vadd.f32 %v3330, %v3417
    %v3419 = vand.u32 %v1158, 4294901760
    %3420 = vmatmul.f32.gmra.mxu0 %v3419
    %v3421 = vpop.f32.mrf.mxu0
    %v3422 = vadd.f32 %v3336, %v3421
    %v3423 = vand.u32 %v1161, 4294901760
    %3424 = vmatmul.f32.gmra.mxu0 %v3423
    %v3425 = vpop.f32.mrf.mxu0
    %v3426 = vadd.f32 %v3342, %v3425
    %v3427 = vand.u32 %v135, 4294901760
    %3428 = vmatmul.f32.gmra.mxu0 %v3427
    %v3429 = vpop.f32.mrf.mxu0
    %v3430 = vadd.f32 %v3348, %v3429
    %v3431 = vand.u32 %v138, 4294901760
    %3432 = vmatmul.f32.gmra.mxu0 %v3431
    %v3433 = vpop.f32.mrf.mxu0
    %v3434 = vadd.f32 %v3354, %v3433
    %v3435 = vand.u32 %v141, 4294901760
    %3436 = vmatmul.f32.gmra.mxu0 %v3435
    %v3437 = vpop.f32.mrf.mxu0
    %v3438 = vadd.f32 %v3360, %v3437
    %v3439 = vand.u32 %v144, 4294901760
    %3440 = vmatmul.f32.gmra.mxu0 %v3439
    %v3441 = vpop.f32.mrf.mxu0
    %v3442 = vadd.f32 %v3366, %v3441
    %v3443 = vand.u32 %v147, 4294901760
    %3444 = vmatmul.f32.gmra.mxu0 %v3443
    %v3445 = vpop.f32.mrf.mxu0
    %v3446 = vadd.f32 %v3372, %v3445
    %v3447 = vand.u32 %v150, 4294901760
    %3448 = vmatmul.f32.gmra.mxu0 %v3447
    %v3449 = vpop.f32.mrf.mxu0
    %v3450 = vadd.f32 %v3378, %v3449
    %v3451 = vand.u32 %v153, 4294901760
    %3452 = vmatmul.f32.gmra.mxu0 %v3451
    %v3453 = vpop.f32.mrf.mxu0
    %v3454 = vadd.f32 %v3384, %v3453
    %v3455 = vand.u32 %v156, 4294901760
    %3456 = vmatmul.f32.gmra.mxu0 %v3455
    %v3457 = vpop.f32.mrf.mxu0
    %v3458 = vadd.f32 %v3390, %v3457
    %3459 = vdwg.mxu0
    %3460 = vmatpush.msra.mxu0 0.0
    %3461 = vmatpush.msra.mxu0 0.0
    %3462 = vmatpush.msra.mxu0 0.0
    %3463 = vmatpush.msra.mxu0 0.0
    %3464 = vmatpush.msra.mxu0 0.0
    %3465 = vmatpush.msra.mxu0 0.0
    %3466 = vmatpush.msra.mxu0 0.0
    %3467 = vmatpush.msra.mxu0 0.0
    %3468 = vmatpush.msra.mxu0 0.0
    %3469 = vmatpush.msra.mxu0 0.0
    %3470 = vmatpush.msra.mxu0 0.0
    %3471 = vmatpush.msra.mxu0 0.0
    %3472 = vmatpush.msra.mxu0 0.0
    %3473 = vmatpush.msra.mxu0 0.0
    %3474 = vmatpush.msra.mxu0 0.0
    %v3475 = vand.u32 %v2041, 4294901760
    %3476 = vmatpush.msra.mxu0 %v3475
    %v3477 = vand.u32 %v1152, 4294901760
    %3478 = vmatmul.f32.gmra.mxu0 %v3477
    %v3479 = vpop.f32.mrf.mxu0
    %v3480 = vadd.f32 %v3414, %v3479
    %v3481 = vand.u32 %v1155, 4294901760
    %3482 = vmatmul.f32.gmra.mxu0 %v3481
    %v3483 = vpop.f32.mrf.mxu0
    %v3484 = vadd.f32 %v3418, %v3483
    %v3485 = vand.u32 %v1158, 4294901760
    %3486 = vmatmul.f32.gmra.mxu0 %v3485
    %v3487 = vpop.f32.mrf.mxu0
    %v3488 = vadd.f32 %v3422, %v3487
    %v3489 = vand.u32 %v1161, 4294901760
    %3490 = vmatmul.f32.gmra.mxu0 %v3489
    %v3491 = vpop.f32.mrf.mxu0
    %v3492 = vadd.f32 %v3426, %v3491
    %v3493 = vand.u32 %v135, 4294901760
    %3494 = vmatmul.f32.gmra.mxu0 %v3493
    %v3495 = vpop.f32.mrf.mxu0
    %v3496 = vadd.f32 %v3430, %v3495
    %v3497 = vand.u32 %v138, 4294901760
    %3498 = vmatmul.f32.gmra.mxu0 %v3497
    %v3499 = vpop.f32.mrf.mxu0
    %v3500 = vadd.f32 %v3434, %v3499
    %v3501 = vand.u32 %v141, 4294901760
    %3502 = vmatmul.f32.gmra.mxu0 %v3501
    %v3503 = vpop.f32.mrf.mxu0
    %v3504 = vadd.f32 %v3438, %v3503
    %v3505 = vand.u32 %v144, 4294901760
    %3506 = vmatmul.f32.gmra.mxu0 %v3505
    %v3507 = vpop.f32.mrf.mxu0
    %v3508 = vadd.f32 %v3442, %v3507
    %v3509 = vand.u32 %v147, 4294901760
    %3510 = vmatmul.f32.gmra.mxu0 %v3509
    %v3511 = vpop.f32.mrf.mxu0
    %v3512 = vadd.f32 %v3446, %v3511
    %v3513 = vand.u32 %v150, 4294901760
    %3514 = vmatmul.f32.gmra.mxu0 %v3513
    %v3515 = vpop.f32.mrf.mxu0
    %v3516 = vadd.f32 %v3450, %v3515
    %v3517 = vand.u32 %v153, 4294901760
    %3518 = vmatmul.f32.gmra.mxu0 %v3517
    %v3519 = vpop.f32.mrf.mxu0
    %v3520 = vadd.f32 %v3454, %v3519
    %v3521 = vand.u32 %v156, 4294901760
    %3522 = vmatmul.f32.gmra.mxu0 %v3521
    %v3523 = vpop.f32.mrf.mxu0
    %v3524 = vadd.f32 %v3458, %v3523
    %3525 = vdwg.mxu0
    %v3526 = vmax.f32 %v3480, 0.0
    %v3527 = vmax.f32 %v3484, 0.0
    %v3528 = vmax.f32 %v3488, 0.0
    %v3529 = vmax.f32 %v3492, 0.0
    %v3530 = vmax.f32 %v3496, 0.0
    %v3531 = vmax.f32 %v3500, 0.0
    %v3532 = vmax.f32 %v3504, 0.0
    %v3533 = vmax.f32 %v3508, 0.0
    %v3534 = vmax.f32 %v3512, 0.0
    %v3535 = vmax.f32 %v3516, 0.0
    %v3536 = vmax.f32 %v3520, 0.0
    %v3537 = vmax.f32 %v3524, 0.0
    %v3538 = vsel %vm1662, %v3526, 0.0
    %v3539 = vsel %vm1662, %v3527, 0.0
    %v3540 = vadd.f32 %v3538, %v3539
    %v3541 = vsel %vm1662, %v3528, 0.0
    %v3542 = vadd.f32 %v3540, %v3541
    %v3543 = vsel %vm1662, %v3529, 0.0
    %v3544 = vadd.f32 %v3542, %v3543
    %v3545 = vrot.slane %v3544, 4
    %v3546 = vadd.f32 %v3544, %v3545
    %v3547 = vrot.slane %v3546, 2
    %v3548 = vadd.f32 %v3546, %v3547
    %v3549 = vrot.slane %v3548, 1
    %v3550 = vadd.f32 %v3548, %v3549
    %v3551 = vmul.f32 %v3550, %v924
    %v3552 = vsub.f32 %v3526, %v3551
    %v3553 = vsub.f32 %v3527, %v3551
    %v3554 = vsub.f32 %v3528, %v3551
    %v3555 = vsub.f32 %v3529, %v3551
    %v3556 = vmul.f32 %v3552, %v3552
    %v3557 = vmul.f32 %v3553, %v3553
    %v3558 = vmul.f32 %v3554, %v3554
    %v3559 = vmul.f32 %v3555, %v3555
    %v3560 = vsel %vm1662, %v3556, 0.0
    %v3561 = vsel %vm1662, %v3557, 0.0
    %v3562 = vadd.f32 %v3560, %v3561
    %v3563 = vsel %vm1662, %v3558, 0.0
    %v3564 = vadd.f32 %v3562, %v3563
    %v3565 = vsel %vm1662, %v3559, 0.0
    %v3566 = vadd.f32 %v3564, %v3565
    %v3567 = vrot.slane %v3566, 4
    %v3568 = vadd.f32 %v3566, %v3567
    %v3569 = vrot.slane %v3568, 2
    %v3570 = vadd.f32 %v3568, %v3569
    %v3571 = vrot.slane %v3570, 1
    %v3572 = vadd.f32 %v3570, %v3571
    %v3573 = vmul.f32 %v3572, %v924
    %v3574 = vadd.f32 %v3573, 1e-05
    %v3575 = vrsqrt.pop %v3574
    %v3576 = vmul.f32 %v3575, %v3574
    %v3577 = vmul.f32 %v3576, %v3575
    %v3578 = vmul.f32 0.5, %v3577
    %v3579 = vsub.f32 1.5, %v3578
    %v3580 = vmul.f32 %v3575, %v3579
    %vm3581 = vweird.f32 %v3574
    %vm3582 = vweird.f32 %v3575
    %vm3583 = vmor %vm3581, %vm3582
    %v3584 = vsel %vm3583, %v3575, %v3580
    %v3585 = vmul.f32 %v3552, %v3584
    %v3586 = vmul.f32 %v3553, %v3584
    %v3587 = vmul.f32 %v3554, %v3584
    %v3588 = vmul.f32 %v3555, %v3584
    %v3589 = vmul.f32 %v3585, %v55
    %v3590 = vmul.f32 %v3586, %v56
    %v3591 = vmul.f32 %v3587, %v57
    %v3592 = vmul.f32 %v3588, %v58
    %v3593 = vadd.f32 %v3589, %v59
    %v3594 = vadd.f32 %v3590, %v60
    %v3595 = vadd.f32 %v3591, %v61
    %v3596 = vadd.f32 %v3592, %v62
    %v3597 = vsel %vm1662, %v3530, 0.0
    %v3598 = vsel %vm1662, %v3531, 0.0
    %v3599 = vadd.f32 %v3597, %v3598
    %v3600 = vsel %vm1662, %v3532, 0.0
    %v3601 = vadd.f32 %v3599, %v3600
    %v3602 = vsel %vm1662, %v3533, 0.0
    %v3603 = vadd.f32 %v3601, %v3602
    %v3604 = vrot.slane %v3603, 4
    %v3605 = vadd.f32 %v3603, %v3604
    %v3606 = vrot.slane %v3605, 2
    %v3607 = vadd.f32 %v3605, %v3606
    %v3608 = vrot.slane %v3607, 1
    %v3609 = vadd.f32 %v3607, %v3608
    %v3610 = vmul.f32 %v3609, %v924
    %v3611 = vsub.f32 %v3530, %v3610
    %v3612 = vsub.f32 %v3531, %v3610
    %v3613 = vsub.f32 %v3532, %v3610
    %v3614 = vsub.f32 %v3533, %v3610
    %v3615 = vmul.f32 %v3611, %v3611
    %v3616 = vmul.f32 %v3612, %v3612
    %v3617 = vmul.f32 %v3613, %v3613
    %v3618 = vmul.f32 %v3614, %v3614
    %v3619 = vsel %vm1662, %v3615, 0.0
    %v3620 = vsel %vm1662, %v3616, 0.0
    %v3621 = vadd.f32 %v3619, %v3620
    %v3622 = vsel %vm1662, %v3617, 0.0
    %v3623 = vadd.f32 %v3621, %v3622
    %v3624 = vsel %vm1662, %v3618, 0.0
    %v3625 = vadd.f32 %v3623, %v3624
    %v3626 = vrot.slane %v3625, 4
    %v3627 = vadd.f32 %v3625, %v3626
    %v3628 = vrot.slane %v3627, 2
    %v3629 = vadd.f32 %v3627, %v3628
    %v3630 = vrot.slane %v3629, 1
    %v3631 = vadd.f32 %v3629, %v3630
    %v3632 = vmul.f32 %v3631, %v924
    %v3633 = vadd.f32 %v3632, 1e-05
    %v3634 = vrsqrt.pop %v3633
    %v3635 = vmul.f32 %v3634, %v3633
    %v3636 = vmul.f32 %v3635, %v3634
    %v3637 = vmul.f32 0.5, %v3636
    %v3638 = vsub.f32 1.5, %v3637
    %v3639 = vmul.f32 %v3634, %v3638
    %vm3640 = vweird.f32 %v3633
    %vm3641 = vweird.f32 %v3634
    %vm3642 = vmor %vm3640, %vm3641
    %v3643 = vsel %vm3642, %v3634, %v3639
    %v3644 = vmul.f32 %v3611, %v3643
    %v3645 = vmul.f32 %v3612, %v3643
    %v3646 = vmul.f32 %v3613, %v3643
    %v3647 = vmul.f32 %v3614, %v3643
    %v3648 = vmul.f32 %v3644, %v55
    %v3649 = vmul.f32 %v3645, %v56
    %v3650 = vmul.f32 %v3646, %v57
    %v3651 = vmul.f32 %v3647, %v58
    %v3652 = vadd.f32 %v3648, %v59
    %v3653 = vadd.f32 %v3649, %v60
    %v3654 = vadd.f32 %v3650, %v61
    %v3655 = vadd.f32 %v3651, %v62
    %v3656 = vsel %vm1662, %v3534, 0.0
    %v3657 = vsel %vm1662, %v3535, 0.0
    %v3658 = vadd.f32 %v3656, %v3657
    %v3659 = vsel %vm1662, %v3536, 0.0
    %v3660 = vadd.f32 %v3658, %v3659
    %v3661 = vsel %vm1662, %v3537, 0.0
    %v3662 = vadd.f32 %v3660, %v3661
    %v3663 = vrot.slane %v3662, 4
    %v3664 = vadd.f32 %v3662, %v3663
    %v3665 = vrot.slane %v3664, 2
    %v3666 = vadd.f32 %v3664, %v3665
    %v3667 = vrot.slane %v3666, 1
    %v3668 = vadd.f32 %v3666, %v3667
    %v3669 = vmul.f32 %v3668, %v924
    %v3670 = vsub.f32 %v3534, %v3669
    %v3671 = vsub.f32 %v3535, %v3669
    %v3672 = vsub.f32 %v3536, %v3669
    %v3673 = vsub.f32 %v3537, %v3669
    %v3674 = vmul.f32 %v3670, %v3670
    %v3675 = vmul.f32 %v3671, %v3671
    %v3676 = vmul.f32 %v3672, %v3672
    %v3677 = vmul.f32 %v3673, %v3673
    %v3678 = vsel %vm1662, %v3674, 0.0
    %v3679 = vsel %vm1662, %v3675, 0.0
    %v3680 = vadd.f32 %v3678, %v3679
    %v3681 = vsel %vm1662, %v3676, 0.0
    %v3682 = vadd.f32 %v3680, %v3681
    %v3683 = vsel %vm1662, %v3677, 0.0
    %v3684 = vadd.f32 %v3682, %v3683
    %v3685 = vrot.slane %v3684, 4
    %v3686 = vadd.f32 %v3684, %v3685
    %v3687 = vrot.slane %v3686, 2
    %v3688 = vadd.f32 %v3686, %v3687
    %v3689 = vrot.slane %v3688, 1
    %v3690 = vadd.f32 %v3688, %v3689
    %v3691 = vmul.f32 %v3690, %v924
    %v3692 = vadd.f32 %v3691, 1e-05
    %v3693 = vrsqrt.pop %v3692
    %v3694 = vmul.f32 %v3693, %v3692
    %v3695 = vmul.f32 %v3694, %v3693
    %v3696 = vmul.f32 0.5, %v3695
    %v3697 = vsub.f32 1.5, %v3696
    %v3698 = vmul.f32 %v3693, %v3697
    %vm3699 = vweird.f32 %v3692
    %vm3700 = vweird.f32 %v3693
    %vm3701 = vmor %vm3699, %vm3700
    %v3702 = vsel %vm3701, %v3693, %v3698
    %v3703 = vmul.f32 %v3670, %v3702
    %v3704 = vmul.f32 %v3671, %v3702
    %v3705 = vmul.f32 %v3672, %v3702
    %v3706 = vmul.f32 %v3673, %v3702
    %v3707 = vmul.f32 %v3703, %v55
    %v3708 = vmul.f32 %v3704, %v56
    %v3709 = vmul.f32 %v3705, %v57
    %v3710 = vmul.f32 %v3706, %v58
    %v3711 = vadd.f32 %v3707, %v59
    %v3712 = vadd.f32 %v3708, %v60
    %v3713 = vadd.f32 %v3709, %v61
    %v3714 = vadd.f32 %v3710, %v62
    %v3715 = vmul.f32 %v3593, %v3652
    %v3716 = vmul.f32 %v3594, %v3653
    %v3717 = vmul.f32 %v3595, %v3654
    %v3718 = vmul.f32 %v3596, %v3655
    %v3719 = vsel %vm1662, %v3715, 0.0
    %v3720 = vsel %vm1662, %v3716, 0.0
    %v3721 = vadd.f32 %v3719, %v3720
    %v3722 = vsel %vm1662, %v3717, 0.0
    %v3723 = vadd.f32 %v3721, %v3722
    %v3724 = vsel %vm1662, %v3718, 0.0
    %v3725 = vadd.f32 %v3723, %v3724
    %v3726 = vrot.slane %v3725, 4
    %v3727 = vadd.f32 %v3725, %v3726
    %v3728 = vrot.slane %v3727, 2
    %v3729 = vadd.f32 %v3727, %v3728
    %v3730 = vrot.slane %v3729, 1
    %v3731 = vadd.f32 %v3729, %v3730
    %v3732 = vmul.f32 %v3731, 0.17677669
    %3734 = vset.pattern.permute.xlu0 0
    %3735 = vperm.xlu0 %3734, %v3593
    %v3736 = vpop.permute.xlu0 %3735
    %3739 = vset.pattern.permute.xlu0 0
    %3740 = vperm.xlu0 %3739, %v3594
    %v3741 = vpop.permute.xlu0 %3740
    %3744 = vset.pattern.permute.xlu0 0
    %3745 = vperm.xlu0 %3744, %v3595
    %v3746 = vpop.permute.xlu0 %3745
    %3749 = vset.pattern.permute.xlu0 0
    %3750 = vperm.xlu0 %3749, %v3596
    %v3751 = vpop.permute.xlu0 %3750
    %v3753 = vmul.f32 %v2929, %v3736
    %v3754 = vmul.f32 %v2930, %v3736
    %v3755 = vmul.f32 %v2931, %v3741
    %v3756 = vmul.f32 %v2932, %v3741
    %v3757 = vmul.f32 %v2933, %v3746
    %v3758 = vmul.f32 %v2934, %v3746
    %v3759 = vmul.f32 %v2935, %v3751
    %v3760 = vmul.f32 %v2936, %v3751
    %v3761 = vadd.f32 %v3753, %v3755
    %v3762 = vadd.f32 %v3761, %v3757
    %v3763 = vadd.f32 %v3762, %v3759
    %v3764 = vrot.slane %v3763, 4
    %v3765 = vadd.f32 %v3763, %v3764
    %v3766 = vrot.slane %v3765, 2
    %v3767 = vadd.f32 %v3765, %v3766
    %v3768 = vrot.slane %v3767, 1
    %v3769 = vadd.f32 %v3767, %v3768
    %v3770 = vadd.f32 %v3754, %v3756
    %v3771 = vadd.f32 %v3770, %v3758
    %v3772 = vadd.f32 %v3771, %v3760
    %v3773 = vrot.slane %v3772, 4
    %v3774 = vadd.f32 %v3772, %v3773
    %v3775 = vrot.slane %v3774, 2
    %v3776 = vadd.f32 %v3774, %v3775
    %v3777 = vrot.slane %v3776, 1
    %v3778 = vadd.f32 %v3776, %v3777
    %v3779 = vmul.f32 %v3769, 0.17677669
    %v3780 = vmul.f32 %v3778, 0.17677669
    %v3781 = vmax.f32 %v3779, %v3780
    %3782 = vmax.xlane.f32.xlu0 %v3781
    %v3783 = vpop.xlane.xlu0 %3782
    %v3784 = vmax.f32 %v3783, %v3732
    %v3785 = vsub.f32 %v3732, %v3784
    %v3786 = vmul.f32 %v3785, 1.442695
    %v3787 = vpow.pop %v3786
    %3789 = vset.pattern.permute.xlu0 0
    %3790 = vperm.xlu0 %3789, %v3784
    %v3791 = vpop.permute.xlu0 %3790
    %v3793 = vsub.f32 %v3779, %v3791
    %v3794 = vsub.f32 %v3780, %v3791
    %v3795 = vmul.f32 %v3793, 1.442695
    %v3796 = vpow.pop %v3795
    %v3797 = vmul.f32 %v3794, 1.442695
    %v3798 = vpow.pop %v3797
    %v3799 = vadd.f32 %v3796, %v3798
    %3800 = vadd.xlane.f32.xlu0 %v3799
    %v3801 = vpop.xlane.xlu0 %3800
    %v3802 = vadd.f32 %v3787, %v3801
    %v3803 = vrcp.pop %v3802
    %v3804 = vmul.f32 %v3802, %v3803
    %v3805 = vsub.f32 1.0, %v3804
    %v3806 = vmul.f32 %v3803, %v3805
    %v3807 = vadd.f32 %v3803, %v3806
    %vm3808 = vweird.f32 %v3802
    %vm3809 = vweird.f32 %v3803
    %vm3810 = vmor %vm3808, %vm3809
    %v3811 = vsel %vm3810, %v3803, %v3807
    %v3812 = vand.u32 2147483647, %v3802
    %vm3813 = vcmp.eq.f32.partialorder %v3812, 8.507059e+37
    %v3814 = vand.u32 %v3802, 2147483648
    %v3815 = vor.u32 1.1754944e-38, %v3814
    %v3816 = vsel %vm3813, %v3815, %v3811
    %v3817 = vmul.f32 1.0, %v3816
    %3819 = vset.pattern.permute.xlu0 0
    %3820 = vperm.xlu0 %3819, %v3817
    %v3821 = vpop.permute.xlu0 %3820
    %v3823 = vmul.f32 %v3796, %v3821
    %v3824 = vmul.f32 %v3798, %v3821
    %v3825 = vmul.f32 %v3787, %v3817
    %v3826 = vmul.f32 %v3825, %v3711
    %v3827 = vmul.f32 %v3825, %v3712
    %v3828 = vmul.f32 %v3825, %v3713
    %v3829 = vmul.f32 %v3825, %v3714
    %v3830 = vmul.f32 %v3031, %v3823
    %v3831 = vmul.f32 %v3032, %v3824
    %v3832 = vmul.f32 %v3033, %v3823
    %v3833 = vmul.f32 %v3034, %v3824
    %v3834 = vmul.f32 %v3035, %v3823
    %v3835 = vmul.f32 %v3036, %v3824
    %v3836 = vmul.f32 %v3037, %v3823
    %v3837 = vmul.f32 %v3038, %v3824
    %v3838 = vadd.f32 %v3830, %v3831
    %3839 = vadd.xlane.f32.xlu0 %v3838
    %v3840 = vpop.xlane.xlu0 %3839
    %v3841 = vadd.f32 %v3832, %v3833
    %3842 = vadd.xlane.f32.xlu0 %v3841
    %v3843 = vpop.xlane.xlu0 %3842
    %v3844 = vadd.f32 %v3834, %v3835
    %3845 = vadd.xlane.f32.xlu0 %v3844
    %v3846 = vpop.xlane.xlu0 %3845
    %v3847 = vadd.f32 %v3836, %v3837
    %3848 = vadd.xlane.f32.xlu0 %v3847
    %v3849 = vpop.xlane.xlu0 %3848
    %v3850 = vadd.f32 %v3826, %v3840
    %v3851 = vadd.f32 %v3827, %v3843
    %v3852 = vadd.f32 %v3828, %v3846
    %v3853 = vadd.f32 %v3829, %v3849
    %3855 = vset.pattern.permute.xlu0 0
    %3856 = vperm.xlu0 %3855, %v3850
    %v3857 = vpop.permute.xlu0 %3856
    %3860 = vset.pattern.permute.xlu0 0
    %3861 = vperm.xlu0 %3860, %v3851
    %v3862 = vpop.permute.xlu0 %3861
    %3865 = vset.pattern.permute.xlu0 0
    %3866 = vperm.xlu0 %3865, %v3852
    %v3867 = vpop.permute.xlu0 %3866
    %3870 = vset.pattern.permute.xlu0 0
    %3871 = vperm.xlu0 %3870, %v3853
    %v3872 = vpop.permute.xlu0 %3871
    %v3874 = vmul.f32 %v63, %v3857
    %v3875 = vmul.f32 %v64, %v3862
    %v3876 = vmul.f32 %v65, %v3867
    %v3877 = vmul.f32 %v66, %v3872
    %v3878 = vsel %vm133, %v3874, 0.0
    %v3879 = vsel %vm133, %v3875, 0.0
    %v3880 = vadd.f32 %v3878, %v3879
    %v3881 = vsel %vm133, %v3876, 0.0
    %v3882 = vadd.f32 %v3880, %v3881
    %v3883 = vsel %vm133, %v3877, 0.0
    %v3884 = vadd.f32 %v3882, %v3883
    %v3885 = vrot.slane %v3884, 4
    %v3886 = vadd.f32 %v3884, %v3885
    %v3887 = vrot.slane %v3886, 2
    %v3888 = vadd.f32 %v3886, %v3887
    %v3889 = vrot.slane %v3888, 1
    %v3890 = vadd.f32 %v3888, %v3889
    %v3891 = vmul.f32 %v2034, %v3823
    %v3892 = vmul.f32 %v2035, %v3824
    %s3893 = scalar_lea.vmem [#allocation2], 16
    %3894 = vst [vmem:[%s3893] sm:$0xff] %v3891
    %3895 = vst [vmem:[%s3893 + $0x8] sm:$0xff] %v3892
    %v3898 = vrot.slane %v3824, 7
    %v3899 = vsel %vm2023, %v3823, %v3898
    %s3901 = scalar_lea.vmem [#allocation6], 2
    %3902 = vst.msk [vmem:[%s3901] sm:$0x3] %vm2029, %v3899
    %s3903 = scalar_lea.vmem [#allocation4], 1
    %3904 = vst.msk [vmem:[%s3903] sm:$0x1] %vm2031, %v3890
    // Predicated region
    $region30: #{tpu_custom_call.1} parent=1 // pred_check
      _
    $region31: #{tpu_custom_call.1} parent=1 // pred_check_branch
      %3906 = sbr.rel (0) target = $region33
    $region32: #{tpu_custom_call.1} parent=1 // pred_region
      %3908 = vsyncadd [#allocation3], 0
      %s3909 = sshll.u32 [#allocation2], 4
      %s3910 = int_to_ptr.vmem [resolvable:$true] %s3909
      %s3911 = sshll.u32 %s7, 4
      %s3912 = int_to_ptr.hbm [resolvable:$true] %s3911
      %3917 = dma.vmem_to_hbm [thread:$0]  %s3910, 512, %s3912, [#allocation3], 256, 256, 16
    $region33: #{tpu_custom_call.1} parent=1 // pred_fallthru
      _
    // Predicated region
    $region34: #{tpu_custom_call.1} parent=1 // pred_check
      _
    $region35: #{tpu_custom_call.1} parent=1 // pred_check_branch
      %3919 = sbr.rel (0) target = $region37
    $region36: #{tpu_custom_call.1} parent=1 // pred_region
      %3921 = vsyncadd [#allocation5], 0
      %s3922 = sshll.u32 [#allocation4], 4
      %s3923 = int_to_ptr.vmem [resolvable:$true] %s3922
      %s3924 = sshll.u32 %s8, 4
      %s3925 = int_to_ptr.hbm [resolvable:$true] %s3924
      %3930 = dma.vmem_to_hbm [thread:$0]  %s3923, 32, %s3925, [#allocation5], 16, 16, 1
    $region37: #{tpu_custom_call.1} parent=1 // pred_fallthru
      _
    // Predicated region
    $region38: #{tpu_custom_call.1} parent=1 // pred_check
      _
    $region39: #{tpu_custom_call.1} parent=1 // pred_check_branch
      %3932 = sbr.rel (0) target = $region41
    $region40: #{tpu_custom_call.1} parent=1 // pred_region
      %3934 = vsyncadd [#allocation5], 0
      %s3935 = sshll.u32 [#allocation6], 4
      %s3936 = int_to_ptr.vmem [resolvable:$true] %s3935
      %s3937 = sshll.u32 %s9, 4
      %s3938 = int_to_ptr.hbm [resolvable:$true] %s3937
      %3943 = dma.vmem_to_hbm [thread:$0]  %s3936, 64, %s3938, [#allocation5], 32, 32, 2
    $region41: #{tpu_custom_call.1} parent=1 // pred_fallthru
      _
    // Predicated region
    $region42: #{tpu_custom_call.1} parent=1 // pred_check
      _
    $region43: #{tpu_custom_call.1} parent=1 // pred_check_branch
      %3945 = sbr.rel (0) target = $region45
    $region44: #{tpu_custom_call.1} parent=1 // pred_region
      %3947 = dma.done [#allocation3], 512
    $region45: #{tpu_custom_call.1} parent=1 // pred_fallthru
      _
    // Predicated region
    $region46: #{tpu_custom_call.1} parent=1 // pred_check
      _
    $region47: #{tpu_custom_call.1} parent=1 // pred_check_branch
      %3949 = sbr.rel (0) target = $region49
    $region48: #{tpu_custom_call.1} parent=1 // pred_region
      %3951 = dma.done [#allocation5], 32
    $region49: #{tpu_custom_call.1} parent=1 // pred_fallthru
      _
    // Predicated region
    $region50: #{tpu_custom_call.1} parent=1 // pred_check
      _
    $region51: #{tpu_custom_call.1} parent=1 // pred_check_branch
      %3953 = sbr.rel (0) target = $region53
    $region52: #{tpu_custom_call.1} parent=1 // pred_region
      %3955 = dma.done [#allocation5], 64
    $region53: #{tpu_custom_call.1} parent=1 // pred_fallthru
      _
    %3956 = vsyncpa [#allocation3], 1
    %3957 = vsyncpa [#allocation5], 1

</llo_original>
